<compile_context>
chip_gen: v7x
topology: tpu7x:2x2x1
jax: 0.10.0
libtpu: 0.0.40
codegen_flags: <defaults>
</compile_context>

<pallas_src>
import functools

import jax
import jax.numpy as jnp
from jax.experimental import pallas as pl
from jax.experimental.pallas import tpu as pltpu


def _redshift_kernel(BT, L,
                     x1_ref, w1_ref, b1_ref, w2_ref, b2_ref, w3_ref, b3_ref,
                     wfc1_ref, bfc1_ref, wfc2_ref, bfc2_ref, wfc3_ref, bfc3_ref,
                     out_ref,
                     pad2, pad3, p3_buf):
    P1, P2, P3 = L // 2, L // 4, L // 8
    f32 = jnp.float32

    # ---- conv1: Conv1d(1 -> 16, k=5, pad=2) + maxpool(2) + tanh ------------
    # x1_ref holds the wrapper-built im2col slab (BT, P1, 8) with
    # slab[b, p, m] = x_pad[b, 2p+m] (taps 6..7 are zero padding).  One MXU
    # matmul produces [even | odd] pre-activations; pool first, then bias+tanh.
    s1 = x1_ref[...].reshape(BT * P1, 8)
    y1 = jnp.dot(s1, w1_ref[...], preferred_element_type=f32)        # (BT*P1, 32)
    p1 = jnp.tanh(jnp.maximum(y1[:, 0:16], y1[:, 16:32]) + b1_ref[...])

    # conv2 input buffer; only the 2-row zero halos are rewritten each step.
    pad2[:, 0:2, :] = jnp.zeros((BT, 2, 16), f32)
    pad2[:, 2 + P1:4 + P1, :] = jnp.zeros((BT, 2, 16), f32)
    pad2[:, 2:2 + P1, :] = p1.reshape(BT, P1, 16)

    # ---- conv2: Conv1d(16 -> 32, k=5, pad=2) + maxpool(2) + tanh -----------
    # Single matmul: 6 taps x 16 ch folded into K=96, even|odd into N=64.
    slab2 = jnp.concatenate(
        [pad2[:, pl.ds(m, P2, 2), :] for m in range(6)],
        axis=-1).reshape(BT * P2, 96)
    y2 = jnp.dot(slab2, w2_ref[...], preferred_element_type=f32)     # (BT*P2, 64)
    p2 = jnp.tanh(jnp.maximum(y2[:, 0:32], y2[:, 32:64]) + b2_ref[...])

    pad3[:, 0:2, :] = jnp.zeros((BT, 2, 32), f32)
    pad3[:, 2 + P2:4 + P2, :] = jnp.zeros((BT, 2, 32), f32)
    pad3[:, 2:2 + P2, :] = p2.reshape(BT, P2, 32)

    # ---- conv3: Conv1d(32 -> 64, k=5, pad=2) + maxpool(2) + relu -----------
    slab3 = jnp.concatenate(
        [pad3[:, pl.ds(m, P3, 2), :] for m in range(6)],
        axis=-1).reshape(BT * P3, 192)
    y3 = jnp.dot(slab3, w3_ref[...], preferred_element_type=f32)     # (BT*P3, 128)
    p3_buf[...] = jnp.maximum(
        jnp.maximum(y3[:, 0:64], y3[:, 64:128]) + b3_ref[...], 0.0)

    # ---- fc1: Linear(64 * P3 -> 128) + relu --------------------------------
    # Accumulate over the P3 pooled positions; torch's channel-major flatten
    # (c*P3 + l) is absorbed into the pre-permuted (P3, 64, 128) weight.
    h = jnp.broadcast_to(bfc1_ref[...], (BT, 128))
    for l in range(P3):
        h = h + jnp.dot(p3_buf[pl.ds(l, BT, P3), :], wfc1_ref[l],
                        preferred_element_type=f32)
    h = jnp.maximum(h, 0.0)
    # TODO(synk): Dropout(0.3) is identity at inference; training-mode dropout not implemented.

    # ---- fc2: Linear(128 -> 64) + relu; fc3: Linear(64 -> 1) ---------------
    h = jnp.maximum(
        jnp.dot(h, wfc2_ref[...], preferred_element_type=f32) + bfc2_ref[...], 0.0)
    y = jnp.dot(h, wfc3_ref[...], preferred_element_type=f32) + bfc3_ref[...]
    out_ref[...] = jnp.transpose(y).reshape(1, 1, BT)   # lane-dense: batch on lanes


def redshift_cnn_forward(x, params, *, batch_tile=128):
    """x: (B, L) float32 spectra (L % 32 == 0). Returns (B, 1)."""
    (c1w, c1b, c2w, c2b, c3w, c3b, f1w, f1b, f2w, f2b, f3w, f3b) = params
    B, L = x.shape
    assert L % 32 == 0, "kernel assumes input_dim % 32 == 0 (tile-aligned pooled lengths)"
    P1, P2, P3 = L // 2, L // 4, L // 8
    f32 = jnp.float32

    def _round8(v):
        return max(8, ((v + 7) // 8) * 8)

    # VMEM-aware batch tile (conv1 slab block is lane padded and double
    # buffered; matmul temporaries scale with BT*L) -- keeps v7x's 64 MiB VMEM
    # in budget -- and prefer >= 2 grid steps so the "parallel" batch axis can
    # be split across TensorCores.
    vmem_rows = (24 * 1024 * 1024) // (L * 960 + 4096)
    BT = max(8, (min(batch_tile, vmem_rows) // 8) * 8)
    BT = min(BT, _round8((B + 1) // 2))
    B_pad = ((B + BT - 1) // BT) * BT
    G = B_pad // BT

    # ---- Fold PyTorch-layout conv weights for the single-matmul form. ------
    def _fold_conv(w, c_in, c_out):
        # (c_out, c_in, 5) -> (6*c_in, 2*c_out); rows m*c_in+ci, cols [even|odd].
        wt = jnp.transpose(w.astype(f32), (2, 1, 0)).reshape(5 * c_in, c_out)
        z = jnp.zeros((c_in, c_out), f32)
        return jnp.concatenate([jnp.concatenate([wt, z], axis=0),
                                jnp.concatenate([z, wt], axis=0)], axis=1)

    w1f = _fold_conv(c1w, 1, 16)                                    # (6, 32)
    w1f = jnp.concatenate([w1f, jnp.zeros((2, 32), f32)], axis=0)   # pad K to 8
    b1 = c1b.astype(f32).reshape(1, 16)
    w2f = _fold_conv(c2w, 16, 32)                                   # (96, 64)
    b2 = c2b.astype(f32).reshape(1, 32)
    w3f = _fold_conv(c3w, 32, 64)                                   # (192, 128)
    b3 = c3b.astype(f32).reshape(1, 64)

    # torch flat index is c*P3 + l (channel-major) -> per-position fc1 slices.
    wfc1 = jnp.transpose(f1w.astype(f32).reshape(128, 64, P3), (2, 1, 0))  # (P3, 64, 128)
    bfc1 = f1b.astype(f32).reshape(1, 128)
    wfc2 = f2w.astype(f32).T                                        # (128, 64)
    bfc2 = f2b.astype(f32).reshape(1, 64)
    wfc3 = f3w.astype(f32).T                                        # (64, 1)
    bfc3 = f3b.astype(f32).reshape(1, 1)

    # ---- conv1 im2col slab built once in HBM (layout plumbing only):
    # slab[b, p, m] = x_pad[b, 2p + m]; taps 6..7 are zeros to pad K to 8.
    xp = jnp.pad(x.astype(f32), ((0, B_pad - B), (2, 2)))           # (B_pad, L+4)
    taps = [xp[:, m:m + L:2] for m in range(6)]
    taps += [jnp.zeros_like(taps[0])] * 2
    xslab = jnp.stack(taps, axis=-1)                                # (B_pad, P1, 8)

    kernel = functools.partial(_redshift_kernel, BT, L)
    out = pl.pallas_call(
        kernel,
        out_shape=jax.ShapeDtypeStruct((G, 1, BT), f32),
        grid_spec=pltpu.PrefetchScalarGridSpec(
            num_scalar_prefetch=0,
            grid=(G,),
            in_specs=[
                pl.BlockSpec((BT, P1, 8), lambda g: (g, 0, 0)),     # conv1 slab
                pl.BlockSpec((8, 32), lambda g: (0, 0)),            # w1 (taps|parity folded)
                pl.BlockSpec((1, 16), lambda g: (0, 0)),            # b1
                pl.BlockSpec((96, 64), lambda g: (0, 0)),           # w2 folded
                pl.BlockSpec((1, 32), lambda g: (0, 0)),            # b2
                pl.BlockSpec((192, 128), lambda g: (0, 0)),         # w3 folded
                pl.BlockSpec((1, 64), lambda g: (0, 0)),            # b3
                pl.BlockSpec((P3, 64, 128), lambda g: (0, 0, 0)),   # fc1 per-position
                pl.BlockSpec((1, 128), lambda g: (0, 0)),           # bfc1
                pl.BlockSpec((128, 64), lambda g: (0, 0)),          # fc2
                pl.BlockSpec((1, 64), lambda g: (0, 0)),            # bfc2
                pl.BlockSpec((64, 1), lambda g: (0, 0)),            # fc3
                pl.BlockSpec((1, 1), lambda g: (0, 0)),             # bfc3
            ],
            out_specs=pl.BlockSpec((1, 1, BT), lambda g: (g, 0, 0)),
            scratch_shapes=[
                pltpu.VMEM((BT, P1 + 4, 16), f32),   # conv2 input (zero-halo)
                pltpu.VMEM((BT, P2 + 4, 32), f32),   # conv3 input (zero-halo)
                pltpu.VMEM((BT * P3, 64), f32),      # pooled conv3 output
            ],
        ),
        compiler_params=pltpu.CompilerParams(
            dimension_semantics=("parallel",),
            vmem_limit_bytes=48 * 1024 * 1024),
    )(xslab, w1f, b1, w2f, b2, w3f, b3, wfc1, bfc1, wfc2, bfc2, wfc3, bfc3)
    return out.reshape(B_pad)[:B].reshape(B, 1)


def reference_forward(x, params):
    """Pure-JAX reference matching the PyTorch module semantics (eval mode)."""
    (c1w, c1b, c2w, c2b, c3w, c3b, f1w, f1b, f2w, f2b, f3w, f3b) = params
    B, L = x.shape

    def conv_act_pool(h, w, b, act):
        Bc, Lc, Ci = h.shape
        Co = w.shape[0]
        hp = jnp.pad(h, ((0, 0), (2, 2), (0, 0)))
        y = jnp.broadcast_to(b[None, None, :], (Bc, Lc, Co))
        for k in range(5):
            y = y + jnp.einsum('bli,oi->blo', hp[:, k:k + Lc, :], w[:, :, k])
        y = act(y)
        return jnp.max(y.reshape(Bc, Lc // 2, 2, Co), axis=2)

    h = x[:, :, None]
    h = conv_act_pool(h, c1w, c1b, jnp.tanh)
    h = conv_act_pool(h, c2w, c2b, jnp.tanh)
    h = conv_act_pool(h, c3w, c3b, lambda v: jnp.maximum(v, 0.0))
    # h: (B, L//8, 64) channels-last -> torch flatten of (B, 64, L//8) is channel-major
    flat = jnp.transpose(h, (0, 2, 1)).reshape(B, -1)
    z = jnp.maximum(flat @ f1w.T + f1b, 0.0)
    z = jnp.maximum(z @ f2w.T + f2b, 0.0)
    return z @ f3w.T + f3b


if __name__ == "__main__":
    INPUT_DIM = 64   # spectrum length; L // 8 = 8
    BATCH = 2
    L8 = INPUT_DIM // 8

    key = jax.random.PRNGKey(0)
    keys = jax.random.split(key, 13)

    def init(k, shape, scale=0.1):
        return (scale * jax.random.normal(k, shape)).astype(jnp.float32)

    # Parameters in PyTorch layouts.
    params = (
        init(keys[0], (16, 1, 5)),  init(keys[1], (16,)),      # conv1
        init(keys[2], (32, 16, 5)), init(keys[3], (32,)),      # conv2
        init(keys[4], (64, 32, 5)), init(keys[5], (64,)),      # conv3
        init(keys[6], (128, 64 * L8)), init(keys[7], (128,)),  # fc1
        init(keys[8], (64, 128)),   init(keys[9], (64,)),      # fc2
        init(keys[10], (1, 64)),    init(keys[11], (1,)),      # fc3
    )
    x = jax.random.normal(keys[12], (BATCH, INPUT_DIM), dtype=jnp.float32)

    out = jax.block_until_ready(redshift_cnn_forward(x, params))
    ref = reference_forward(x, params)

    assert out.shape == (BATCH, 1), out.shape
    if not jnp.allclose(out, ref, atol=2e-3, rtol=2e-3):
        raise AssertionError(f"Pallas/reference mismatch:\n{out}\nvs\n{ref}")
    print("KERNEL_OK")
</pallas_src>

<mosaic_0001>
module attributes {stable_mosaic.version = 11 : i64} {
  func.func @_redshift_kernel(%arg0: i32, %arg1: memref<8x32x8xf32, #tpu.memory_space<vmem>>, %arg2: memref<8x32xf32, #tpu.memory_space<vmem>>, %arg3: memref<1x16xf32, #tpu.memory_space<vmem>>, %arg4: memref<96x64xf32, #tpu.memory_space<vmem>>, %arg5: memref<1x32xf32, #tpu.memory_space<vmem>>, %arg6: memref<192x128xf32, #tpu.memory_space<vmem>>, %arg7: memref<1x64xf32, #tpu.memory_space<vmem>>, %arg8: memref<8x64x128xf32, #tpu.memory_space<vmem>>, %arg9: memref<1x128xf32, #tpu.memory_space<vmem>>, %arg10: memref<128x64xf32, #tpu.memory_space<vmem>>, %arg11: memref<1x64xf32, #tpu.memory_space<vmem>>, %arg12: memref<64x1xf32, #tpu.memory_space<vmem>>, %arg13: memref<1x1xf32, #tpu.memory_space<vmem>>, %arg14: memref<1x1x8xf32, #tpu.memory_space<vmem>>, %arg15: memref<8x36x16xf32, #tpu.memory_space<vmem>>, %arg16: memref<8x20x32xf32, #tpu.memory_space<vmem>>, %arg17: memref<64x64xf32, #tpu.memory_space<vmem>>) attributes {dimension_semantics = [#tpu.dimension_semantics<parallel>], iteration_bounds = array<i64: 1>, scalar_prefetch = 0 : i64, scratch_operands = 3 : i64, tpu.core_type = #tpu.core_type<tc>, window_params = [{transform_indices = @transform_0, window_bounds = array<i64: 8, 32, 8>}, {pipeline_mode = #tpu.pipeline_mode<synchronous>, transform_indices = @transform_1, window_bounds = array<i64: 8, 32>}, {pipeline_mode = #tpu.pipeline_mode<synchronous>, transform_indices = @transform_2, window_bounds = array<i64: 1, 16>}, {pipeline_mode = #tpu.pipeline_mode<synchronous>, transform_indices = @transform_3, window_bounds = array<i64: 96, 64>}, {pipeline_mode = #tpu.pipeline_mode<synchronous>, transform_indices = @transform_4, window_bounds = array<i64: 1, 32>}, {pipeline_mode = #tpu.pipeline_mode<synchronous>, transform_indices = @transform_5, window_bounds = array<i64: 192, 128>}, {pipeline_mode = #tpu.pipeline_mode<synchronous>, transform_indices = @transform_6, window_bounds = array<i64: 1, 64>}, {pipeline_mode = #tpu.pipeline_mode<synchronous>, transform_indices = @transform_7, window_bounds = array<i64: 8, 64, 128>}, {pipeline_mode = #tpu.pipeline_mode<synchronous>, transform_indices = @transform_8, window_bounds = array<i64: 1, 128>}, {pipeline_mode = #tpu.pipeline_mode<synchronous>, transform_indices = @transform_9, window_bounds = array<i64: 128, 64>}, {pipeline_mode = #tpu.pipeline_mode<synchronous>, transform_indices = @transform_10, window_bounds = array<i64: 1, 64>}, {pipeline_mode = #tpu.pipeline_mode<synchronous>, transform_indices = @transform_11, window_bounds = array<i64: 64, 1>}, {pipeline_mode = #tpu.pipeline_mode<synchronous>, transform_indices = @transform_12, window_bounds = array<i64: 1, 1>}, {transform_indices = @transform_13, window_bounds = array<i64: 1, 1, 8>}]} {
    %c0 = arith.constant 0 : index
    %c0_0 = arith.constant 0 : index
    %c0_1 = arith.constant 0 : index
    %0 = vector.load %arg1[%c0, %c0_0, %c0_1] : memref<8x32x8xf32, #tpu.memory_space<vmem>>, vector<8x32x8xf32>
    %1 = vector.shape_cast %0 : vector<8x32x8xf32> to vector<256x8xf32>
    %c0_2 = arith.constant 0 : index
    %c0_3 = arith.constant 0 : index
    %2 = vector.load %arg2[%c0_2, %c0_3] : memref<8x32xf32, #tpu.memory_space<vmem>>, vector<8x32xf32>
    %cst = arith.constant dense<0.000000e+00> : vector<256x32xf32>
    %3 = tpu.matmul %1, %2, %cst {dimension_numbers = #tpu.dot_dimension_numbers<[1], [0], [0], [1], [0, 0, 1, 1], [], []>} : vector<256x8xf32>, vector<8x32xf32>, vector<256x32xf32> -> vector<256x32xf32>
    %4 = vector.extract_strided_slice %3 {offsets = [0, 0], sizes = [256, 16], strides = [1, 1]} : vector<256x32xf32> to vector<256x16xf32>
    %5 = vector.extract_strided_slice %3 {offsets = [0, 16], sizes = [256, 16], strides = [1, 1]} : vector<256x32xf32> to vector<256x16xf32>
    %6 = arith.maximumf %4, %5 : vector<256x16xf32>
    %c0_4 = arith.constant 0 : index
    %c0_5 = arith.constant 0 : index
    %7 = vector.load %arg3[%c0_4, %c0_5] : memref<1x16xf32, #tpu.memory_space<vmem>>, vector<1x16xf32>
    %8 = vector.broadcast %7 : vector<1x16xf32> to vector<256x16xf32>
    %9 = arith.addf %6, %8 : vector<256x16xf32>
    %10 = math.tanh %9 : vector<256x16xf32>
    %cst_6 = arith.constant 0.000000e+00 : f32
    %11 = vector.broadcast %cst_6 : f32 to vector<8x2x16xf32>
    %c0_7 = arith.constant 0 : index
    %c0_8 = arith.constant 0 : index
    %c0_9 = arith.constant 0 : index
    %12 = vector.load %arg15[%c0_7, %c0_8, %c0_9] : memref<8x36x16xf32, #tpu.memory_space<vmem>>, vector<8x2x16xf32>
    tpu.vector_store %arg15[%c0_7, %c0_8, %c0_9], %11 {strides = array<i32>} : memref<8x36x16xf32, #tpu.memory_space<vmem>>, vector<8x2x16xf32>,
    %cst_10 = arith.constant 0.000000e+00 : f32
    %13 = vector.broadcast %cst_10 : f32 to vector<8x2x16xf32>
    %c0_11 = arith.constant 0 : index
    %c34 = arith.constant 34 : index
    %c0_12 = arith.constant 0 : index
    %14 = vector.load %arg15[%c0_11, %c34, %c0_12] : memref<8x36x16xf32, #tpu.memory_space<vmem>>, vector<8x2x16xf32>
    tpu.vector_store %arg15[%c0_11, %c34, %c0_12], %13 {strides = array<i32>} : memref<8x36x16xf32, #tpu.memory_space<vmem>>, vector<8x2x16xf32>,
    %15 = vector.shape_cast %10 : vector<256x16xf32> to vector<8x32x16xf32>
    %c0_13 = arith.constant 0 : index
    %c2 = arith.constant 2 : index
    %c0_14 = arith.constant 0 : index
    %16 = vector.load %arg15[%c0_13, %c2, %c0_14] : memref<8x36x16xf32, #tpu.memory_space<vmem>>, vector<8x32x16xf32>
    tpu.vector_store %arg15[%c0_13, %c2, %c0_14], %15 {strides = array<i32>} : memref<8x36x16xf32, #tpu.memory_space<vmem>>, vector<8x32x16xf32>,
    %c0_15 = arith.constant 0 : index
    %c0_16 = arith.constant 0 : index
    %c0_17 = arith.constant 0 : index
    %17 = tpu.strided_load %arg15[%c0_15, %c0_16, %c0_17] {strides = array<i32: 1, 2, 1>} : memref<8x36x16xf32, #tpu.memory_space<vmem>>, vector<8x16x16xf32>
    %c0_18 = arith.constant 0 : index
    %c1 = arith.constant 1 : index
    %c0_19 = arith.constant 0 : index
    %18 = tpu.strided_load %arg15[%c0_18, %c1, %c0_19] {strides = array<i32: 1, 2, 1>} : memref<8x36x16xf32, #tpu.memory_space<vmem>>, vector<8x16x16xf32>
    %c0_20 = arith.constant 0 : index
    %c2_21 = arith.constant 2 : index
    %c0_22 = arith.constant 0 : index
    %19 = tpu.strided_load %arg15[%c0_20, %c2_21, %c0_22] {strides = array<i32: 1, 2, 1>} : memref<8x36x16xf32, #tpu.memory_space<vmem>>, vector<8x16x16xf32>
    %c0_23 = arith.constant 0 : index
    %c3 = arith.constant 3 : index
    %c0_24 = arith.constant 0 : index
    %20 = tpu.strided_load %arg15[%c0_23, %c3, %c0_24] {strides = array<i32: 1, 2, 1>} : memref<8x36x16xf32, #tpu.memory_space<vmem>>, vector<8x16x16xf32>
    %c0_25 = arith.constant 0 : index
    %c4 = arith.constant 4 : index
    %c0_26 = arith.constant 0 : index
    %21 = tpu.strided_load %arg15[%c0_25, %c4, %c0_26] {strides = array<i32: 1, 2, 1>} : memref<8x36x16xf32, #tpu.memory_space<vmem>>, vector<8x16x16xf32>
    %c0_27 = arith.constant 0 : index
    %c5 = arith.constant 5 : index
    %c0_28 = arith.constant 0 : index
    %22 = tpu.strided_load %arg15[%c0_27, %c5, %c0_28] {strides = array<i32: 1, 2, 1>} : memref<8x36x16xf32, #tpu.memory_space<vmem>>, vector<8x16x16xf32>
    %23 = tpu.concatenate %17, %18, %19, %20, %21, %22 in 2 : vector<8x16x16xf32>, vector<8x16x16xf32>, vector<8x16x16xf32>, vector<8x16x16xf32>, vector<8x16x16xf32>, vector<8x16x16xf32> -> vector<8x16x96xf32>
    %24 = vector.shape_cast %23 : vector<8x16x96xf32> to vector<128x96xf32>
    %c0_29 = arith.constant 0 : index
    %c0_30 = arith.constant 0 : index
    %25 = vector.load %arg4[%c0_29, %c0_30] : memref<96x64xf32, #tpu.memory_space<vmem>>, vector<96x64xf32>
    %cst_31 = arith.constant dense<0.000000e+00> : vector<128x64xf32>
    %26 = tpu.matmul %24, %25, %cst_31 {dimension_numbers = #tpu.dot_dimension_numbers<[1], [0], [0], [1], [0, 0, 1, 1], [], []>} : vector<128x96xf32>, vector<96x64xf32>, vector<128x64xf32> -> vector<128x64xf32>
    %27 = vector.extract_strided_slice %26 {offsets = [0, 0], sizes = [128, 32], strides = [1, 1]} : vector<128x64xf32> to vector<128x32xf32>
    %28 = vector.extract_strided_slice %26 {offsets = [0, 32], sizes = [128, 32], strides = [1, 1]} : vector<128x64xf32> to vector<128x32xf32>
    %29 = arith.maximumf %27, %28 : vector<128x32xf32>
    %c0_32 = arith.constant 0 : index
    %c0_33 = arith.constant 0 : index
    %30 = vector.load %arg5[%c0_32, %c0_33] : memref<1x32xf32, #tpu.memory_space<vmem>>, vector<1x32xf32>
    %31 = vector.broadcast %30 : vector<1x32xf32> to vector<128x32xf32>
    %32 = arith.addf %29, %31 : vector<128x32xf32>
    %33 = math.tanh %32 : vector<128x32xf32>
    %cst_34 = arith.constant 0.000000e+00 : f32
    %34 = vector.broadcast %cst_34 : f32 to vector<8x2x32xf32>
    %c0_35 = arith.constant 0 : index
    %c0_36 = arith.constant 0 : index
    %c0_37 = arith.constant 0 : index
    %35 = vector.load %arg16[%c0_35, %c0_36, %c0_37] : memref<8x20x32xf32, #tpu.memory_space<vmem>>, vector<8x2x32xf32>
    tpu.vector_store %arg16[%c0_35, %c0_36, %c0_37], %34 {strides = array<i32>} : memref<8x20x32xf32, #tpu.memory_space<vmem>>, vector<8x2x32xf32>,
    %cst_38 = arith.constant 0.000000e+00 : f32
    %36 = vector.broadcast %cst_38 : f32 to vector<8x2x32xf32>
    %c0_39 = arith.constant 0 : index
    %c18 = arith.constant 18 : index
    %c0_40 = arith.constant 0 : index
    %37 = vector.load %arg16[%c0_39, %c18, %c0_40] : memref<8x20x32xf32, #tpu.memory_space<vmem>>, vector<8x2x32xf32>
    tpu.vector_store %arg16[%c0_39, %c18, %c0_40], %36 {strides = array<i32>} : memref<8x20x32xf32, #tpu.memory_space<vmem>>, vector<8x2x32xf32>,
    %38 = vector.shape_cast %33 : vector<128x32xf32> to vector<8x16x32xf32>
    %c0_41 = arith.constant 0 : index
    %c2_42 = arith.constant 2 : index
    %c0_43 = arith.constant 0 : index
    %39 = vector.load %arg16[%c0_41, %c2_42, %c0_43] : memref<8x20x32xf32, #tpu.memory_space<vmem>>, vector<8x16x32xf32>
    tpu.vector_store %arg16[%c0_41, %c2_42, %c0_43], %38 {strides = array<i32>} : memref<8x20x32xf32, #tpu.memory_space<vmem>>, vector<8x16x32xf32>,
    %c0_44 = arith.constant 0 : index
    %c0_45 = arith.constant 0 : index
    %c0_46 = arith.constant 0 : index
    %40 = tpu.strided_load %arg16[%c0_44, %c0_45, %c0_46] {strides = array<i32: 1, 2, 1>} : memref<8x20x32xf32, #tpu.memory_space<vmem>>, vector<8x8x32xf32>
    %c0_47 = arith.constant 0 : index
    %c1_48 = arith.constant 1 : index
    %c0_49 = arith.constant 0 : index
    %41 = tpu.strided_load %arg16[%c0_47, %c1_48, %c0_49] {strides = array<i32: 1, 2, 1>} : memref<8x20x32xf32, #tpu.memory_space<vmem>>, vector<8x8x32xf32>
    %c0_50 = arith.constant 0 : index
    %c2_51 = arith.constant 2 : index
    %c0_52 = arith.constant 0 : index
    %42 = tpu.strided_load %arg16[%c0_50, %c2_51, %c0_52] {strides = array<i32: 1, 2, 1>} : memref<8x20x32xf32, #tpu.memory_space<vmem>>, vector<8x8x32xf32>
    %c0_53 = arith.constant 0 : index
    %c3_54 = arith.constant 3 : index
    %c0_55 = arith.constant 0 : index
    %43 = tpu.strided_load %arg16[%c0_53, %c3_54, %c0_55] {strides = array<i32: 1, 2, 1>} : memref<8x20x32xf32, #tpu.memory_space<vmem>>, vector<8x8x32xf32>
    %c0_56 = arith.constant 0 : index
    %c4_57 = arith.constant 4 : index
    %c0_58 = arith.constant 0 : index
    %44 = tpu.strided_load %arg16[%c0_56, %c4_57, %c0_58] {strides = array<i32: 1, 2, 1>} : memref<8x20x32xf32, #tpu.memory_space<vmem>>, vector<8x8x32xf32>
    %c0_59 = arith.constant 0 : index
    %c5_60 = arith.constant 5 : index
    %c0_61 = arith.constant 0 : index
    %45 = tpu.strided_load %arg16[%c0_59, %c5_60, %c0_61] {strides = array<i32: 1, 2, 1>} : memref<8x20x32xf32, #tpu.memory_space<vmem>>, vector<8x8x32xf32>
    %46 = tpu.concatenate %40, %41, %42, %43, %44, %45 in 2 : vector<8x8x32xf32>, vector<8x8x32xf32>, vector<8x8x32xf32>, vector<8x8x32xf32>, vector<8x8x32xf32>, vector<8x8x32xf32> -> vector<8x8x192xf32>
    %47 = vector.shape_cast %46 : vector<8x8x192xf32> to vector<64x192xf32>
    %c0_62 = arith.constant 0 : index
    %c0_63 = arith.constant 0 : index
    %48 = vector.load %arg6[%c0_62, %c0_63] : memref<192x128xf32, #tpu.memory_space<vmem>>, vector<192x128xf32>
    %cst_64 = arith.constant dense<0.000000e+00> : vector<64x128xf32>
    %49 = tpu.matmul %47, %48, %cst_64 {dimension_numbers = #tpu.dot_dimension_numbers<[1], [0], [0], [1], [0, 0, 1, 1], [], []>} : vector<64x192xf32>, vector<192x128xf32>, vector<64x128xf32> -> vector<64x128xf32>
    %50 = vector.extract_strided_slice %49 {offsets = [0, 0], sizes = [64, 64], strides = [1, 1]} : vector<64x128xf32> to vector<64x64xf32>
    %51 = vector.extract_strided_slice %49 {offsets = [0, 64], sizes = [64, 64], strides = [1, 1]} : vector<64x128xf32> to vector<64x64xf32>
    %52 = arith.maximumf %50, %51 : vector<64x64xf32>
    %c0_65 = arith.constant 0 : index
    %c0_66 = arith.constant 0 : index
    %53 = vector.load %arg7[%c0_65, %c0_66] : memref<1x64xf32, #tpu.memory_space<vmem>>, vector<1x64xf32>
    %54 = vector.broadcast %53 : vector<1x64xf32> to vector<64x64xf32>
    %55 = arith.addf %52, %54 : vector<64x64xf32>
    %cst_67 = arith.constant 0.000000e+00 : f32
    %56 = vector.broadcast %cst_67 : f32 to vector<64x64xf32>
    %57 = arith.maximumf %55, %56 : vector<64x64xf32>
    %c0_68 = arith.constant 0 : index
    %c0_69 = arith.constant 0 : index
    %58 = vector.load %arg17[%c0_68, %c0_69] : memref<64x64xf32, #tpu.memory_space<vmem>>, vector<64x64xf32>
    tpu.vector_store %arg17[%c0_68, %c0_69], %57 {strides = array<i32>} : memref<64x64xf32, #tpu.memory_space<vmem>>, vector<64x64xf32>,
    %c0_70 = arith.constant 0 : index
    %c0_71 = arith.constant 0 : index
    %59 = vector.load %arg9[%c0_70, %c0_71] : memref<1x128xf32, #tpu.memory_space<vmem>>, vector<1x128xf32>
    %60 = vector.shape_cast %59 : vector<1x128xf32> to vector<1x128xf32>
    %61 = vector.broadcast %60 : vector<1x128xf32> to vector<8x128xf32>
    %c0_72 = arith.constant 0 : index
    %c0_73 = arith.constant 0 : index
    %62 = tpu.strided_load %arg17[%c0_72, %c0_73] {strides = array<i32: 8, 1>} : memref<64x64xf32, #tpu.memory_space<vmem>>, vector<8x64xf32>
    %c0_74 = arith.constant 0 : index
    %c0_75 = arith.constant 0 : index
    %c0_76 = arith.constant 0 : index
    %63 = vector.load %arg8[%c0_74, %c0_75, %c0_76] : memref<8x64x128xf32, #tpu.memory_space<vmem>>, vector<1x64x128xf32>
    %64 = vector.shape_cast %63 : vector<1x64x128xf32> to vector<64x128xf32>
    %cst_77 = arith.constant dense<0.000000e+00> : vector<8x128xf32>
    %65 = tpu.matmul %62, %64, %cst_77 {dimension_numbers = #tpu.dot_dimension_numbers<[1], [0], [0], [1], [0, 0, 1, 1], [], []>} : vector<8x64xf32>, vector<64x128xf32>, vector<8x128xf32> -> vector<8x128xf32>
    %66 = arith.addf %61, %65 : vector<8x128xf32>
    %c1_78 = arith.constant 1 : index
    %c0_79 = arith.constant 0 : index
    %67 = tpu.strided_load %arg17[%c1_78, %c0_79] {strides = array<i32: 8, 1>} : memref<64x64xf32, #tpu.memory_space<vmem>>, vector<8x64xf32>
    %c1_80 = arith.constant 1 : index
    %c0_81 = arith.constant 0 : index
    %c0_82 = arith.constant 0 : index
    %68 = vector.load %arg8[%c1_80, %c0_81, %c0_82] : memref<8x64x128xf32, #tpu.memory_space<vmem>>, vector<1x64x128xf32>
    %69 = vector.shape_cast %68 : vector<1x64x128xf32> to vector<64x128xf32>
    %cst_83 = arith.constant dense<0.000000e+00> : vector<8x128xf32>
    %70 = tpu.matmul %67, %69, %cst_83 {dimension_numbers = #tpu.dot_dimension_numbers<[1], [0], [0], [1], [0, 0, 1, 1], [], []>} : vector<8x64xf32>, vector<64x128xf32>, vector<8x128xf32> -> vector<8x128xf32>
    %71 = arith.addf %66, %70 : vector<8x128xf32>
    %c2_84 = arith.constant 2 : index
    %c0_85 = arith.constant 0 : index
    %72 = tpu.strided_load %arg17[%c2_84, %c0_85] {strides = array<i32: 8, 1>} : memref<64x64xf32, #tpu.memory_space<vmem>>, vector<8x64xf32>
    %c2_86 = arith.constant 2 : index
    %c0_87 = arith.constant 0 : index
    %c0_88 = arith.constant 0 : index
    %73 = vector.load %arg8[%c2_86, %c0_87, %c0_88] : memref<8x64x128xf32, #tpu.memory_space<vmem>>, vector<1x64x128xf32>
    %74 = vector.shape_cast %73 : vector<1x64x128xf32> to vector<64x128xf32>
    %cst_89 = arith.constant dense<0.000000e+00> : vector<8x128xf32>
    %75 = tpu.matmul %72, %74, %cst_89 {dimension_numbers = #tpu.dot_dimension_numbers<[1], [0], [0], [1], [0, 0, 1, 1], [], []>} : vector<8x64xf32>, vector<64x128xf32>, vector<8x128xf32> -> vector<8x128xf32>
    %76 = arith.addf %71, %75 : vector<8x128xf32>
    %c3_90 = arith.constant 3 : index
    %c0_91 = arith.constant 0 : index
    %77 = tpu.strided_load %arg17[%c3_90, %c0_91] {strides = array<i32: 8, 1>} : memref<64x64xf32, #tpu.memory_space<vmem>>, vector<8x64xf32>
    %c3_92 = arith.constant 3 : index
    %c0_93 = arith.constant 0 : index
    %c0_94 = arith.constant 0 : index
    %78 = vector.load %arg8[%c3_92, %c0_93, %c0_94] : memref<8x64x128xf32, #tpu.memory_space<vmem>>, vector<1x64x128xf32>
    %79 = vector.shape_cast %78 : vector<1x64x128xf32> to vector<64x128xf32>
    %cst_95 = arith.constant dense<0.000000e+00> : vector<8x128xf32>
    %80 = tpu.matmul %77, %79, %cst_95 {dimension_numbers = #tpu.dot_dimension_numbers<[1], [0], [0], [1], [0, 0, 1, 1], [], []>} : vector<8x64xf32>, vector<64x128xf32>, vector<8x128xf32> -> vector<8x128xf32>
    %81 = arith.addf %76, %80 : vector<8x128xf32>
    %c4_96 = arith.constant 4 : index
    %c0_97 = arith.constant 0 : index
    %82 = tpu.strided_load %arg17[%c4_96, %c0_97] {strides = array<i32: 8, 1>} : memref<64x64xf32, #tpu.memory_space<vmem>>, vector<8x64xf32>
    %c4_98 = arith.constant 4 : index
    %c0_99 = arith.constant 0 : index
    %c0_100 = arith.constant 0 : index
    %83 = vector.load %arg8[%c4_98, %c0_99, %c0_100] : memref<8x64x128xf32, #tpu.memory_space<vmem>>, vector<1x64x128xf32>
    %84 = vector.shape_cast %83 : vector<1x64x128xf32> to vector<64x128xf32>
    %cst_101 = arith.constant dense<0.000000e+00> : vector<8x128xf32>
    %85 = tpu.matmul %82, %84, %cst_101 {dimension_numbers = #tpu.dot_dimension_numbers<[1], [0], [0], [1], [0, 0, 1, 1], [], []>} : vector<8x64xf32>, vector<64x128xf32>, vector<8x128xf32> -> vector<8x128xf32>
    %86 = arith.addf %81, %85 : vector<8x128xf32>
    %c5_102 = arith.constant 5 : index
    %c0_103 = arith.constant 0 : index
    %87 = tpu.strided_load %arg17[%c5_102, %c0_103] {strides = array<i32: 8, 1>} : memref<64x64xf32, #tpu.memory_space<vmem>>, vector<8x64xf32>
    %c5_104 = arith.constant 5 : index
    %c0_105 = arith.constant 0 : index
    %c0_106 = arith.constant 0 : index
    %88 = vector.load %arg8[%c5_104, %c0_105, %c0_106] : memref<8x64x128xf32, #tpu.memory_space<vmem>>, vector<1x64x128xf32>
    %89 = vector.shape_cast %88 : vector<1x64x128xf32> to vector<64x128xf32>
    %cst_107 = arith.constant dense<0.000000e+00> : vector<8x128xf32>
    %90 = tpu.matmul %87, %89, %cst_107 {dimension_numbers = #tpu.dot_dimension_numbers<[1], [0], [0], [1], [0, 0, 1, 1], [], []>} : vector<8x64xf32>, vector<64x128xf32>, vector<8x128xf32> -> vector<8x128xf32>
    %91 = arith.addf %86, %90 : vector<8x128xf32>
    %c6 = arith.constant 6 : index
    %c0_108 = arith.constant 0 : index
    %92 = tpu.strided_load %arg17[%c6, %c0_108] {strides = array<i32: 8, 1>} : memref<64x64xf32, #tpu.memory_space<vmem>>, vector<8x64xf32>
    %c6_109 = arith.constant 6 : index
    %c0_110 = arith.constant 0 : index
    %c0_111 = arith.constant 0 : index
    %93 = vector.load %arg8[%c6_109, %c0_110, %c0_111] : memref<8x64x128xf32, #tpu.memory_space<vmem>>, vector<1x64x128xf32>
    %94 = vector.shape_cast %93 : vector<1x64x128xf32> to vector<64x128xf32>
    %cst_112 = arith.constant dense<0.000000e+00> : vector<8x128xf32>
    %95 = tpu.matmul %92, %94, %cst_112 {dimension_numbers = #tpu.dot_dimension_numbers<[1], [0], [0], [1], [0, 0, 1, 1], [], []>} : vector<8x64xf32>, vector<64x128xf32>, vector<8x128xf32> -> vector<8x128xf32>
    %96 = arith.addf %91, %95 : vector<8x128xf32>
    %c7 = arith.constant 7 : index
    %c0_113 = arith.constant 0 : index
    %97 = tpu.strided_load %arg17[%c7, %c0_113] {strides = array<i32: 8, 1>} : memref<64x64xf32, #tpu.memory_space<vmem>>, vector<8x64xf32>
    %c7_114 = arith.constant 7 : index
    %c0_115 = arith.constant 0 : index
    %c0_116 = arith.constant 0 : index
    %98 = vector.load %arg8[%c7_114, %c0_115, %c0_116] : memref<8x64x128xf32, #tpu.memory_space<vmem>>, vector<1x64x128xf32>
    %99 = vector.shape_cast %98 : vector<1x64x128xf32> to vector<64x128xf32>
    %cst_117 = arith.constant dense<0.000000e+00> : vector<8x128xf32>
    %100 = tpu.matmul %97, %99, %cst_117 {dimension_numbers = #tpu.dot_dimension_numbers<[1], [0], [0], [1], [0, 0, 1, 1], [], []>} : vector<8x64xf32>, vector<64x128xf32>, vector<8x128xf32> -> vector<8x128xf32>
    %101 = arith.addf %96, %100 : vector<8x128xf32>
    %cst_118 = arith.constant 0.000000e+00 : f32
    %102 = vector.broadcast %cst_118 : f32 to vector<8x128xf32>
    %103 = arith.maximumf %101, %102 : vector<8x128xf32>
    %c0_119 = arith.constant 0 : index
    %c0_120 = arith.constant 0 : index
    %104 = vector.load %arg10[%c0_119, %c0_120] : memref<128x64xf32, #tpu.memory_space<vmem>>, vector<128x64xf32>
    %cst_121 = arith.constant dense<0.000000e+00> : vector<8x64xf32>
    %105 = tpu.matmul %103, %104, %cst_121 {dimension_numbers = #tpu.dot_dimension_numbers<[1], [0], [0], [1], [0, 0, 1, 1], [], []>} : vector<8x128xf32>, vector<128x64xf32>, vector<8x64xf32> -> vector<8x64xf32>
    %c0_122 = arith.constant 0 : index
    %c0_123 = arith.constant 0 : index
    %106 = vector.load %arg11[%c0_122, %c0_123] : memref<1x64xf32, #tpu.memory_space<vmem>>, vector<1x64xf32>
    %107 = vector.broadcast %106 : vector<1x64xf32> to vector<8x64xf32>
    %108 = arith.addf %105, %107 : vector<8x64xf32>
    %cst_124 = arith.constant 0.000000e+00 : f32
    %109 = vector.broadcast %cst_124 : f32 to vector<8x64xf32>
    %110 = arith.maximumf %108, %109 : vector<8x64xf32>
    %c0_125 = arith.constant 0 : index
    %c0_126 = arith.constant 0 : index
    %111 = vector.load %arg12[%c0_125, %c0_126] : memref<64x1xf32, #tpu.memory_space<vmem>>, vector<64x1xf32>
    %cst_127 = arith.constant dense<0.000000e+00> : vector<8x1xf32>
    %112 = tpu.matmul %110, %111, %cst_127 {dimension_numbers = #tpu.dot_dimension_numbers<[1], [0], [0], [1], [0, 0, 1, 1], [], []>} : vector<8x64xf32>, vector<64x1xf32>, vector<8x1xf32> -> vector<8x1xf32>
    %c0_128 = arith.constant 0 : index
    %c0_129 = arith.constant 0 : index
    %113 = vector.load %arg13[%c0_128, %c0_129] : memref<1x1xf32, #tpu.memory_space<vmem>>, vector<1x1xf32>
    %114 = vector.broadcast %113 : vector<1x1xf32> to vector<8x1xf32>
    %115 = arith.addf %112, %114 : vector<8x1xf32>
    %116 = tpu.transpose %115, [1, 0] : vector<8x1xf32> -> vector<1x8xf32>
    %117 = vector.shape_cast %116 : vector<1x8xf32> to vector<1x1x8xf32>
    %c0_130 = arith.constant 0 : index
    %c0_131 = arith.constant 0 : index
    %c0_132 = arith.constant 0 : index
    %118 = vector.load %arg14[%c0_130, %c0_131, %c0_132] : memref<1x1x8xf32, #tpu.memory_space<vmem>>, vector<1x1x8xf32>
    tpu.vector_store %arg14[%c0_130, %c0_131, %c0_132], %117 {strides = array<i32>} : memref<1x1x8xf32, #tpu.memory_space<vmem>>, vector<1x1x8xf32>,
    return
  }
  func.func @transform_0(%arg0: i32) -> (i32, i32, i32) {
    %c0_i32 = arith.constant 0 : i32
    %c0_i32_0 = arith.constant 0 : i32
    %c0_i32_1 = arith.constant 0 : i32
    return %arg0, %c0_i32, %c0_i32_0 : i32, i32, i32
  }
  func.func @transform_1(%arg0: i32) -> (i32, i32) {
    %c0_i32 = arith.constant 0 : i32
    %c0_i32_0 = arith.constant 0 : i32
    %c0_i32_1 = arith.constant 0 : i32
    return %c0_i32, %c0_i32_0 : i32, i32
  }
  func.func @transform_2(%arg0: i32) -> (i32, i32) {
    %c0_i32 = arith.constant 0 : i32
    %c0_i32_0 = arith.constant 0 : i32
    %c0_i32_1 = arith.constant 0 : i32
    return %c0_i32, %c0_i32_0 : i32, i32
  }
  func.func @transform_3(%arg0: i32) -> (i32, i32) {
    %c0_i32 = arith.constant 0 : i32
    %c0_i32_0 = arith.constant 0 : i32
    %c0_i32_1 = arith.constant 0 : i32
    return %c0_i32, %c0_i32_0 : i32, i32
  }
  func.func @transform_4(%arg0: i32) -> (i32, i32) {
    %c0_i32 = arith.constant 0 : i32
    %c0_i32_0 = arith.constant 0 : i32
    %c0_i32_1 = arith.constant 0 : i32
    return %c0_i32, %c0_i32_0 : i32, i32
  }
  func.func @transform_5(%arg0: i32) -> (i32, i32) {
    %c0_i32 = arith.constant 0 : i32
    %c0_i32_0 = arith.constant 0 : i32
    %c0_i32_1 = arith.constant 0 : i32
    return %c0_i32, %c0_i32_0 : i32, i32
  }
  func.func @transform_6(%arg0: i32) -> (i32, i32) {
    %c0_i32 = arith.constant 0 : i32
    %c0_i32_0 = arith.constant 0 : i32
    %c0_i32_1 = arith.constant 0 : i32
    return %c0_i32, %c0_i32_0 : i32, i32
  }
  func.func @transform_7(%arg0: i32) -> (i32, i32, i32) {
    %c0_i32 = arith.constant 0 : i32
    %c0_i32_0 = arith.constant 0 : i32
    %c0_i32_1 = arith.constant 0 : i32
    %c0_i32_2 = arith.constant 0 : i32
    return %c0_i32, %c0_i32_0, %c0_i32_1 : i32, i32, i32
  }
  func.func @transform_8(%arg0: i32) -> (i32, i32) {
    %c0_i32 = arith.constant 0 : i32
    %c0_i32_0 = arith.constant 0 : i32
    %c0_i32_1 = arith.constant 0 : i32
    return %c0_i32, %c0_i32_0 : i32, i32
  }
  func.func @transform_9(%arg0: i32) -> (i32, i32) {
    %c0_i32 = arith.constant 0 : i32
    %c0_i32_0 = arith.constant 0 : i32
    %c0_i32_1 = arith.constant 0 : i32
    return %c0_i32, %c0_i32_0 : i32, i32
  }
  func.func @transform_10(%arg0: i32) -> (i32, i32) {
    %c0_i32 = arith.constant 0 : i32
    %c0_i32_0 = arith.constant 0 : i32
    %c0_i32_1 = arith.constant 0 : i32
    return %c0_i32, %c0_i32_0 : i32, i32
  }
  func.func @transform_11(%arg0: i32) -> (i32, i32) {
    %c0_i32 = arith.constant 0 : i32
    %c0_i32_0 = arith.constant 0 : i32
    %c0_i32_1 = arith.constant 0 : i32
    return %c0_i32, %c0_i32_0 : i32, i32
  }
  func.func @transform_12(%arg0: i32) -> (i32, i32) {
    %c0_i32 = arith.constant 0 : i32
    %c0_i32_0 = arith.constant 0 : i32
    %c0_i32_1 = arith.constant 0 : i32
    return %c0_i32, %c0_i32_0 : i32, i32
  }
  func.func @transform_13(%arg0: i32) -> (i32, i32, i32) {
    %c0_i32 = arith.constant 0 : i32
    %c0_i32_0 = arith.constant 0 : i32
    %c0_i32_1 = arith.constant 0 : i32
    return %arg0, %c0_i32, %c0_i32_0 : i32, i32, i32
  }
}

</mosaic_0001>

<llo_original>
// kernel: tpu_custom_call.1
$region0: #{tpu_custom_call.1}
  #allocation0 [shape = 'u32[]', space=smem, size = 0x4, offset = 0x4, fixed_abs, tag = 'smem constant byte address 0x4 - core index']
  #allocation1 [shape = 'u32[144,128]{1,0:T(1,128)}', space=vmem, size = 0x12000, scoped, tag = 'internal scratch']
  #allocation2 [shape = 'f32[8,36,16]{2,1,0:T(8,128)}', space=vmem, size = 0x28000, scoped, tag = 'scratch operand']
  #allocation3 [shape = 'f32[8,20,32]{2,1,0:T(8,128)}', space=vmem, size = 0x18000, scoped, tag = 'scratch operand']
  #allocation4 [shape = 'f32[64,64]{1,0:T(8,128)}', space=vmem, size = 0x8000, scoped, tag = 'scratch operand']
  #allocation5 [shape = 'f32[1,1]{1,0:T(1,128)S(1)}', space=vmem, size = 0x200, scoped, tag = 'scoped memory for tpu_custom_call.1']
  %s0 = inlined_call_operand.vmem [shape: f32[8,32,8], index: 0, kind: input, shape index: {}]
  %s1 = inlined_call_operand.hbm [shape: f32[8,32], index: 1, kind: input, shape index: {}]
  %s2 = inlined_call_operand.vmem [shape: f32[1,16], index: 2, kind: input, shape index: {}]
  %s3 = inlined_call_operand.vmem [shape: f32[96,64], index: 3, kind: input, shape index: {}]
  %s4 = inlined_call_operand.vmem [shape: f32[1,32], index: 4, kind: input, shape index: {}]
  %s5 = inlined_call_operand.vmem [shape: f32[192,128], index: 5, kind: input, shape index: {}]
  %s6 = inlined_call_operand.vmem [shape: f32[1,64], index: 6, kind: input, shape index: {}]
  %s7 = inlined_call_operand.vmem [shape: f32[8,64,128], index: 7, kind: input, shape index: {}]
  %s8 = inlined_call_operand.hbm [shape: f32[1,128], index: 8, kind: input, shape index: {}]
  %s9 = inlined_call_operand.vmem [shape: f32[128,64], index: 9, kind: input, shape index: {}]
  %s10 = inlined_call_operand.hbm [shape: f32[1,64], index: 10, kind: input, shape index: {}]
  %s11 = inlined_call_operand.vmem [shape: f32[64,1], index: 11, kind: input, shape index: {}]
  %s12 = inlined_call_operand.<no memory space> [shape: f32[1,1], index: 12, kind: input, shape index: {}]
  %s13 = inlined_call_operand.hbm [shape: f32[1,1,8], index: 13, kind: output, shape index: {}]
  %s14 = sld [smem:[#allocation0]]
  $region74: #{tpu_custom_call.1} parent=0
    _
  %s16 = ssub.s32 1, %s14
  %s17 = scalar_select 0, %s16, %s14
  %v18 = vstv %s12
  %19 = vst [vmem:[#allocation5] sm:$0x1] %v18
  $region1: #{tpu_custom_call.1} parent=0
    #allocation6 [shape = 'u8[4096]{0}', space=vmem, size = 0x1000, scoped, tag = 'input window, operand 1, single buffered']
    #allocation7 [shape = 's32[1]{0}', space=sflag, size = 0x4, scoped, tag = 'scoped memory for tpu_custom_call.1']
    #allocation8 [shape = 's32[1]{0}', space=sflag, size = 0x4, scoped, tag = 'scoped memory for tpu_custom_call.1']
    #allocation9 [shape = 'u8[512]{0}', space=vmem, size = 0x400, scoped, tag = 'input window, operand 8, single buffered']
    #allocation10 [shape = 's32[1]{0}', space=sflag, size = 0x4, scoped, tag = 'scoped memory for tpu_custom_call.1']
    #allocation11 [shape = 'u8[512]{0}', space=vmem, size = 0x400, scoped, tag = 'input window, operand 10, single buffered']
    #allocation12 [shape = 'u8[512]{0}', space=vmem, size = 0x400, scoped, tag = 'output window, operand 0, single buffered']
    %20 = vsyncpa [#allocation7], 0
    %21 = vsyncpa [#allocation10], 0
    %22 = vsyncpa [#allocation8], 0
    // Predicated region
    $region2: #{tpu_custom_call.1} parent=1 // pred_check
      _
    $region3: #{tpu_custom_call.1} parent=1 // pred_check_branch
      %24 = sbr.rel (0) target = $region5
    $region4: #{tpu_custom_call.1} parent=1 // pred_region
      _
    $region5: #{tpu_custom_call.1} parent=1 // pred_fallthru
      _
    // Predicated region
    $region6: #{tpu_custom_call.1} parent=1 // pred_check
      _
    $region7: #{tpu_custom_call.1} parent=1 // pred_check_branch
      %26 = sbr.rel (0) target = $region9
    $region8: #{tpu_custom_call.1} parent=1 // pred_region
      %s28 = ssub.s32 128, 128
      %29 = vsyncadd [#allocation7], %s28
      %s31 = sshll.u32 [#allocation6], 4
      %s32 = int_to_ptr.vmem [resolvable:$true] %s31
      %34 = dma.hbm_to_vmem [thread:$0]  %s1, 128, %s32, [#allocation7]
    $region9: #{tpu_custom_call.1} parent=1 // pred_fallthru
      _
    // Predicated region
    $region10: #{tpu_custom_call.1} parent=1 // pred_check
      _
    $region11: #{tpu_custom_call.1} parent=1 // pred_check_branch
      %36 = sbr.rel (0) target = $region13
    $region12: #{tpu_custom_call.1} parent=1 // pred_region
      _
    $region13: #{tpu_custom_call.1} parent=1 // pred_fallthru
      _
    // Predicated region
    $region14: #{tpu_custom_call.1} parent=1 // pred_check
      _
    $region15: #{tpu_custom_call.1} parent=1 // pred_check_branch
      %38 = sbr.rel (0) target = $region17
    $region16: #{tpu_custom_call.1} parent=1 // pred_region
      _
    $region17: #{tpu_custom_call.1} parent=1 // pred_fallthru
      _
    // Predicated region
    $region18: #{tpu_custom_call.1} parent=1 // pred_check
      _
    $region19: #{tpu_custom_call.1} parent=1 // pred_check_branch
      %40 = sbr.rel (0) target = $region21
    $region20: #{tpu_custom_call.1} parent=1 // pred_region
      _
    $region21: #{tpu_custom_call.1} parent=1 // pred_fallthru
      _
    // Predicated region
    $region22: #{tpu_custom_call.1} parent=1 // pred_check
      _
    $region23: #{tpu_custom_call.1} parent=1 // pred_check_branch
      %42 = sbr.rel (0) target = $region25
    $region24: #{tpu_custom_call.1} parent=1 // pred_region
      _
    $region25: #{tpu_custom_call.1} parent=1 // pred_fallthru
      _
    // Predicated region
    $region26: #{tpu_custom_call.1} parent=1 // pred_check
      _
    $region27: #{tpu_custom_call.1} parent=1 // pred_check_branch
      %44 = sbr.rel (0) target = $region29
    $region28: #{tpu_custom_call.1} parent=1 // pred_region
      _
    $region29: #{tpu_custom_call.1} parent=1 // pred_fallthru
      _
    // Predicated region
    $region30: #{tpu_custom_call.1} parent=1 // pred_check
      _
    $region31: #{tpu_custom_call.1} parent=1 // pred_check_branch
      %46 = sbr.rel (0) target = $region33
    $region32: #{tpu_custom_call.1} parent=1 // pred_region
      _
    $region33: #{tpu_custom_call.1} parent=1 // pred_fallthru
      _
    // Predicated region
    $region34: #{tpu_custom_call.1} parent=1 // pred_check
      _
    $region35: #{tpu_custom_call.1} parent=1 // pred_check_branch
      %48 = sbr.rel (0) target = $region37
    $region36: #{tpu_custom_call.1} parent=1 // pred_region
      %s50 = ssub.s32 16, 16
      %51 = vsyncadd [#allocation10], %s50
      %s53 = sshll.u32 [#allocation9], 4
      %s54 = int_to_ptr.vmem [resolvable:$true] %s53
      %56 = dma.hbm_to_vmem [thread:$0]  %s8, 16, %s54, [#allocation10]
    $region37: #{tpu_custom_call.1} parent=1 // pred_fallthru
      _
    // Predicated region
    $region38: #{tpu_custom_call.1} parent=1 // pred_check
      _
    $region39: #{tpu_custom_call.1} parent=1 // pred_check_branch
      %58 = sbr.rel (0) target = $region41
    $region40: #{tpu_custom_call.1} parent=1 // pred_region
      _
    $region41: #{tpu_custom_call.1} parent=1 // pred_fallthru
      _
    // Predicated region
    $region42: #{tpu_custom_call.1} parent=1 // pred_check
      _
    $region43: #{tpu_custom_call.1} parent=1 // pred_check_branch
      %60 = sbr.rel (0) target = $region45
    $region44: #{tpu_custom_call.1} parent=1 // pred_region
      %s62 = ssub.s32 16, 16
      %63 = vsyncadd [#allocation10], %s62
      %s65 = sshll.u32 [#allocation11], 4
      %s66 = int_to_ptr.vmem [resolvable:$true] %s65
      %68 = dma.hbm_to_vmem [thread:$0]  %s10, 16, %s66, [#allocation10]
    $region45: #{tpu_custom_call.1} parent=1 // pred_fallthru
      _
    // Predicated region
    $region46: #{tpu_custom_call.1} parent=1 // pred_check
      _
    $region47: #{tpu_custom_call.1} parent=1 // pred_check_branch
      %70 = sbr.rel (0) target = $region49
    $region48: #{tpu_custom_call.1} parent=1 // pred_region
      _
    $region49: #{tpu_custom_call.1} parent=1 // pred_fallthru
      _
    // Predicated region
    $region50: #{tpu_custom_call.1} parent=1 // pred_check
      _
    $region51: #{tpu_custom_call.1} parent=1 // pred_check_branch
      %72 = sbr.rel (0) target = $region53
    $region52: #{tpu_custom_call.1} parent=1 // pred_region
      _
    $region53: #{tpu_custom_call.1} parent=1 // pred_fallthru
      _
    // Predicated region
    $region54: #{tpu_custom_call.1} parent=1 // pred_check
      _
    $region55: #{tpu_custom_call.1} parent=1 // pred_check_branch
      %74 = sbr.rel (0) target = $region57
    $region56: #{tpu_custom_call.1} parent=1 // pred_region
      %75 = dma.done [#allocation7], 128
    $region57: #{tpu_custom_call.1} parent=1 // pred_fallthru
      _
    // Predicated region
    $region58: #{tpu_custom_call.1} parent=1 // pred_check
      _
    $region59: #{tpu_custom_call.1} parent=1 // pred_check_branch
      %77 = sbr.rel (0) target = $region61
    $region60: #{tpu_custom_call.1} parent=1 // pred_region
      %78 = dma.done [#allocation10], 16
    $region61: #{tpu_custom_call.1} parent=1 // pred_fallthru
      _
    // Predicated region
    $region62: #{tpu_custom_call.1} parent=1 // pred_check
      _
    $region63: #{tpu_custom_call.1} parent=1 // pred_check_branch
      %80 = sbr.rel (0) target = $region65
    $region64: #{tpu_custom_call.1} parent=1 // pred_region
      %81 = dma.done [#allocation10], 16
    $region65: #{tpu_custom_call.1} parent=1 // pred_fallthru
      _
    %v82 = vld [vmem:[%s0] sm:$0xff]
    %v83 = vld [vmem:[%s0 + $0x8] sm:$0xff]
    %v84 = vld [vmem:[%s0 + $0x10] sm:$0xff]
    %v85 = vld [vmem:[%s0 + $0x18] sm:$0xff]
    %v86 = vld [vmem:[%s0 + $0x20] sm:$0xff]
    %v87 = vld [vmem:[%s0 + $0x28] sm:$0xff]
    %v88 = vld [vmem:[%s0 + $0x30] sm:$0xff]
    %v89 = vld [vmem:[%s0 + $0x38] sm:$0xff]
    %v90 = vld [vmem:[%s0 + $0x40] sm:$0xff]
    %v91 = vld [vmem:[%s0 + $0x48] sm:$0xff]
    %v92 = vld [vmem:[%s0 + $0x50] sm:$0xff]
    %v93 = vld [vmem:[%s0 + $0x58] sm:$0xff]
    %v94 = vld [vmem:[%s0 + $0x60] sm:$0xff]
    %v95 = vld [vmem:[%s0 + $0x68] sm:$0xff]
    %v96 = vld [vmem:[%s0 + $0x70] sm:$0xff]
    %v97 = vld [vmem:[%s0 + $0x78] sm:$0xff]
    %v98 = vld [vmem:[%s0 + $0x80] sm:$0xff]
    %v99 = vld [vmem:[%s0 + $0x88] sm:$0xff]
    %v100 = vld [vmem:[%s0 + $0x90] sm:$0xff]
    %v101 = vld [vmem:[%s0 + $0x98] sm:$0xff]
    %v102 = vld [vmem:[%s0 + $0xa0] sm:$0xff]
    %v103 = vld [vmem:[%s0 + $0xa8] sm:$0xff]
    %v104 = vld [vmem:[%s0 + $0xb0] sm:$0xff]
    %v105 = vld [vmem:[%s0 + $0xb8] sm:$0xff]
    %v106 = vld [vmem:[%s0 + $0xc0] sm:$0xff]
    %v107 = vld [vmem:[%s0 + $0xc8] sm:$0xff]
    %v108 = vld [vmem:[%s0 + $0xd0] sm:$0xff]
    %v109 = vld [vmem:[%s0 + $0xd8] sm:$0xff]
    %v110 = vld [vmem:[%s0 + $0xe0] sm:$0xff]
    %v111 = vld [vmem:[%s0 + $0xe8] sm:$0xff]
    %v112 = vld [vmem:[%s0 + $0xf0] sm:$0xff]
    %v113 = vld [vmem:[%s0 + $0xf8] sm:$0xff]
    %v114 = vld [vmem:[#allocation6] sm:$0xff]
    %vm115 = vcmask 64512
    %v117 = vsel %vm115, %v82, 0
    %v120 = vsel %vm115, %v83, 0
    %v123 = vsel %vm115, %v84, 0
    %v126 = vsel %vm115, %v85, 0
    %v129 = vsel %vm115, %v86, 0
    %v132 = vsel %vm115, %v87, 0
    %v135 = vsel %vm115, %v88, 0
    %v138 = vsel %vm115, %v89, 0
    %v141 = vsel %vm115, %v90, 0
    %v144 = vsel %vm115, %v91, 0
    %v147 = vsel %vm115, %v92, 0
    %v150 = vsel %vm115, %v93, 0
    %v153 = vsel %vm115, %v94, 0
    %v156 = vsel %vm115, %v95, 0
    %v159 = vsel %vm115, %v96, 0
    %v162 = vsel %vm115, %v97, 0
    %v165 = vsel %vm115, %v98, 0
    %v168 = vsel %vm115, %v99, 0
    %v171 = vsel %vm115, %v100, 0
    %v174 = vsel %vm115, %v101, 0
    %v177 = vsel %vm115, %v102, 0
    %v180 = vsel %vm115, %v103, 0
    %v183 = vsel %vm115, %v104, 0
    %v186 = vsel %vm115, %v105, 0
    %v189 = vsel %vm115, %v106, 0
    %v192 = vsel %vm115, %v107, 0
    %v195 = vsel %vm115, %v108, 0
    %v198 = vsel %vm115, %v109, 0
    %v201 = vsel %vm115, %v110, 0
    %v204 = vsel %vm115, %v111, 0
    %v207 = vsel %vm115, %v112, 0
    %v210 = vsel %vm115, %v113, 0
    %212 = vmatprep.subr.mxu0 0.0
    %213 = vmatpush1.msra.mxu0 %v114
    %214 = vmatprep.subr.mxu0 0.0
    %215 = vmatpush1.msra.mxu0 0.0
    %216 = vmatprep.subr.mxu0 0.0
    %217 = vmatpush1.msra.mxu0 0.0
    %218 = vmatprep.subr.mxu0 0.0
    %219 = vmatpush1.msra.mxu0 0.0
    %220 = vmatprep.subr.mxu0 0.0
    %221 = vmatpush1.msra.mxu0 0.0
    %222 = vmatprep.subr.mxu0 0.0
    %223 = vmatpush1.msra.mxu0 0.0
    %224 = vmatprep.subr.mxu0 0.0
    %225 = vmatpush1.msra.mxu0 0.0
    %226 = vmatprep.subr.mxu0 0.0
    %227 = vmatpush1.msra.mxu0 0.0
    %228 = vmatprep.subr.mxu0 0.0
    %229 = vmatpush1.msra.mxu0 0.0
    %230 = vmatprep.subr.mxu0 0.0
    %231 = vmatpush1.msra.mxu0 0.0
    %232 = vmatprep.subr.mxu0 0.0
    %233 = vmatpush1.msra.mxu0 0.0
    %234 = vmatprep.subr.mxu0 0.0
    %235 = vmatpush1.msra.mxu0 0.0
    %236 = vmatprep.subr.mxu0 0.0
    %237 = vmatpush1.msra.mxu0 0.0
    %238 = vmatprep.subr.mxu0 0.0
    %239 = vmatpush1.msra.mxu0 0.0
    %240 = vmatprep.subr.mxu0 0.0
    %241 = vmatpush1.msra.mxu0 0.0
    %242 = vmatprep.subr.mxu0 0.0
    %243 = vmatpush1.msra.mxu0 0.0
    %244 = vmatprep.subr.mxu0 0.0
    %245 = vmatpush1.msra.mxu0 0.0
    %246 = vmatprep.subr.mxu0 0.0
    %247 = vmatpush1.msra.mxu0 0.0
    %248 = vmatprep.subr.mxu0 0.0
    %249 = vmatpush1.msra.mxu0 0.0
    %250 = vmatprep.subr.mxu0 0.0
    %251 = vmatpush1.msra.mxu0 0.0
    %252 = vmatprep.subr.mxu0 0.0
    %253 = vmatpush1.msra.mxu0 0.0
    %254 = vmatprep.subr.mxu0 0.0
    %255 = vmatpush1.msra.mxu0 0.0
    %256 = vmatprep.subr.mxu0 0.0
    %257 = vmatpush1.msra.mxu0 0.0
    %258 = vmatprep.subr.mxu0 0.0
    %259 = vmatpush1.msra.mxu0 0.0
    %260 = vmatprep.subr.mxu0 0.0
    %261 = vmatpush1.msra.mxu0 0.0
    %262 = vmatprep.subr.mxu0 0.0
    %263 = vmatpush1.msra.mxu0 0.0
    %264 = vmatprep.subr.mxu0 0.0
    %265 = vmatpush1.msra.mxu0 0.0
    %266 = vmatprep.subr.mxu0 0.0
    %267 = vmatpush1.msra.mxu0 0.0
    %268 = vmatprep.subr.mxu0 0.0
    %269 = vmatpush1.msra.mxu0 0.0
    %270 = vmatprep.subr.mxu0 0.0
    %271 = vmatpush1.msra.mxu0 0.0
    %272 = vmatprep.subr.mxu0 0.0
    %273 = vmatpush1.msra.mxu0 0.0
    %274 = vmatprep.subr.mxu0 0.0
    %275 = vmatpush1.msra.mxu0 0.0
    %276 = vmatprep.mubr.f32.mxu0 0.0
    %277 = vmatmul.mubr.f32.gmra.mrb[0].mxu0 %v117
    %v278 = vpop.f32.mrb[0].mxu0
    %v279 = vadd.f32 0.0, %v278
    %v280 = vpop.f32.mrb[0].mxu0
    %281 = vmatprep.mubr.f32.mxu0 0.0
    %282 = vmatmul.mubr.f32.gmra.mrb[0].mxu0 %v120
    %v283 = vpop.f32.mrb[0].mxu0
    %v284 = vadd.f32 0.0, %v283
    %v285 = vpop.f32.mrb[0].mxu0
    %286 = vmatprep.mubr.f32.mxu0 0.0
    %287 = vmatmul.mubr.f32.gmra.mrb[0].mxu0 %v123
    %v288 = vpop.f32.mrb[0].mxu0
    %v289 = vadd.f32 0.0, %v288
    %v290 = vpop.f32.mrb[0].mxu0
    %291 = vmatprep.mubr.f32.mxu0 0.0
    %292 = vmatmul.mubr.f32.gmra.mrb[0].mxu0 %v126
    %v293 = vpop.f32.mrb[0].mxu0
    %v294 = vadd.f32 0.0, %v293
    %v295 = vpop.f32.mrb[0].mxu0
    %296 = vmatprep.mubr.f32.mxu0 0.0
    %297 = vmatmul.mubr.f32.gmra.mrb[0].mxu0 %v129
    %v298 = vpop.f32.mrb[0].mxu0
    %v299 = vadd.f32 0.0, %v298
    %v300 = vpop.f32.mrb[0].mxu0
    %301 = vmatprep.mubr.f32.mxu0 0.0
    %302 = vmatmul.mubr.f32.gmra.mrb[0].mxu0 %v132
    %v303 = vpop.f32.mrb[0].mxu0
    %v304 = vadd.f32 0.0, %v303
    %v305 = vpop.f32.mrb[0].mxu0
    %306 = vmatprep.mubr.f32.mxu0 0.0
    %307 = vmatmul.mubr.f32.gmra.mrb[0].mxu0 %v135
    %v308 = vpop.f32.mrb[0].mxu0
    %v309 = vadd.f32 0.0, %v308
    %v310 = vpop.f32.mrb[0].mxu0
    %311 = vmatprep.mubr.f32.mxu0 0.0
    %312 = vmatmul.mubr.f32.gmra.mrb[0].mxu0 %v138
    %v313 = vpop.f32.mrb[0].mxu0
    %v314 = vadd.f32 0.0, %v313
    %v315 = vpop.f32.mrb[0].mxu0
    %316 = vmatprep.mubr.f32.mxu0 0.0
    %317 = vmatmul.mubr.f32.gmra.mrb[0].mxu0 %v141
    %v318 = vpop.f32.mrb[0].mxu0
    %v319 = vadd.f32 0.0, %v318
    %v320 = vpop.f32.mrb[0].mxu0
    %321 = vmatprep.mubr.f32.mxu0 0.0
    %322 = vmatmul.mubr.f32.gmra.mrb[0].mxu0 %v144
    %v323 = vpop.f32.mrb[0].mxu0
    %v324 = vadd.f32 0.0, %v323
    %v325 = vpop.f32.mrb[0].mxu0
    %326 = vmatprep.mubr.f32.mxu0 0.0
    %327 = vmatmul.mubr.f32.gmra.mrb[0].mxu0 %v147
    %v328 = vpop.f32.mrb[0].mxu0
    %v329 = vadd.f32 0.0, %v328
    %v330 = vpop.f32.mrb[0].mxu0
    %331 = vmatprep.mubr.f32.mxu0 0.0
    %332 = vmatmul.mubr.f32.gmra.mrb[0].mxu0 %v150
    %v333 = vpop.f32.mrb[0].mxu0
    %v334 = vadd.f32 0.0, %v333
    %v335 = vpop.f32.mrb[0].mxu0
    %336 = vmatprep.mubr.f32.mxu0 0.0
    %337 = vmatmul.mubr.f32.gmra.mrb[0].mxu0 %v153
    %v338 = vpop.f32.mrb[0].mxu0
    %v339 = vadd.f32 0.0, %v338
    %v340 = vpop.f32.mrb[0].mxu0
    %341 = vmatprep.mubr.f32.mxu0 0.0
    %342 = vmatmul.mubr.f32.gmra.mrb[0].mxu0 %v156
    %v343 = vpop.f32.mrb[0].mxu0
    %v344 = vadd.f32 0.0, %v343
    %v345 = vpop.f32.mrb[0].mxu0
    %346 = vmatprep.mubr.f32.mxu0 0.0
    %347 = vmatmul.mubr.f32.gmra.mrb[0].mxu0 %v159
    %v348 = vpop.f32.mrb[0].mxu0
    %v349 = vadd.f32 0.0, %v348
    %v350 = vpop.f32.mrb[0].mxu0
    %351 = vmatprep.mubr.f32.mxu0 0.0
    %352 = vmatmul.mubr.f32.gmra.mrb[0].mxu0 %v162
    %v353 = vpop.f32.mrb[0].mxu0
    %v354 = vadd.f32 0.0, %v353
    %v355 = vpop.f32.mrb[0].mxu0
    %356 = vmatprep.mubr.f32.mxu0 0.0
    %357 = vmatmul.mubr.f32.gmra.mrb[0].mxu0 %v165
    %v358 = vpop.f32.mrb[0].mxu0
    %v359 = vadd.f32 0.0, %v358
    %v360 = vpop.f32.mrb[0].mxu0
    %361 = vmatprep.mubr.f32.mxu0 0.0
    %362 = vmatmul.mubr.f32.gmra.mrb[0].mxu0 %v168
    %v363 = vpop.f32.mrb[0].mxu0
    %v364 = vadd.f32 0.0, %v363
    %v365 = vpop.f32.mrb[0].mxu0
    %366 = vmatprep.mubr.f32.mxu0 0.0
    %367 = vmatmul.mubr.f32.gmra.mrb[0].mxu0 %v171
    %v368 = vpop.f32.mrb[0].mxu0
    %v369 = vadd.f32 0.0, %v368
    %v370 = vpop.f32.mrb[0].mxu0
    %371 = vmatprep.mubr.f32.mxu0 0.0
    %372 = vmatmul.mubr.f32.gmra.mrb[0].mxu0 %v174
    %v373 = vpop.f32.mrb[0].mxu0
    %v374 = vadd.f32 0.0, %v373
    %v375 = vpop.f32.mrb[0].mxu0
    %376 = vmatprep.mubr.f32.mxu0 0.0
    %377 = vmatmul.mubr.f32.gmra.mrb[0].mxu0 %v177
    %v378 = vpop.f32.mrb[0].mxu0
    %v379 = vadd.f32 0.0, %v378
    %v380 = vpop.f32.mrb[0].mxu0
    %381 = vmatprep.mubr.f32.mxu0 0.0
    %382 = vmatmul.mubr.f32.gmra.mrb[0].mxu0 %v180
    %v383 = vpop.f32.mrb[0].mxu0
    %v384 = vadd.f32 0.0, %v383
    %v385 = vpop.f32.mrb[0].mxu0
    %386 = vmatprep.mubr.f32.mxu0 0.0
    %387 = vmatmul.mubr.f32.gmra.mrb[0].mxu0 %v183
    %v388 = vpop.f32.mrb[0].mxu0
    %v389 = vadd.f32 0.0, %v388
    %v390 = vpop.f32.mrb[0].mxu0
    %391 = vmatprep.mubr.f32.mxu0 0.0
    %392 = vmatmul.mubr.f32.gmra.mrb[0].mxu0 %v186
    %v393 = vpop.f32.mrb[0].mxu0
    %v394 = vadd.f32 0.0, %v393
    %v395 = vpop.f32.mrb[0].mxu0
    %396 = vmatprep.mubr.f32.mxu0 0.0
    %397 = vmatmul.mubr.f32.gmra.mrb[0].mxu0 %v189
    %v398 = vpop.f32.mrb[0].mxu0
    %v399 = vadd.f32 0.0, %v398
    %v400 = vpop.f32.mrb[0].mxu0
    %401 = vmatprep.mubr.f32.mxu0 0.0
    %402 = vmatmul.mubr.f32.gmra.mrb[0].mxu0 %v192
    %v403 = vpop.f32.mrb[0].mxu0
    %v404 = vadd.f32 0.0, %v403
    %v405 = vpop.f32.mrb[0].mxu0
    %406 = vmatprep.mubr.f32.mxu0 0.0
    %407 = vmatmul.mubr.f32.gmra.mrb[0].mxu0 %v195
    %v408 = vpop.f32.mrb[0].mxu0
    %v409 = vadd.f32 0.0, %v408
    %v410 = vpop.f32.mrb[0].mxu0
    %411 = vmatprep.mubr.f32.mxu0 0.0
    %412 = vmatmul.mubr.f32.gmra.mrb[0].mxu0 %v198
    %v413 = vpop.f32.mrb[0].mxu0
    %v414 = vadd.f32 0.0, %v413
    %v415 = vpop.f32.mrb[0].mxu0
    %416 = vmatprep.mubr.f32.mxu0 0.0
    %417 = vmatmul.mubr.f32.gmra.mrb[0].mxu0 %v201
    %v418 = vpop.f32.mrb[0].mxu0
    %v419 = vadd.f32 0.0, %v418
    %v420 = vpop.f32.mrb[0].mxu0
    %421 = vmatprep.mubr.f32.mxu0 0.0
    %422 = vmatmul.mubr.f32.gmra.mrb[0].mxu0 %v204
    %v423 = vpop.f32.mrb[0].mxu0
    %v424 = vadd.f32 0.0, %v423
    %v425 = vpop.f32.mrb[0].mxu0
    %426 = vmatprep.mubr.f32.mxu0 0.0
    %427 = vmatmul.mubr.f32.gmra.mrb[0].mxu0 %v207
    %v428 = vpop.f32.mrb[0].mxu0
    %v429 = vadd.f32 0.0, %v428
    %v430 = vpop.f32.mrb[0].mxu0
    %431 = vmatprep.mubr.f32.mxu0 0.0
    %432 = vmatmul.mubr.f32.gmra.mrb[0].mxu0 %v210
    %v433 = vpop.f32.mrb[0].mxu0
    %v434 = vadd.f32 0.0, %v433
    %v435 = vpop.f32.mrb[0].mxu0
    %436 = vdwg.mxu0
    %469 = vrot.lane.b32.xlu0 %v279, 112
    %v470 = vpop.permute.xlu0 %469
    %471 = vrot.lane.b32.xlu0 %v284, 112
    %v472 = vpop.permute.xlu0 %471
    %473 = vrot.lane.b32.xlu0 %v289, 112
    %v474 = vpop.permute.xlu0 %473
    %475 = vrot.lane.b32.xlu0 %v294, 112
    %v476 = vpop.permute.xlu0 %475
    %477 = vrot.lane.b32.xlu0 %v299, 112
    %v478 = vpop.permute.xlu0 %477
    %479 = vrot.lane.b32.xlu0 %v304, 112
    %v480 = vpop.permute.xlu0 %479
    %481 = vrot.lane.b32.xlu0 %v309, 112
    %v482 = vpop.permute.xlu0 %481
    %483 = vrot.lane.b32.xlu0 %v314, 112
    %v484 = vpop.permute.xlu0 %483
    %485 = vrot.lane.b32.xlu0 %v319, 112
    %v486 = vpop.permute.xlu0 %485
    %487 = vrot.lane.b32.xlu0 %v324, 112
    %v488 = vpop.permute.xlu0 %487
    %489 = vrot.lane.b32.xlu0 %v329, 112
    %v490 = vpop.permute.xlu0 %489
    %491 = vrot.lane.b32.xlu0 %v334, 112
    %v492 = vpop.permute.xlu0 %491
    %493 = vrot.lane.b32.xlu0 %v339, 112
    %v494 = vpop.permute.xlu0 %493
    %495 = vrot.lane.b32.xlu0 %v344, 112
    %v496 = vpop.permute.xlu0 %495
    %497 = vrot.lane.b32.xlu0 %v349, 112
    %v498 = vpop.permute.xlu0 %497
    %499 = vrot.lane.b32.xlu0 %v354, 112
    %v500 = vpop.permute.xlu0 %499
    %501 = vrot.lane.b32.xlu0 %v359, 112
    %v502 = vpop.permute.xlu0 %501
    %503 = vrot.lane.b32.xlu0 %v364, 112
    %v504 = vpop.permute.xlu0 %503
    %505 = vrot.lane.b32.xlu0 %v369, 112
    %v506 = vpop.permute.xlu0 %505
    %507 = vrot.lane.b32.xlu0 %v374, 112
    %v508 = vpop.permute.xlu0 %507
    %509 = vrot.lane.b32.xlu0 %v379, 112
    %v510 = vpop.permute.xlu0 %509
    %511 = vrot.lane.b32.xlu0 %v384, 112
    %v512 = vpop.permute.xlu0 %511
    %513 = vrot.lane.b32.xlu0 %v389, 112
    %v514 = vpop.permute.xlu0 %513
    %515 = vrot.lane.b32.xlu0 %v394, 112
    %v516 = vpop.permute.xlu0 %515
    %517 = vrot.lane.b32.xlu0 %v399, 112
    %v518 = vpop.permute.xlu0 %517
    %519 = vrot.lane.b32.xlu0 %v404, 112
    %v520 = vpop.permute.xlu0 %519
    %521 = vrot.lane.b32.xlu0 %v409, 112
    %v522 = vpop.permute.xlu0 %521
    %523 = vrot.lane.b32.xlu0 %v414, 112
    %v524 = vpop.permute.xlu0 %523
    %525 = vrot.lane.b32.xlu0 %v419, 112
    %v526 = vpop.permute.xlu0 %525
    %527 = vrot.lane.b32.xlu0 %v424, 112
    %v528 = vpop.permute.xlu0 %527
    %529 = vrot.lane.b32.xlu0 %v429, 112
    %v530 = vpop.permute.xlu0 %529
    %531 = vrot.lane.b32.xlu0 %v434, 112
    %v532 = vpop.permute.xlu0 %531
    %v565 = vmax.f32 %v279, %v470
    %v566 = vmax.f32 %v284, %v472
    %v567 = vmax.f32 %v289, %v474
    %v568 = vmax.f32 %v294, %v476
    %v569 = vmax.f32 %v299, %v478
    %v570 = vmax.f32 %v304, %v480
    %v571 = vmax.f32 %v309, %v482
    %v572 = vmax.f32 %v314, %v484
    %v573 = vmax.f32 %v319, %v486
    %v574 = vmax.f32 %v324, %v488
    %v575 = vmax.f32 %v329, %v490
    %v576 = vmax.f32 %v334, %v492
    %v577 = vmax.f32 %v339, %v494
    %v578 = vmax.f32 %v344, %v496
    %v579 = vmax.f32 %v349, %v498
    %v580 = vmax.f32 %v354, %v500
    %v581 = vmax.f32 %v359, %v502
    %v582 = vmax.f32 %v364, %v504
    %v583 = vmax.f32 %v369, %v506
    %v584 = vmax.f32 %v374, %v508
    %v585 = vmax.f32 %v379, %v510
    %v586 = vmax.f32 %v384, %v512
    %v587 = vmax.f32 %v389, %v514
    %v588 = vmax.f32 %v394, %v516
    %v589 = vmax.f32 %v399, %v518
    %v590 = vmax.f32 %v404, %v520
    %v591 = vmax.f32 %v409, %v522
    %v592 = vmax.f32 %v414, %v524
    %v593 = vmax.f32 %v419, %v526
    %v594 = vmax.f32 %v424, %v528
    %v595 = vmax.f32 %v429, %v530
    %v596 = vmax.f32 %v434, %v532
    %v597 = vld [vmem:[%s2] sm:$0x1]
    %v599 = vlaneseq
    %v600 = vshrl.u32 %v599, 7
    %v601 = vsub.s32 0, %v600
    %v602 = vrot.slane %v597, %v601
    %v604 = vadd.f32 %v565, %v602
    %v605 = vadd.f32 %v566, %v602
    %v606 = vadd.f32 %v567, %v602
    %v607 = vadd.f32 %v568, %v602
    %v608 = vadd.f32 %v569, %v602
    %v609 = vadd.f32 %v570, %v602
    %v610 = vadd.f32 %v571, %v602
    %v611 = vadd.f32 %v572, %v602
    %v612 = vadd.f32 %v573, %v602
    %v613 = vadd.f32 %v574, %v602
    %v614 = vadd.f32 %v575, %v602
    %v615 = vadd.f32 %v576, %v602
    %v616 = vadd.f32 %v577, %v602
    %v617 = vadd.f32 %v578, %v602
    %v618 = vadd.f32 %v579, %v602
    %v619 = vadd.f32 %v580, %v602
    %v620 = vadd.f32 %v581, %v602
    %v621 = vadd.f32 %v582, %v602
    %v622 = vadd.f32 %v583, %v602
    %v623 = vadd.f32 %v584, %v602
    %v624 = vadd.f32 %v585, %v602
    %v625 = vadd.f32 %v586, %v602
    %v626 = vadd.f32 %v587, %v602
    %v627 = vadd.f32 %v588, %v602
    %v628 = vadd.f32 %v589, %v602
    %v629 = vadd.f32 %v590, %v602
    %v630 = vadd.f32 %v591, %v602
    %v631 = vadd.f32 %v592, %v602
    %v632 = vadd.f32 %v593, %v602
    %v633 = vadd.f32 %v594, %v602
    %v634 = vadd.f32 %v595, %v602
    %v635 = vadd.f32 %v596, %v602
    %v636 = vtanh.pop %v604
    %v637 = vtanh.pop %v605
    %v638 = vtanh.pop %v606
    %v639 = vtanh.pop %v607
    %v640 = vtanh.pop %v608
    %v641 = vtanh.pop %v609
    %v642 = vtanh.pop %v610
    %v643 = vtanh.pop %v611
    %v644 = vtanh.pop %v612
    %v645 = vtanh.pop %v613
    %v646 = vtanh.pop %v614
    %v647 = vtanh.pop %v615
    %v648 = vtanh.pop %v616
    %v649 = vtanh.pop %v617
    %v650 = vtanh.pop %v618
    %v651 = vtanh.pop %v619
    %v652 = vtanh.pop %v620
    %v653 = vtanh.pop %v621
    %v654 = vtanh.pop %v622
    %v655 = vtanh.pop %v623
    %v656 = vtanh.pop %v624
    %v657 = vtanh.pop %v625
    %v658 = vtanh.pop %v626
    %v659 = vtanh.pop %v627
    %v660 = vtanh.pop %v628
    %v661 = vtanh.pop %v629
    %v662 = vtanh.pop %v630
    %v663 = vtanh.pop %v631
    %v664 = vtanh.pop %v632
    %v665 = vtanh.pop %v633
    %v666 = vtanh.pop %v634
    %v667 = vtanh.pop %v635
    %vm668 = vcmask 123904
    %669 = vst.msk [vmem:[#allocation2] sm:$0x3] %vm668, 0.0
    %670 = vst.msk [vmem:[#allocation2 + $0x28] sm:$0x3] %vm668, 0.0
    %671 = vst.msk [vmem:[#allocation2 + $0x50] sm:$0x3] %vm668, 0.0
    %672 = vst.msk [vmem:[#allocation2 + $0x78] sm:$0x3] %vm668, 0.0
    %673 = vst.msk [vmem:[#allocation2 + $0xa0] sm:$0x3] %vm668, 0.0
    %674 = vst.msk [vmem:[#allocation2 + $0xc8] sm:$0x3] %vm668, 0.0
    %675 = vst.msk [vmem:[#allocation2 + $0xf0] sm:$0x3] %vm668, 0.0
    %676 = vst.msk [vmem:[#allocation2 + $0x118] sm:$0x3] %vm668, 0.0
    %677 = vst.msk [vmem:[#allocation2 + $0x22] sm:$0x3] %vm668, 0.0
    %678 = vst.msk [vmem:[#allocation2 + $0x4a] sm:$0x3] %vm668, 0.0
    %679 = vst.msk [vmem:[#allocation2 + $0x72] sm:$0x3] %vm668, 0.0
    %680 = vst.msk [vmem:[#allocation2 + $0x9a] sm:$0x3] %vm668, 0.0
    %681 = vst.msk [vmem:[#allocation2 + $0xc2] sm:$0x3] %vm668, 0.0
    %682 = vst.msk [vmem:[#allocation2 + $0xea] sm:$0x3] %vm668, 0.0
    %683 = vst.msk [vmem:[#allocation2 + $0x112] sm:$0x3] %vm668, 0.0
    %684 = vst.msk [vmem:[#allocation2 + $0x13a] sm:$0x3] %vm668, 0.0
    %vm685 = vcmask 130048
    %686 = vst.msk [vmem:[#allocation2 + $0x2] sm:$0xff] %vm685, %v636
    %687 = vst.msk [vmem:[#allocation2 + $0xa] sm:$0xff] %vm685, %v637
    %688 = vst.msk [vmem:[#allocation2 + $0x12] sm:$0xff] %vm685, %v638
    %689 = vst.msk [vmem:[#allocation2 + $0x1a] sm:$0xff] %vm685, %v639
    %690 = vst.msk [vmem:[#allocation2 + $0x2a] sm:$0xff] %vm685, %v640
    %691 = vst.msk [vmem:[#allocation2 + $0x32] sm:$0xff] %vm685, %v641
    %692 = vst.msk [vmem:[#allocation2 + $0x3a] sm:$0xff] %vm685, %v642
    %693 = vst.msk [vmem:[#allocation2 + $0x42] sm:$0xff] %vm685, %v643
    %694 = vst.msk [vmem:[#allocation2 + $0x52] sm:$0xff] %vm685, %v644
    %695 = vst.msk [vmem:[#allocation2 + $0x5a] sm:$0xff] %vm685, %v645
    %696 = vst.msk [vmem:[#allocation2 + $0x62] sm:$0xff] %vm685, %v646
    %697 = vst.msk [vmem:[#allocation2 + $0x6a] sm:$0xff] %vm685, %v647
    %698 = vst.msk [vmem:[#allocation2 + $0x7a] sm:$0xff] %vm685, %v648
    %699 = vst.msk [vmem:[#allocation2 + $0x82] sm:$0xff] %vm685, %v649
    %700 = vst.msk [vmem:[#allocation2 + $0x8a] sm:$0xff] %vm685, %v650
    %701 = vst.msk [vmem:[#allocation2 + $0x92] sm:$0xff] %vm685, %v651
    %702 = vst.msk [vmem:[#allocation2 + $0xa2] sm:$0xff] %vm685, %v652
    %703 = vst.msk [vmem:[#allocation2 + $0xaa] sm:$0xff] %vm685, %v653
    %704 = vst.msk [vmem:[#allocation2 + $0xb2] sm:$0xff] %vm685, %v654
    %705 = vst.msk [vmem:[#allocation2 + $0xba] sm:$0xff] %vm685, %v655
    %706 = vst.msk [vmem:[#allocation2 + $0xca] sm:$0xff] %vm685, %v656
    %707 = vst.msk [vmem:[#allocation2 + $0xd2] sm:$0xff] %vm685, %v657
    %708 = vst.msk [vmem:[#allocation2 + $0xda] sm:$0xff] %vm685, %v658
    %709 = vst.msk [vmem:[#allocation2 + $0xe2] sm:$0xff] %vm685, %v659
    %710 = vst.msk [vmem:[#allocation2 + $0xf2] sm:$0xff] %vm685, %v660
    %711 = vst.msk [vmem:[#allocation2 + $0xfa] sm:$0xff] %vm685, %v661
    %712 = vst.msk [vmem:[#allocation2 + $0x102] sm:$0xff] %vm685, %v662
    %713 = vst.msk [vmem:[#allocation2 + $0x10a] sm:$0xff] %vm685, %v663
    %714 = vst.msk [vmem:[#allocation2 + $0x11a] sm:$0xff] %vm685, %v664
    %715 = vst.msk [vmem:[#allocation2 + $0x122] sm:$0xff] %vm685, %v665
    %716 = vst.msk [vmem:[#allocation2 + $0x12a] sm:$0xff] %vm685, %v666
    %717 = vst.msk [vmem:[#allocation2 + $0x132] sm:$0xff] %vm685, %v667
    %v718 = vld [vmem:[#allocation2] ss:$2 sm:$0xff]
    %s719 = scalar_lea.vmem [#allocation2], 16
    %v720 = vld [vmem:[%s719] ss:$2 sm:$0xff]
    %s721 = scalar_lea.vmem [#allocation2], 40
    %v722 = vld [vmem:[%s721] ss:$2 sm:$0xff]
    %s723 = scalar_lea.vmem [#allocation2], 56
    %v724 = vld [vmem:[%s723] ss:$2 sm:$0xff]
    %s725 = scalar_lea.vmem [#allocation2], 80
    %v726 = vld [vmem:[%s725] ss:$2 sm:$0xff]
    %s727 = scalar_lea.vmem [#allocation2], 96
    %v728 = vld [vmem:[%s727] ss:$2 sm:$0xff]
    %s729 = scalar_lea.vmem [#allocation2], 120
    %v730 = vld [vmem:[%s729] ss:$2 sm:$0xff]
    %s731 = scalar_lea.vmem [#allocation2], 136
    %v732 = vld [vmem:[%s731] ss:$2 sm:$0xff]
    %s733 = scalar_lea.vmem [#allocation2], 160
    %v734 = vld [vmem:[%s733] ss:$2 sm:$0xff]
    %s735 = scalar_lea.vmem [#allocation2], 176
    %v736 = vld [vmem:[%s735] ss:$2 sm:$0xff]
    %s737 = scalar_lea.vmem [#allocation2], 200
    %v738 = vld [vmem:[%s737] ss:$2 sm:$0xff]
    %s739 = scalar_lea.vmem [#allocation2], 216
    %v740 = vld [vmem:[%s739] ss:$2 sm:$0xff]
    %s741 = scalar_lea.vmem [#allocation2], 240
    %v742 = vld [vmem:[%s741] ss:$2 sm:$0xff]
    %s743 = scalar_lea.vmem [#allocation2], 256
    %v744 = vld [vmem:[%s743] ss:$2 sm:$0xff]
    %s745 = scalar_lea.vmem [#allocation2], 280
    %v746 = vld [vmem:[%s745] ss:$2 sm:$0xff]
    %s747 = scalar_lea.vmem [#allocation2], 296
    %v748 = vld [vmem:[%s747] ss:$2 sm:$0xff]
    %s749 = scalar_lea.vmem [#allocation2], 1
    %v750 = vld [vmem:[%s749] ss:$2 sm:$0xff]
    %s751 = scalar_lea.vmem [#allocation2], 17
    %v752 = vld [vmem:[%s751] ss:$2 sm:$0xff]
    %s753 = scalar_lea.vmem [#allocation2], 41
    %v754 = vld [vmem:[%s753] ss:$2 sm:$0xff]
    %s755 = scalar_lea.vmem [#allocation2], 57
    %v756 = vld [vmem:[%s755] ss:$2 sm:$0xff]
    %s757 = scalar_lea.vmem [#allocation2], 81
    %v758 = vld [vmem:[%s757] ss:$2 sm:$0xff]
    %s759 = scalar_lea.vmem [#allocation2], 97
    %v760 = vld [vmem:[%s759] ss:$2 sm:$0xff]
    %s761 = scalar_lea.vmem [#allocation2], 121
    %v762 = vld [vmem:[%s761] ss:$2 sm:$0xff]
    %s763 = scalar_lea.vmem [#allocation2], 137
    %v764 = vld [vmem:[%s763] ss:$2 sm:$0xff]
    %s765 = scalar_lea.vmem [#allocation2], 161
    %v766 = vld [vmem:[%s765] ss:$2 sm:$0xff]
    %s767 = scalar_lea.vmem [#allocation2], 177
    %v768 = vld [vmem:[%s767] ss:$2 sm:$0xff]
    %s769 = scalar_lea.vmem [#allocation2], 201
    %v770 = vld [vmem:[%s769] ss:$2 sm:$0xff]
    %s771 = scalar_lea.vmem [#allocation2], 217
    %v772 = vld [vmem:[%s771] ss:$2 sm:$0xff]
    %s773 = scalar_lea.vmem [#allocation2], 241
    %v774 = vld [vmem:[%s773] ss:$2 sm:$0xff]
    %s775 = scalar_lea.vmem [#allocation2], 257
    %v776 = vld [vmem:[%s775] ss:$2 sm:$0xff]
    %s777 = scalar_lea.vmem [#allocation2], 281
    %v778 = vld [vmem:[%s777] ss:$2 sm:$0xff]
    %s779 = scalar_lea.vmem [#allocation2], 297
    %v780 = vld [vmem:[%s779] ss:$2 sm:$0xff]
    %s781 = scalar_lea.vmem [#allocation2], 2
    %v782 = vld [vmem:[%s781] ss:$2 sm:$0xff]
    %s783 = scalar_lea.vmem [#allocation2], 18
    %v784 = vld [vmem:[%s783] ss:$2 sm:$0xff]
    %s785 = scalar_lea.vmem [#allocation2], 42
    %v786 = vld [vmem:[%s785] ss:$2 sm:$0xff]
    %s787 = scalar_lea.vmem [#allocation2], 58
    %v788 = vld [vmem:[%s787] ss:$2 sm:$0xff]
    %s789 = scalar_lea.vmem [#allocation2], 82
    %v790 = vld [vmem:[%s789] ss:$2 sm:$0xff]
    %s791 = scalar_lea.vmem [#allocation2], 98
    %v792 = vld [vmem:[%s791] ss:$2 sm:$0xff]
    %s793 = scalar_lea.vmem [#allocation2], 122
    %v794 = vld [vmem:[%s793] ss:$2 sm:$0xff]
    %s795 = scalar_lea.vmem [#allocation2], 138
    %v796 = vld [vmem:[%s795] ss:$2 sm:$0xff]
    %s797 = scalar_lea.vmem [#allocation2], 162
    %v798 = vld [vmem:[%s797] ss:$2 sm:$0xff]
    %s799 = scalar_lea.vmem [#allocation2], 178
    %v800 = vld [vmem:[%s799] ss:$2 sm:$0xff]
    %s801 = scalar_lea.vmem [#allocation2], 202
    %v802 = vld [vmem:[%s801] ss:$2 sm:$0xff]
    %s803 = scalar_lea.vmem [#allocation2], 218
    %v804 = vld [vmem:[%s803] ss:$2 sm:$0xff]
    %s805 = scalar_lea.vmem [#allocation2], 242
    %v806 = vld [vmem:[%s805] ss:$2 sm:$0xff]
    %s807 = scalar_lea.vmem [#allocation2], 258
    %v808 = vld [vmem:[%s807] ss:$2 sm:$0xff]
    %s809 = scalar_lea.vmem [#allocation2], 282
    %v810 = vld [vmem:[%s809] ss:$2 sm:$0xff]
    %s811 = scalar_lea.vmem [#allocation2], 298
    %v812 = vld [vmem:[%s811] ss:$2 sm:$0xff]
    %s813 = scalar_lea.vmem [#allocation2], 3
    %v814 = vld [vmem:[%s813] ss:$2 sm:$0xff]
    %s815 = scalar_lea.vmem [#allocation2], 19
    %v816 = vld [vmem:[%s815] ss:$2 sm:$0xff]
    %s817 = scalar_lea.vmem [#allocation2], 43
    %v818 = vld [vmem:[%s817] ss:$2 sm:$0xff]
    %s819 = scalar_lea.vmem [#allocation2], 59
    %v820 = vld [vmem:[%s819] ss:$2 sm:$0xff]
    %s821 = scalar_lea.vmem [#allocation2], 83
    %v822 = vld [vmem:[%s821] ss:$2 sm:$0xff]
    %s823 = scalar_lea.vmem [#allocation2], 99
    %v824 = vld [vmem:[%s823] ss:$2 sm:$0xff]
    %s825 = scalar_lea.vmem [#allocation2], 123
    %v826 = vld [vmem:[%s825] ss:$2 sm:$0xff]
    %s827 = scalar_lea.vmem [#allocation2], 139
    %v828 = vld [vmem:[%s827] ss:$2 sm:$0xff]
    %s829 = scalar_lea.vmem [#allocation2], 163
    %v830 = vld [vmem:[%s829] ss:$2 sm:$0xff]
    %s831 = scalar_lea.vmem [#allocation2], 179
    %v832 = vld [vmem:[%s831] ss:$2 sm:$0xff]
    %s833 = scalar_lea.vmem [#allocation2], 203
    %v834 = vld [vmem:[%s833] ss:$2 sm:$0xff]
    %s835 = scalar_lea.vmem [#allocation2], 219
    %v836 = vld [vmem:[%s835] ss:$2 sm:$0xff]
    %s837 = scalar_lea.vmem [#allocation2], 243
    %v838 = vld [vmem:[%s837] ss:$2 sm:$0xff]
    %s839 = scalar_lea.vmem [#allocation2], 259
    %v840 = vld [vmem:[%s839] ss:$2 sm:$0xff]
    %s841 = scalar_lea.vmem [#allocation2], 283
    %v842 = vld [vmem:[%s841] ss:$2 sm:$0xff]
    %s843 = scalar_lea.vmem [#allocation2], 299
    %v844 = vld [vmem:[%s843] ss:$2 sm:$0xff]
    %s845 = scalar_lea.vmem [#allocation2], 4
    %v846 = vld [vmem:[%s845] ss:$2 sm:$0xff]
    %s847 = scalar_lea.vmem [#allocation2], 20
    %v848 = vld [vmem:[%s847] ss:$2 sm:$0xff]
    %s849 = scalar_lea.vmem [#allocation2], 44
    %v850 = vld [vmem:[%s849] ss:$2 sm:$0xff]
    %s851 = scalar_lea.vmem [#allocation2], 60
    %v852 = vld [vmem:[%s851] ss:$2 sm:$0xff]
    %s853 = scalar_lea.vmem [#allocation2], 84
    %v854 = vld [vmem:[%s853] ss:$2 sm:$0xff]
    %s855 = scalar_lea.vmem [#allocation2], 100
    %v856 = vld [vmem:[%s855] ss:$2 sm:$0xff]
    %s857 = scalar_lea.vmem [#allocation2], 124
    %v858 = vld [vmem:[%s857] ss:$2 sm:$0xff]
    %s859 = scalar_lea.vmem [#allocation2], 140
    %v860 = vld [vmem:[%s859] ss:$2 sm:$0xff]
    %s861 = scalar_lea.vmem [#allocation2], 164
    %v862 = vld [vmem:[%s861] ss:$2 sm:$0xff]
    %s863 = scalar_lea.vmem [#allocation2], 180
    %v864 = vld [vmem:[%s863] ss:$2 sm:$0xff]
    %s865 = scalar_lea.vmem [#allocation2], 204
    %v866 = vld [vmem:[%s865] ss:$2 sm:$0xff]
    %s867 = scalar_lea.vmem [#allocation2], 220
    %v868 = vld [vmem:[%s867] ss:$2 sm:$0xff]
    %s869 = scalar_lea.vmem [#allocation2], 244
    %v870 = vld [vmem:[%s869] ss:$2 sm:$0xff]
    %s871 = scalar_lea.vmem [#allocation2], 260
    %v872 = vld [vmem:[%s871] ss:$2 sm:$0xff]
    %s873 = scalar_lea.vmem [#allocation2], 284
    %v874 = vld [vmem:[%s873] ss:$2 sm:$0xff]
    %s875 = scalar_lea.vmem [#allocation2], 300
    %v876 = vld [vmem:[%s875] ss:$2 sm:$0xff]
    %s877 = scalar_lea.vmem [#allocation2], 5
    %v878 = vld [vmem:[%s877] ss:$2 sm:$0xff]
    %s879 = scalar_lea.vmem [#allocation2], 21
    %v880 = vld [vmem:[%s879] ss:$2 sm:$0xff]
    %s881 = scalar_lea.vmem [#allocation2], 45
    %v882 = vld [vmem:[%s881] ss:$2 sm:$0xff]
    %s883 = scalar_lea.vmem [#allocation2], 61
    %v884 = vld [vmem:[%s883] ss:$2 sm:$0xff]
    %s885 = scalar_lea.vmem [#allocation2], 85
    %v886 = vld [vmem:[%s885] ss:$2 sm:$0xff]
    %s887 = scalar_lea.vmem [#allocation2], 101
    %v888 = vld [vmem:[%s887] ss:$2 sm:$0xff]
    %s889 = scalar_lea.vmem [#allocation2], 125
    %v890 = vld [vmem:[%s889] ss:$2 sm:$0xff]
    %s891 = scalar_lea.vmem [#allocation2], 141
    %v892 = vld [vmem:[%s891] ss:$2 sm:$0xff]
    %s893 = scalar_lea.vmem [#allocation2], 165
    %v894 = vld [vmem:[%s893] ss:$2 sm:$0xff]
    %s895 = scalar_lea.vmem [#allocation2], 181
    %v896 = vld [vmem:[%s895] ss:$2 sm:$0xff]
    %s897 = scalar_lea.vmem [#allocation2], 205
    %v898 = vld [vmem:[%s897] ss:$2 sm:$0xff]
    %s899 = scalar_lea.vmem [#allocation2], 221
    %v900 = vld [vmem:[%s899] ss:$2 sm:$0xff]
    %s901 = scalar_lea.vmem [#allocation2], 245
    %v902 = vld [vmem:[%s901] ss:$2 sm:$0xff]
    %s903 = scalar_lea.vmem [#allocation2], 261
    %v904 = vld [vmem:[%s903] ss:$2 sm:$0xff]
    %s905 = scalar_lea.vmem [#allocation2], 285
    %v906 = vld [vmem:[%s905] ss:$2 sm:$0xff]
    %s907 = scalar_lea.vmem [#allocation2], 301
    %v908 = vld [vmem:[%s907] ss:$2 sm:$0xff]
    %925 = vrot.lane.b32.xlu0 %v750, 16
    %v926 = vpop.permute.xlu0 %925
    %927 = vrot.lane.b32.xlu0 %v752, 16
    %v928 = vpop.permute.xlu0 %927
    %929 = vrot.lane.b32.xlu0 %v754, 16
    %v930 = vpop.permute.xlu0 %929
    %931 = vrot.lane.b32.xlu0 %v756, 16
    %v932 = vpop.permute.xlu0 %931
    %933 = vrot.lane.b32.xlu0 %v758, 16
    %v934 = vpop.permute.xlu0 %933
    %935 = vrot.lane.b32.xlu0 %v760, 16
    %v936 = vpop.permute.xlu0 %935
    %937 = vrot.lane.b32.xlu0 %v762, 16
    %v938 = vpop.permute.xlu0 %937
    %939 = vrot.lane.b32.xlu0 %v764, 16
    %v940 = vpop.permute.xlu0 %939
    %941 = vrot.lane.b32.xlu0 %v766, 16
    %v942 = vpop.permute.xlu0 %941
    %943 = vrot.lane.b32.xlu0 %v768, 16
    %v944 = vpop.permute.xlu0 %943
    %945 = vrot.lane.b32.xlu0 %v770, 16
    %v946 = vpop.permute.xlu0 %945
    %947 = vrot.lane.b32.xlu0 %v772, 16
    %v948 = vpop.permute.xlu0 %947
    %949 = vrot.lane.b32.xlu0 %v774, 16
    %v950 = vpop.permute.xlu0 %949
    %951 = vrot.lane.b32.xlu0 %v776, 16
    %v952 = vpop.permute.xlu0 %951
    %953 = vrot.lane.b32.xlu0 %v778, 16
    %v954 = vpop.permute.xlu0 %953
    %955 = vrot.lane.b32.xlu0 %v780, 16
    %v956 = vpop.permute.xlu0 %955
    %989 = vrot.lane.b32.xlu0 %v782, 32
    %v990 = vpop.permute.xlu0 %989
    %991 = vrot.lane.b32.xlu0 %v784, 32
    %v992 = vpop.permute.xlu0 %991
    %993 = vrot.lane.b32.xlu0 %v786, 32
    %v994 = vpop.permute.xlu0 %993
    %995 = vrot.lane.b32.xlu0 %v788, 32
    %v996 = vpop.permute.xlu0 %995
    %997 = vrot.lane.b32.xlu0 %v790, 32
    %v998 = vpop.permute.xlu0 %997
    %999 = vrot.lane.b32.xlu0 %v792, 32
    %v1000 = vpop.permute.xlu0 %999
    %1001 = vrot.lane.b32.xlu0 %v794, 32
    %v1002 = vpop.permute.xlu0 %1001
    %1003 = vrot.lane.b32.xlu0 %v796, 32
    %v1004 = vpop.permute.xlu0 %1003
    %1005 = vrot.lane.b32.xlu0 %v798, 32
    %v1006 = vpop.permute.xlu0 %1005
    %1007 = vrot.lane.b32.xlu0 %v800, 32
    %v1008 = vpop.permute.xlu0 %1007
    %1009 = vrot.lane.b32.xlu0 %v802, 32
    %v1010 = vpop.permute.xlu0 %1009
    %1011 = vrot.lane.b32.xlu0 %v804, 32
    %v1012 = vpop.permute.xlu0 %1011
    %1013 = vrot.lane.b32.xlu0 %v806, 32
    %v1014 = vpop.permute.xlu0 %1013
    %1015 = vrot.lane.b32.xlu0 %v808, 32
    %v1016 = vpop.permute.xlu0 %1015
    %1017 = vrot.lane.b32.xlu0 %v810, 32
    %v1018 = vpop.permute.xlu0 %1017
    %1019 = vrot.lane.b32.xlu0 %v812, 32
    %v1020 = vpop.permute.xlu0 %1019
    %1053 = vrot.lane.b32.xlu0 %v814, 48
    %v1054 = vpop.permute.xlu0 %1053
    %1055 = vrot.lane.b32.xlu0 %v816, 48
    %v1056 = vpop.permute.xlu0 %1055
    %1057 = vrot.lane.b32.xlu0 %v818, 48
    %v1058 = vpop.permute.xlu0 %1057
    %1059 = vrot.lane.b32.xlu0 %v820, 48
    %v1060 = vpop.permute.xlu0 %1059
    %1061 = vrot.lane.b32.xlu0 %v822, 48
    %v1062 = vpop.permute.xlu0 %1061
    %1063 = vrot.lane.b32.xlu0 %v824, 48
    %v1064 = vpop.permute.xlu0 %1063
    %1065 = vrot.lane.b32.xlu0 %v826, 48
    %v1066 = vpop.permute.xlu0 %1065
    %1067 = vrot.lane.b32.xlu0 %v828, 48
    %v1068 = vpop.permute.xlu0 %1067
    %1069 = vrot.lane.b32.xlu0 %v830, 48
    %v1070 = vpop.permute.xlu0 %1069
    %1071 = vrot.lane.b32.xlu0 %v832, 48
    %v1072 = vpop.permute.xlu0 %1071
    %1073 = vrot.lane.b32.xlu0 %v834, 48
    %v1074 = vpop.permute.xlu0 %1073
    %1075 = vrot.lane.b32.xlu0 %v836, 48
    %v1076 = vpop.permute.xlu0 %1075
    %1077 = vrot.lane.b32.xlu0 %v838, 48
    %v1078 = vpop.permute.xlu0 %1077
    %1079 = vrot.lane.b32.xlu0 %v840, 48
    %v1080 = vpop.permute.xlu0 %1079
    %1081 = vrot.lane.b32.xlu0 %v842, 48
    %v1082 = vpop.permute.xlu0 %1081
    %1083 = vrot.lane.b32.xlu0 %v844, 48
    %v1084 = vpop.permute.xlu0 %1083
    %1117 = vrot.lane.b32.xlu0 %v846, 64
    %v1118 = vpop.permute.xlu0 %1117
    %1119 = vrot.lane.b32.xlu0 %v848, 64
    %v1120 = vpop.permute.xlu0 %1119
    %1121 = vrot.lane.b32.xlu0 %v850, 64
    %v1122 = vpop.permute.xlu0 %1121
    %1123 = vrot.lane.b32.xlu0 %v852, 64
    %v1124 = vpop.permute.xlu0 %1123
    %1125 = vrot.lane.b32.xlu0 %v854, 64
    %v1126 = vpop.permute.xlu0 %1125
    %1127 = vrot.lane.b32.xlu0 %v856, 64
    %v1128 = vpop.permute.xlu0 %1127
    %1129 = vrot.lane.b32.xlu0 %v858, 64
    %v1130 = vpop.permute.xlu0 %1129
    %1131 = vrot.lane.b32.xlu0 %v860, 64
    %v1132 = vpop.permute.xlu0 %1131
    %1133 = vrot.lane.b32.xlu0 %v862, 64
    %v1134 = vpop.permute.xlu0 %1133
    %1135 = vrot.lane.b32.xlu0 %v864, 64
    %v1136 = vpop.permute.xlu0 %1135
    %1137 = vrot.lane.b32.xlu0 %v866, 64
    %v1138 = vpop.permute.xlu0 %1137
    %1139 = vrot.lane.b32.xlu0 %v868, 64
    %v1140 = vpop.permute.xlu0 %1139
    %1141 = vrot.lane.b32.xlu0 %v870, 64
    %v1142 = vpop.permute.xlu0 %1141
    %1143 = vrot.lane.b32.xlu0 %v872, 64
    %v1144 = vpop.permute.xlu0 %1143
    %1145 = vrot.lane.b32.xlu0 %v874, 64
    %v1146 = vpop.permute.xlu0 %1145
    %1147 = vrot.lane.b32.xlu0 %v876, 64
    %v1148 = vpop.permute.xlu0 %1147
    %1181 = vrot.lane.b32.xlu0 %v878, 80
    %v1182 = vpop.permute.xlu0 %1181
    %1183 = vrot.lane.b32.xlu0 %v880, 80
    %v1184 = vpop.permute.xlu0 %1183
    %1185 = vrot.lane.b32.xlu0 %v882, 80
    %v1186 = vpop.permute.xlu0 %1185
    %1187 = vrot.lane.b32.xlu0 %v884, 80
    %v1188 = vpop.permute.xlu0 %1187
    %1189 = vrot.lane.b32.xlu0 %v886, 80
    %v1190 = vpop.permute.xlu0 %1189
    %1191 = vrot.lane.b32.xlu0 %v888, 80
    %v1192 = vpop.permute.xlu0 %1191
    %1193 = vrot.lane.b32.xlu0 %v890, 80
    %v1194 = vpop.permute.xlu0 %1193
    %1195 = vrot.lane.b32.xlu0 %v892, 80
    %v1196 = vpop.permute.xlu0 %1195
    %1197 = vrot.lane.b32.xlu0 %v894, 80
    %v1198 = vpop.permute.xlu0 %1197
    %1199 = vrot.lane.b32.xlu0 %v896, 80
    %v1200 = vpop.permute.xlu0 %1199
    %1201 = vrot.lane.b32.xlu0 %v898, 80
    %v1202 = vpop.permute.xlu0 %1201
    %1203 = vrot.lane.b32.xlu0 %v900, 80
    %v1204 = vpop.permute.xlu0 %1203
    %1205 = vrot.lane.b32.xlu0 %v902, 80
    %v1206 = vpop.permute.xlu0 %1205
    %1207 = vrot.lane.b32.xlu0 %v904, 80
    %v1208 = vpop.permute.xlu0 %1207
    %1209 = vrot.lane.b32.xlu0 %v906, 80
    %v1210 = vpop.permute.xlu0 %1209
    %1211 = vrot.lane.b32.xlu0 %v908, 80
    %v1212 = vpop.permute.xlu0 %1211
    %v1229 = vsel %vm685, %v718, %v926
    %v1230 = vsel %vm685, %v720, %v928
    %v1231 = vsel %vm685, %v722, %v930
    %v1232 = vsel %vm685, %v724, %v932
    %v1233 = vsel %vm685, %v726, %v934
    %v1234 = vsel %vm685, %v728, %v936
    %v1235 = vsel %vm685, %v730, %v938
    %v1236 = vsel %vm685, %v732, %v940
    %v1237 = vsel %vm685, %v734, %v942
    %v1238 = vsel %vm685, %v736, %v944
    %v1239 = vsel %vm685, %v738, %v946
    %v1240 = vsel %vm685, %v740, %v948
    %v1241 = vsel %vm685, %v742, %v950
    %v1242 = vsel %vm685, %v744, %v952
    %v1243 = vsel %vm685, %v746, %v954
    %v1244 = vsel %vm685, %v748, %v956
    %vm1245 = vcmask 261120
    %v1246 = vsel %vm1245, %v1229, %v990
    %v1247 = vsel %vm1245, %v1230, %v992
    %v1248 = vsel %vm1245, %v1231, %v994
    %v1249 = vsel %vm1245, %v1232, %v996
    %v1250 = vsel %vm1245, %v1233, %v998
    %v1251 = vsel %vm1245, %v1234, %v1000
    %v1252 = vsel %vm1245, %v1235, %v1002
    %v1253 = vsel %vm1245, %v1236, %v1004
    %v1254 = vsel %vm1245, %v1237, %v1006
    %v1255 = vsel %vm1245, %v1238, %v1008
    %v1256 = vsel %vm1245, %v1239, %v1010
    %v1257 = vsel %vm1245, %v1240, %v1012
    %v1258 = vsel %vm1245, %v1241, %v1014
    %v1259 = vsel %vm1245, %v1242, %v1016
    %v1260 = vsel %vm1245, %v1243, %v1018
    %v1261 = vsel %vm1245, %v1244, %v1020
    %vm1262 = vcmask 392192
    %v1263 = vsel %vm1262, %v1246, %v1054
    %v1264 = vsel %vm1262, %v1247, %v1056
    %v1265 = vsel %vm1262, %v1248, %v1058
    %v1266 = vsel %vm1262, %v1249, %v1060
    %v1267 = vsel %vm1262, %v1250, %v1062
    %v1268 = vsel %vm1262, %v1251, %v1064
    %v1269 = vsel %vm1262, %v1252, %v1066
    %v1270 = vsel %vm1262, %v1253, %v1068
    %v1271 = vsel %vm1262, %v1254, %v1070
    %v1272 = vsel %vm1262, %v1255, %v1072
    %v1273 = vsel %vm1262, %v1256, %v1074
    %v1274 = vsel %vm1262, %v1257, %v1076
    %v1275 = vsel %vm1262, %v1258, %v1078
    %v1276 = vsel %vm1262, %v1259, %v1080
    %v1277 = vsel %vm1262, %v1260, %v1082
    %v1278 = vsel %vm1262, %v1261, %v1084
    %vm1279 = vcmask 523264
    %v1280 = vsel %vm1279, %v1263, %v1118
    %v1281 = vsel %vm1279, %v1264, %v1120
    %v1282 = vsel %vm1279, %v1265, %v1122
    %v1283 = vsel %vm1279, %v1266, %v1124
    %v1284 = vsel %vm1279, %v1267, %v1126
    %v1285 = vsel %vm1279, %v1268, %v1128
    %v1286 = vsel %vm1279, %v1269, %v1130
    %v1287 = vsel %vm1279, %v1270, %v1132
    %v1288 = vsel %vm1279, %v1271, %v1134
    %v1289 = vsel %vm1279, %v1272, %v1136
    %v1290 = vsel %vm1279, %v1273, %v1138
    %v1291 = vsel %vm1279, %v1274, %v1140
    %v1292 = vsel %vm1279, %v1275, %v1142
    %v1293 = vsel %vm1279, %v1276, %v1144
    %v1294 = vsel %vm1279, %v1277, %v1146
    %v1295 = vsel %vm1279, %v1278, %v1148
    %vm1296 = vcmask 654336
    %v1297 = vsel %vm1296, %v1280, %v1182
    %v1298 = vsel %vm1296, %v1281, %v1184
    %v1299 = vsel %vm1296, %v1282, %v1186
    %v1300 = vsel %vm1296, %v1283, %v1188
    %v1301 = vsel %vm1296, %v1284, %v1190
    %v1302 = vsel %vm1296, %v1285, %v1192
    %v1303 = vsel %vm1296, %v1286, %v1194
    %v1304 = vsel %vm1296, %v1287, %v1196
    %v1305 = vsel %vm1296, %v1288, %v1198
    %v1306 = vsel %vm1296, %v1289, %v1200
    %v1307 = vsel %vm1296, %v1290, %v1202
    %v1308 = vsel %vm1296, %v1291, %v1204
    %v1309 = vsel %vm1296, %v1292, %v1206
    %v1310 = vsel %vm1296, %v1293, %v1208
    %v1311 = vsel %vm1296, %v1294, %v1210
    %v1312 = vsel %vm1296, %v1295, %v1212
    %v1313 = vld [vmem:[%s3] sm:$0xff]
    %v1314 = vld [vmem:[%s3 + $0x8] sm:$0xff]
    %v1315 = vld [vmem:[%s3 + $0x10] sm:$0xff]
    %v1316 = vld [vmem:[%s3 + $0x18] sm:$0xff]
    %v1317 = vld [vmem:[%s3 + $0x20] sm:$0xff]
    %v1318 = vld [vmem:[%s3 + $0x28] sm:$0xff]
    %v1319 = vld [vmem:[%s3 + $0x30] sm:$0xff]
    %v1320 = vld [vmem:[%s3 + $0x38] sm:$0xff]
    %v1321 = vld [vmem:[%s3 + $0x40] sm:$0xff]
    %v1322 = vld [vmem:[%s3 + $0x48] sm:$0xff]
    %v1323 = vld [vmem:[%s3 + $0x50] sm:$0xff]
    %v1324 = vld [vmem:[%s3 + $0x58] sm:$0xff]
    %vm1325 = vcmask 785408
    %v1327 = vsel %vm1325, %v1297, 0
    %v1330 = vsel %vm1325, %v1298, 0
    %v1333 = vsel %vm1325, %v1299, 0
    %v1336 = vsel %vm1325, %v1300, 0
    %v1339 = vsel %vm1325, %v1301, 0
    %v1342 = vsel %vm1325, %v1302, 0
    %v1345 = vsel %vm1325, %v1303, 0
    %v1348 = vsel %vm1325, %v1304, 0
    %v1351 = vsel %vm1325, %v1305, 0
    %v1354 = vsel %vm1325, %v1306, 0
    %v1357 = vsel %vm1325, %v1307, 0
    %v1360 = vsel %vm1325, %v1308, 0
    %v1363 = vsel %vm1325, %v1309, 0
    %v1366 = vsel %vm1325, %v1310, 0
    %v1369 = vsel %vm1325, %v1311, 0
    %v1372 = vsel %vm1325, %v1312, 0
    %1374 = vmatprep.subr.mxu0 0.0
    %1375 = vmatpush1.msra.mxu0 %v1313
    %1376 = vmatprep.subr.mxu0 0.0
    %1377 = vmatpush1.msra.mxu0 %v1314
    %1378 = vmatprep.subr.mxu0 0.0
    %1379 = vmatpush1.msra.mxu0 %v1315
    %1380 = vmatprep.subr.mxu0 0.0
    %1381 = vmatpush1.msra.mxu0 %v1316
    %1382 = vmatprep.subr.mxu0 0.0
    %1383 = vmatpush1.msra.mxu0 %v1317
    %1384 = vmatprep.subr.mxu0 0.0
    %1385 = vmatpush1.msra.mxu0 %v1318
    %1386 = vmatprep.subr.mxu0 0.0
    %1387 = vmatpush1.msra.mxu0 %v1319
    %1388 = vmatprep.subr.mxu0 0.0
    %1389 = vmatpush1.msra.mxu0 %v1320
    %1390 = vmatprep.subr.mxu0 0.0
    %1391 = vmatpush1.msra.mxu0 %v1321
    %1392 = vmatprep.subr.mxu0 0.0
    %1393 = vmatpush1.msra.mxu0 %v1322
    %1394 = vmatprep.subr.mxu0 0.0
    %1395 = vmatpush1.msra.mxu0 %v1323
    %1396 = vmatprep.subr.mxu0 0.0
    %1397 = vmatpush1.msra.mxu0 %v1324
    %1398 = vmatprep.subr.mxu0 0.0
    %1399 = vmatpush1.msra.mxu0 0.0
    %1400 = vmatprep.subr.mxu0 0.0
    %1401 = vmatpush1.msra.mxu0 0.0
    %1402 = vmatprep.subr.mxu0 0.0
    %1403 = vmatpush1.msra.mxu0 0.0
    %1404 = vmatprep.subr.mxu0 0.0
    %1405 = vmatpush1.msra.mxu0 0.0
    %1406 = vmatprep.subr.mxu0 0.0
    %1407 = vmatpush1.msra.mxu0 0.0
    %1408 = vmatprep.subr.mxu0 0.0
    %1409 = vmatpush1.msra.mxu0 0.0
    %1410 = vmatprep.subr.mxu0 0.0
    %1411 = vmatpush1.msra.mxu0 0.0
    %1412 = vmatprep.subr.mxu0 0.0
    %1413 = vmatpush1.msra.mxu0 0.0
    %1414 = vmatprep.subr.mxu0 0.0
    %1415 = vmatpush1.msra.mxu0 0.0
    %1416 = vmatprep.subr.mxu0 0.0
    %1417 = vmatpush1.msra.mxu0 0.0
    %1418 = vmatprep.subr.mxu0 0.0
    %1419 = vmatpush1.msra.mxu0 0.0
    %1420 = vmatprep.subr.mxu0 0.0
    %1421 = vmatpush1.msra.mxu0 0.0
    %1422 = vmatprep.subr.mxu0 0.0
    %1423 = vmatpush1.msra.mxu0 0.0
    %1424 = vmatprep.subr.mxu0 0.0
    %1425 = vmatpush1.msra.mxu0 0.0
    %1426 = vmatprep.subr.mxu0 0.0
    %1427 = vmatpush1.msra.mxu0 0.0
    %1428 = vmatprep.subr.mxu0 0.0
    %1429 = vmatpush1.msra.mxu0 0.0
    %1430 = vmatprep.subr.mxu0 0.0
    %1431 = vmatpush1.msra.mxu0 0.0
    %1432 = vmatprep.subr.mxu0 0.0
    %1433 = vmatpush1.msra.mxu0 0.0
    %1434 = vmatprep.subr.mxu0 0.0
    %1435 = vmatpush1.msra.mxu0 0.0
    %1436 = vmatprep.subr.mxu0 0.0
    %1437 = vmatpush1.msra.mxu0 0.0
    %1438 = vmatprep.mubr.f32.mxu0 0.0
    %1439 = vmatmul.mubr.f32.gmra.mrb[0].mxu0 %v1327
    %v1440 = vpop.f32.mrb[0].mxu0
    %v1441 = vadd.f32 0.0, %v1440
    %v1442 = vpop.f32.mrb[0].mxu0
    %1443 = vmatprep.mubr.f32.mxu0 0.0
    %1444 = vmatmul.mubr.f32.gmra.mrb[0].mxu0 %v1330
    %v1445 = vpop.f32.mrb[0].mxu0
    %v1446 = vadd.f32 0.0, %v1445
    %v1447 = vpop.f32.mrb[0].mxu0
    %1448 = vmatprep.mubr.f32.mxu0 0.0
    %1449 = vmatmul.mubr.f32.gmra.mrb[0].mxu0 %v1333
    %v1450 = vpop.f32.mrb[0].mxu0
    %v1451 = vadd.f32 0.0, %v1450
    %v1452 = vpop.f32.mrb[0].mxu0
    %1453 = vmatprep.mubr.f32.mxu0 0.0
    %1454 = vmatmul.mubr.f32.gmra.mrb[0].mxu0 %v1336
    %v1455 = vpop.f32.mrb[0].mxu0
    %v1456 = vadd.f32 0.0, %v1455
    %v1457 = vpop.f32.mrb[0].mxu0
    %1458 = vmatprep.mubr.f32.mxu0 0.0
    %1459 = vmatmul.mubr.f32.gmra.mrb[0].mxu0 %v1339
    %v1460 = vpop.f32.mrb[0].mxu0
    %v1461 = vadd.f32 0.0, %v1460
    %v1462 = vpop.f32.mrb[0].mxu0
    %1463 = vmatprep.mubr.f32.mxu0 0.0
    %1464 = vmatmul.mubr.f32.gmra.mrb[0].mxu0 %v1342
    %v1465 = vpop.f32.mrb[0].mxu0
    %v1466 = vadd.f32 0.0, %v1465
    %v1467 = vpop.f32.mrb[0].mxu0
    %1468 = vmatprep.mubr.f32.mxu0 0.0
    %1469 = vmatmul.mubr.f32.gmra.mrb[0].mxu0 %v1345
    %v1470 = vpop.f32.mrb[0].mxu0
    %v1471 = vadd.f32 0.0, %v1470
    %v1472 = vpop.f32.mrb[0].mxu0
    %1473 = vmatprep.mubr.f32.mxu0 0.0
    %1474 = vmatmul.mubr.f32.gmra.mrb[0].mxu0 %v1348
    %v1475 = vpop.f32.mrb[0].mxu0
    %v1476 = vadd.f32 0.0, %v1475
    %v1477 = vpop.f32.mrb[0].mxu0
    %1478 = vmatprep.mubr.f32.mxu0 0.0
    %1479 = vmatmul.mubr.f32.gmra.mrb[0].mxu0 %v1351
    %v1480 = vpop.f32.mrb[0].mxu0
    %v1481 = vadd.f32 0.0, %v1480
    %v1482 = vpop.f32.mrb[0].mxu0
    %1483 = vmatprep.mubr.f32.mxu0 0.0
    %1484 = vmatmul.mubr.f32.gmra.mrb[0].mxu0 %v1354
    %v1485 = vpop.f32.mrb[0].mxu0
    %v1486 = vadd.f32 0.0, %v1485
    %v1487 = vpop.f32.mrb[0].mxu0
    %1488 = vmatprep.mubr.f32.mxu0 0.0
    %1489 = vmatmul.mubr.f32.gmra.mrb[0].mxu0 %v1357
    %v1490 = vpop.f32.mrb[0].mxu0
    %v1491 = vadd.f32 0.0, %v1490
    %v1492 = vpop.f32.mrb[0].mxu0
    %1493 = vmatprep.mubr.f32.mxu0 0.0
    %1494 = vmatmul.mubr.f32.gmra.mrb[0].mxu0 %v1360
    %v1495 = vpop.f32.mrb[0].mxu0
    %v1496 = vadd.f32 0.0, %v1495
    %v1497 = vpop.f32.mrb[0].mxu0
    %1498 = vmatprep.mubr.f32.mxu0 0.0
    %1499 = vmatmul.mubr.f32.gmra.mrb[0].mxu0 %v1363
    %v1500 = vpop.f32.mrb[0].mxu0
    %v1501 = vadd.f32 0.0, %v1500
    %v1502 = vpop.f32.mrb[0].mxu0
    %1503 = vmatprep.mubr.f32.mxu0 0.0
    %1504 = vmatmul.mubr.f32.gmra.mrb[0].mxu0 %v1366
    %v1505 = vpop.f32.mrb[0].mxu0
    %v1506 = vadd.f32 0.0, %v1505
    %v1507 = vpop.f32.mrb[0].mxu0
    %1508 = vmatprep.mubr.f32.mxu0 0.0
    %1509 = vmatmul.mubr.f32.gmra.mrb[0].mxu0 %v1369
    %v1510 = vpop.f32.mrb[0].mxu0
    %v1511 = vadd.f32 0.0, %v1510
    %v1512 = vpop.f32.mrb[0].mxu0
    %1513 = vmatprep.mubr.f32.mxu0 0.0
    %1514 = vmatmul.mubr.f32.gmra.mrb[0].mxu0 %v1372
    %v1515 = vpop.f32.mrb[0].mxu0
    %v1516 = vadd.f32 0.0, %v1515
    %v1517 = vpop.f32.mrb[0].mxu0
    %1518 = vdwg.mxu0
    %1535 = vrot.lane.b32.xlu0 %v1441, 96
    %v1536 = vpop.permute.xlu0 %1535
    %1537 = vrot.lane.b32.xlu0 %v1446, 96
    %v1538 = vpop.permute.xlu0 %1537
    %1539 = vrot.lane.b32.xlu0 %v1451, 96
    %v1540 = vpop.permute.xlu0 %1539
    %1541 = vrot.lane.b32.xlu0 %v1456, 96
    %v1542 = vpop.permute.xlu0 %1541
    %1543 = vrot.lane.b32.xlu0 %v1461, 96
    %v1544 = vpop.permute.xlu0 %1543
    %1545 = vrot.lane.b32.xlu0 %v1466, 96
    %v1546 = vpop.permute.xlu0 %1545
    %1547 = vrot.lane.b32.xlu0 %v1471, 96
    %v1548 = vpop.permute.xlu0 %1547
    %1549 = vrot.lane.b32.xlu0 %v1476, 96
    %v1550 = vpop.permute.xlu0 %1549
    %1551 = vrot.lane.b32.xlu0 %v1481, 96
    %v1552 = vpop.permute.xlu0 %1551
    %1553 = vrot.lane.b32.xlu0 %v1486, 96
    %v1554 = vpop.permute.xlu0 %1553
    %1555 = vrot.lane.b32.xlu0 %v1491, 96
    %v1556 = vpop.permute.xlu0 %1555
    %1557 = vrot.lane.b32.xlu0 %v1496, 96
    %v1558 = vpop.permute.xlu0 %1557
    %1559 = vrot.lane.b32.xlu0 %v1501, 96
    %v1560 = vpop.permute.xlu0 %1559
    %1561 = vrot.lane.b32.xlu0 %v1506, 96
    %v1562 = vpop.permute.xlu0 %1561
    %1563 = vrot.lane.b32.xlu0 %v1511, 96
    %v1564 = vpop.permute.xlu0 %1563
    %1565 = vrot.lane.b32.xlu0 %v1516, 96
    %v1566 = vpop.permute.xlu0 %1565
    %v1583 = vmax.f32 %v1441, %v1536
    %v1584 = vmax.f32 %v1446, %v1538
    %v1585 = vmax.f32 %v1451, %v1540
    %v1586 = vmax.f32 %v1456, %v1542
    %v1587 = vmax.f32 %v1461, %v1544
    %v1588 = vmax.f32 %v1466, %v1546
    %v1589 = vmax.f32 %v1471, %v1548
    %v1590 = vmax.f32 %v1476, %v1550
    %v1591 = vmax.f32 %v1481, %v1552
    %v1592 = vmax.f32 %v1486, %v1554
    %v1593 = vmax.f32 %v1491, %v1556
    %v1594 = vmax.f32 %v1496, %v1558
    %v1595 = vmax.f32 %v1501, %v1560
    %v1596 = vmax.f32 %v1506, %v1562
    %v1597 = vmax.f32 %v1511, %v1564
    %v1598 = vmax.f32 %v1516, %v1566
    %v1599 = vld [vmem:[%s4] sm:$0x1]
    %v1601 = vlaneseq
    %v1602 = vshrl.u32 %v1601, 7
    %v1603 = vsub.s32 0, %v1602
    %v1604 = vrot.slane %v1599, %v1603
    %v1606 = vadd.f32 %v1583, %v1604
    %v1607 = vadd.f32 %v1584, %v1604
    %v1608 = vadd.f32 %v1585, %v1604
    %v1609 = vadd.f32 %v1586, %v1604
    %v1610 = vadd.f32 %v1587, %v1604
    %v1611 = vadd.f32 %v1588, %v1604
    %v1612 = vadd.f32 %v1589, %v1604
    %v1613 = vadd.f32 %v1590, %v1604
    %v1614 = vadd.f32 %v1591, %v1604
    %v1615 = vadd.f32 %v1592, %v1604
    %v1616 = vadd.f32 %v1593, %v1604
    %v1617 = vadd.f32 %v1594, %v1604
    %v1618 = vadd.f32 %v1595, %v1604
    %v1619 = vadd.f32 %v1596, %v1604
    %v1620 = vadd.f32 %v1597, %v1604
    %v1621 = vadd.f32 %v1598, %v1604
    %v1622 = vtanh.pop %v1606
    %v1623 = vtanh.pop %v1607
    %v1624 = vtanh.pop %v1608
    %v1625 = vtanh.pop %v1609
    %v1626 = vtanh.pop %v1610
    %v1627 = vtanh.pop %v1611
    %v1628 = vtanh.pop %v1612
    %v1629 = vtanh.pop %v1613
    %v1630 = vtanh.pop %v1614
    %v1631 = vtanh.pop %v1615
    %v1632 = vtanh.pop %v1616
    %v1633 = vtanh.pop %v1617
    %v1634 = vtanh.pop %v1618
    %v1635 = vtanh.pop %v1619
    %v1636 = vtanh.pop %v1620
    %v1637 = vtanh.pop %v1621
    %vm1638 = vcmask 254976
    %1639 = vst.msk [vmem:[#allocation3] sm:$0x3] %vm1638, 0.0
    %1640 = vst.msk [vmem:[#allocation3 + $0x18] sm:$0x3] %vm1638, 0.0
    %1641 = vst.msk [vmem:[#allocation3 + $0x30] sm:$0x3] %vm1638, 0.0
    %1642 = vst.msk [vmem:[#allocation3 + $0x48] sm:$0x3] %vm1638, 0.0
    %1643 = vst.msk [vmem:[#allocation3 + $0x60] sm:$0x3] %vm1638, 0.0
    %1644 = vst.msk [vmem:[#allocation3 + $0x78] sm:$0x3] %vm1638, 0.0
    %1645 = vst.msk [vmem:[#allocation3 + $0x90] sm:$0x3] %vm1638, 0.0
    %1646 = vst.msk [vmem:[#allocation3 + $0xa8] sm:$0x3] %vm1638, 0.0
    %1647 = vst.msk [vmem:[#allocation3 + $0x12] sm:$0x3] %vm1638, 0.0
    %1648 = vst.msk [vmem:[#allocation3 + $0x2a] sm:$0x3] %vm1638, 0.0
    %1649 = vst.msk [vmem:[#allocation3 + $0x42] sm:$0x3] %vm1638, 0.0
    %1650 = vst.msk [vmem:[#allocation3 + $0x5a] sm:$0x3] %vm1638, 0.0
    %1651 = vst.msk [vmem:[#allocation3 + $0x72] sm:$0x3] %vm1638, 0.0
    %1652 = vst.msk [vmem:[#allocation3 + $0x8a] sm:$0x3] %vm1638, 0.0
    %1653 = vst.msk [vmem:[#allocation3 + $0xa2] sm:$0x3] %vm1638, 0.0
    %1654 = vst.msk [vmem:[#allocation3 + $0xba] sm:$0x3] %vm1638, 0.0
    %1655 = vst.msk [vmem:[#allocation3 + $0x2] sm:$0xff] %vm1245, %v1622
    %1656 = vst.msk [vmem:[#allocation3 + $0xa] sm:$0xff] %vm1245, %v1623
    %1657 = vst.msk [vmem:[#allocation3 + $0x1a] sm:$0xff] %vm1245, %v1624
    %1658 = vst.msk [vmem:[#allocation3 + $0x22] sm:$0xff] %vm1245, %v1625
    %1659 = vst.msk [vmem:[#allocation3 + $0x32] sm:$0xff] %vm1245, %v1626
    %1660 = vst.msk [vmem:[#allocation3 + $0x3a] sm:$0xff] %vm1245, %v1627
    %1661 = vst.msk [vmem:[#allocation3 + $0x4a] sm:$0xff] %vm1245, %v1628
    %1662 = vst.msk [vmem:[#allocation3 + $0x52] sm:$0xff] %vm1245, %v1629
    %1663 = vst.msk [vmem:[#allocation3 + $0x62] sm:$0xff] %vm1245, %v1630
    %1664 = vst.msk [vmem:[#allocation3 + $0x6a] sm:$0xff] %vm1245, %v1631
    %1665 = vst.msk [vmem:[#allocation3 + $0x7a] sm:$0xff] %vm1245, %v1632
    %1666 = vst.msk [vmem:[#allocation3 + $0x82] sm:$0xff] %vm1245, %v1633
    %1667 = vst.msk [vmem:[#allocation3 + $0x92] sm:$0xff] %vm1245, %v1634
    %1668 = vst.msk [vmem:[#allocation3 + $0x9a] sm:$0xff] %vm1245, %v1635
    %1669 = vst.msk [vmem:[#allocation3 + $0xaa] sm:$0xff] %vm1245, %v1636
    %1670 = vst.msk [vmem:[#allocation3 + $0xb2] sm:$0xff] %vm1245, %v1637
    %v1671 = vld [vmem:[#allocation3] ss:$2 sm:$0xff]
    %s1672 = scalar_lea.vmem [#allocation3], 24
    %v1673 = vld [vmem:[%s1672] ss:$2 sm:$0xff]
    %s1674 = scalar_lea.vmem [#allocation3], 48
    %v1675 = vld [vmem:[%s1674] ss:$2 sm:$0xff]
    %s1676 = scalar_lea.vmem [#allocation3], 72
    %v1677 = vld [vmem:[%s1676] ss:$2 sm:$0xff]
    %s1678 = scalar_lea.vmem [#allocation3], 96
    %v1679 = vld [vmem:[%s1678] ss:$2 sm:$0xff]
    %s1680 = scalar_lea.vmem [#allocation3], 120
    %v1681 = vld [vmem:[%s1680] ss:$2 sm:$0xff]
    %s1682 = scalar_lea.vmem [#allocation3], 144
    %v1683 = vld [vmem:[%s1682] ss:$2 sm:$0xff]
    %s1684 = scalar_lea.vmem [#allocation3], 168
    %v1685 = vld [vmem:[%s1684] ss:$2 sm:$0xff]
    %s1686 = scalar_lea.vmem [#allocation3], 1
    %v1687 = vld [vmem:[%s1686] ss:$2 sm:$0xff]
    %s1688 = scalar_lea.vmem [#allocation3], 25
    %v1689 = vld [vmem:[%s1688] ss:$2 sm:$0xff]
    %s1690 = scalar_lea.vmem [#allocation3], 49
    %v1691 = vld [vmem:[%s1690] ss:$2 sm:$0xff]
    %s1692 = scalar_lea.vmem [#allocation3], 73
    %v1693 = vld [vmem:[%s1692] ss:$2 sm:$0xff]
    %s1694 = scalar_lea.vmem [#allocation3], 97
    %v1695 = vld [vmem:[%s1694] ss:$2 sm:$0xff]
    %s1696 = scalar_lea.vmem [#allocation3], 121
    %v1697 = vld [vmem:[%s1696] ss:$2 sm:$0xff]
    %s1698 = scalar_lea.vmem [#allocation3], 145
    %v1699 = vld [vmem:[%s1698] ss:$2 sm:$0xff]
    %s1700 = scalar_lea.vmem [#allocation3], 169
    %v1701 = vld [vmem:[%s1700] ss:$2 sm:$0xff]
    %s1702 = scalar_lea.vmem [#allocation3], 2
    %v1703 = vld [vmem:[%s1702] ss:$2 sm:$0xff]
    %s1704 = scalar_lea.vmem [#allocation3], 26
    %v1705 = vld [vmem:[%s1704] ss:$2 sm:$0xff]
    %s1706 = scalar_lea.vmem [#allocation3], 50
    %v1707 = vld [vmem:[%s1706] ss:$2 sm:$0xff]
    %s1708 = scalar_lea.vmem [#allocation3], 74
    %v1709 = vld [vmem:[%s1708] ss:$2 sm:$0xff]
    %s1710 = scalar_lea.vmem [#allocation3], 98
    %v1711 = vld [vmem:[%s1710] ss:$2 sm:$0xff]
    %s1712 = scalar_lea.vmem [#allocation3], 122
    %v1713 = vld [vmem:[%s1712] ss:$2 sm:$0xff]
    %s1714 = scalar_lea.vmem [#allocation3], 146
    %v1715 = vld [vmem:[%s1714] ss:$2 sm:$0xff]
    %s1716 = scalar_lea.vmem [#allocation3], 170
    %v1717 = vld [vmem:[%s1716] ss:$2 sm:$0xff]
    %s1718 = scalar_lea.vmem [#allocation3], 3
    %v1719 = vld [vmem:[%s1718] ss:$2 sm:$0xff]
    %s1720 = scalar_lea.vmem [#allocation3], 27
    %v1721 = vld [vmem:[%s1720] ss:$2 sm:$0xff]
    %s1722 = scalar_lea.vmem [#allocation3], 51
    %v1723 = vld [vmem:[%s1722] ss:$2 sm:$0xff]
    %s1724 = scalar_lea.vmem [#allocation3], 75
    %v1725 = vld [vmem:[%s1724] ss:$2 sm:$0xff]
    %s1726 = scalar_lea.vmem [#allocation3], 99
    %v1727 = vld [vmem:[%s1726] ss:$2 sm:$0xff]
    %s1728 = scalar_lea.vmem [#allocation3], 123
    %v1729 = vld [vmem:[%s1728] ss:$2 sm:$0xff]
    %s1730 = scalar_lea.vmem [#allocation3], 147
    %v1731 = vld [vmem:[%s1730] ss:$2 sm:$0xff]
    %s1732 = scalar_lea.vmem [#allocation3], 171
    %v1733 = vld [vmem:[%s1732] ss:$2 sm:$0xff]
    %s1734 = scalar_lea.vmem [#allocation3], 4
    %v1735 = vld [vmem:[%s1734] ss:$2 sm:$0xff]
    %s1736 = scalar_lea.vmem [#allocation3], 28
    %v1737 = vld [vmem:[%s1736] ss:$2 sm:$0xff]
    %s1738 = scalar_lea.vmem [#allocation3], 52
    %v1739 = vld [vmem:[%s1738] ss:$2 sm:$0xff]
    %s1740 = scalar_lea.vmem [#allocation3], 76
    %v1741 = vld [vmem:[%s1740] ss:$2 sm:$0xff]
    %s1742 = scalar_lea.vmem [#allocation3], 100
    %v1743 = vld [vmem:[%s1742] ss:$2 sm:$0xff]
    %s1744 = scalar_lea.vmem [#allocation3], 124
    %v1745 = vld [vmem:[%s1744] ss:$2 sm:$0xff]
    %s1746 = scalar_lea.vmem [#allocation3], 148
    %v1747 = vld [vmem:[%s1746] ss:$2 sm:$0xff]
    %s1748 = scalar_lea.vmem [#allocation3], 172
    %v1749 = vld [vmem:[%s1748] ss:$2 sm:$0xff]
    %s1750 = scalar_lea.vmem [#allocation3], 5
    %v1751 = vld [vmem:[%s1750] ss:$2 sm:$0xff]
    %s1752 = scalar_lea.vmem [#allocation3], 29
    %v1753 = vld [vmem:[%s1752] ss:$2 sm:$0xff]
    %s1754 = scalar_lea.vmem [#allocation3], 53
    %v1755 = vld [vmem:[%s1754] ss:$2 sm:$0xff]
    %s1756 = scalar_lea.vmem [#allocation3], 77
    %v1757 = vld [vmem:[%s1756] ss:$2 sm:$0xff]
    %s1758 = scalar_lea.vmem [#allocation3], 101
    %v1759 = vld [vmem:[%s1758] ss:$2 sm:$0xff]
    %s1760 = scalar_lea.vmem [#allocation3], 125
    %v1761 = vld [vmem:[%s1760] ss:$2 sm:$0xff]
    %s1762 = scalar_lea.vmem [#allocation3], 149
    %v1763 = vld [vmem:[%s1762] ss:$2 sm:$0xff]
    %s1764 = scalar_lea.vmem [#allocation3], 173
    %v1765 = vld [vmem:[%s1764] ss:$2 sm:$0xff]
    %1774 = vrot.lane.b32.xlu0 %v1687, 32
    %v1775 = vpop.permute.xlu0 %1774
    %1776 = vrot.lane.b32.xlu0 %v1689, 32
    %v1777 = vpop.permute.xlu0 %1776
    %1778 = vrot.lane.b32.xlu0 %v1691, 32
    %v1779 = vpop.permute.xlu0 %1778
    %1780 = vrot.lane.b32.xlu0 %v1693, 32
    %v1781 = vpop.permute.xlu0 %1780
    %1782 = vrot.lane.b32.xlu0 %v1695, 32
    %v1783 = vpop.permute.xlu0 %1782
    %1784 = vrot.lane.b32.xlu0 %v1697, 32
    %v1785 = vpop.permute.xlu0 %1784
    %1786 = vrot.lane.b32.xlu0 %v1699, 32
    %v1787 = vpop.permute.xlu0 %1786
    %1788 = vrot.lane.b32.xlu0 %v1701, 32
    %v1789 = vpop.permute.xlu0 %1788
    %1806 = vrot.lane.b32.xlu0 %v1703, 64
    %v1807 = vpop.permute.xlu0 %1806
    %1808 = vrot.lane.b32.xlu0 %v1705, 64
    %v1809 = vpop.permute.xlu0 %1808
    %1810 = vrot.lane.b32.xlu0 %v1707, 64
    %v1811 = vpop.permute.xlu0 %1810
    %1812 = vrot.lane.b32.xlu0 %v1709, 64
    %v1813 = vpop.permute.xlu0 %1812
    %1814 = vrot.lane.b32.xlu0 %v1711, 64
    %v1815 = vpop.permute.xlu0 %1814
    %1816 = vrot.lane.b32.xlu0 %v1713, 64
    %v1817 = vpop.permute.xlu0 %1816
    %1818 = vrot.lane.b32.xlu0 %v1715, 64
    %v1819 = vpop.permute.xlu0 %1818
    %1820 = vrot.lane.b32.xlu0 %v1717, 64
    %v1821 = vpop.permute.xlu0 %1820
    %1838 = vrot.lane.b32.xlu0 %v1719, 96
    %v1839 = vpop.permute.xlu0 %1838
    %1840 = vrot.lane.b32.xlu0 %v1721, 96
    %v1841 = vpop.permute.xlu0 %1840
    %1842 = vrot.lane.b32.xlu0 %v1723, 96
    %v1843 = vpop.permute.xlu0 %1842
    %1844 = vrot.lane.b32.xlu0 %v1725, 96
    %v1845 = vpop.permute.xlu0 %1844
    %1846 = vrot.lane.b32.xlu0 %v1727, 96
    %v1847 = vpop.permute.xlu0 %1846
    %1848 = vrot.lane.b32.xlu0 %v1729, 96
    %v1849 = vpop.permute.xlu0 %1848
    %1850 = vrot.lane.b32.xlu0 %v1731, 96
    %v1851 = vpop.permute.xlu0 %1850
    %1852 = vrot.lane.b32.xlu0 %v1733, 96
    %v1853 = vpop.permute.xlu0 %1852
    %1870 = vrot.lane.b32.xlu0 %v1751, 32
    %v1871 = vpop.permute.xlu0 %1870
    %1872 = vrot.lane.b32.xlu0 %v1753, 32
    %v1873 = vpop.permute.xlu0 %1872
    %1874 = vrot.lane.b32.xlu0 %v1755, 32
    %v1875 = vpop.permute.xlu0 %1874
    %1876 = vrot.lane.b32.xlu0 %v1757, 32
    %v1877 = vpop.permute.xlu0 %1876
    %1878 = vrot.lane.b32.xlu0 %v1759, 32
    %v1879 = vpop.permute.xlu0 %1878
    %1880 = vrot.lane.b32.xlu0 %v1761, 32
    %v1881 = vpop.permute.xlu0 %1880
    %1882 = vrot.lane.b32.xlu0 %v1763, 32
    %v1883 = vpop.permute.xlu0 %1882
    %1884 = vrot.lane.b32.xlu0 %v1765, 32
    %v1885 = vpop.permute.xlu0 %1884
    %v1894 = vsel %vm1245, %v1671, %v1775
    %v1895 = vsel %vm1245, %v1673, %v1777
    %v1896 = vsel %vm1245, %v1675, %v1779
    %v1897 = vsel %vm1245, %v1677, %v1781
    %v1898 = vsel %vm1245, %v1679, %v1783
    %v1899 = vsel %vm1245, %v1681, %v1785
    %v1900 = vsel %vm1245, %v1683, %v1787
    %v1901 = vsel %vm1245, %v1685, %v1789
    %v1902 = vsel %vm1279, %v1894, %v1807
    %v1903 = vsel %vm1279, %v1895, %v1809
    %v1904 = vsel %vm1279, %v1896, %v1811
    %v1905 = vsel %vm1279, %v1897, %v1813
    %v1906 = vsel %vm1279, %v1898, %v1815
    %v1907 = vsel %vm1279, %v1899, %v1817
    %v1908 = vsel %vm1279, %v1900, %v1819
    %v1909 = vsel %vm1279, %v1901, %v1821
    %v1910 = vsel %vm1325, %v1902, %v1839
    %v1911 = vsel %vm1325, %v1903, %v1841
    %v1912 = vsel %vm1325, %v1904, %v1843
    %v1913 = vsel %vm1325, %v1905, %v1845
    %v1914 = vsel %vm1325, %v1906, %v1847
    %v1915 = vsel %vm1325, %v1907, %v1849
    %v1916 = vsel %vm1325, %v1908, %v1851
    %v1917 = vsel %vm1325, %v1909, %v1853
    %v1918 = vsel %vm1245, %v1735, %v1871
    %v1919 = vsel %vm1245, %v1737, %v1873
    %v1920 = vsel %vm1245, %v1739, %v1875
    %v1921 = vsel %vm1245, %v1741, %v1877
    %v1922 = vsel %vm1245, %v1743, %v1879
    %v1923 = vsel %vm1245, %v1745, %v1881
    %v1924 = vsel %vm1245, %v1747, %v1883
    %v1925 = vsel %vm1245, %v1749, %v1885
    %v1926 = vld [vmem:[%s5] sm:$0xff]
    %v1927 = vld [vmem:[%s5 + $0x8] sm:$0xff]
    %v1928 = vld [vmem:[%s5 + $0x10] sm:$0xff]
    %v1929 = vld [vmem:[%s5 + $0x18] sm:$0xff]
    %v1930 = vld [vmem:[%s5 + $0x20] sm:$0xff]
    %v1931 = vld [vmem:[%s5 + $0x28] sm:$0xff]
    %v1932 = vld [vmem:[%s5 + $0x30] sm:$0xff]
    %v1933 = vld [vmem:[%s5 + $0x38] sm:$0xff]
    %v1934 = vld [vmem:[%s5 + $0x40] sm:$0xff]
    %v1935 = vld [vmem:[%s5 + $0x48] sm:$0xff]
    %v1936 = vld [vmem:[%s5 + $0x50] sm:$0xff]
    %v1937 = vld [vmem:[%s5 + $0x58] sm:$0xff]
    %v1938 = vld [vmem:[%s5 + $0x60] sm:$0xff]
    %v1939 = vld [vmem:[%s5 + $0x68] sm:$0xff]
    %v1940 = vld [vmem:[%s5 + $0x70] sm:$0xff]
    %v1941 = vld [vmem:[%s5 + $0x78] sm:$0xff]
    %v1942 = vld [vmem:[%s5 + $0x80] sm:$0xff]
    %v1943 = vld [vmem:[%s5 + $0x88] sm:$0xff]
    %v1944 = vld [vmem:[%s5 + $0x90] sm:$0xff]
    %v1945 = vld [vmem:[%s5 + $0x98] sm:$0xff]
    %v1946 = vld [vmem:[%s5 + $0xa0] sm:$0xff]
    %v1947 = vld [vmem:[%s5 + $0xa8] sm:$0xff]
    %v1948 = vld [vmem:[%s5 + $0xb0] sm:$0xff]
    %v1949 = vld [vmem:[%s5 + $0xb8] sm:$0xff]
    %v1951 = vsel %vm1279, %v1918, 0
    %v1954 = vsel %vm1279, %v1919, 0
    %v1957 = vsel %vm1279, %v1920, 0
    %v1960 = vsel %vm1279, %v1921, 0
    %v1963 = vsel %vm1279, %v1922, 0
    %v1966 = vsel %vm1279, %v1923, 0
    %v1969 = vsel %vm1279, %v1924, 0
    %v1972 = vsel %vm1279, %v1925, 0
    %1974 = vmatprep.subr.mxu0 0.0
    %1975 = vmatpush1.msra.mxu0 %v1926
    %1976 = vmatprep.subr.mxu0 0.0
    %1977 = vmatpush1.msra.mxu0 %v1927
    %1978 = vmatprep.subr.mxu0 0.0
    %1979 = vmatpush1.msra.mxu0 %v1928
    %1980 = vmatprep.subr.mxu0 0.0
    %1981 = vmatpush1.msra.mxu0 %v1929
    %1982 = vmatprep.subr.mxu0 0.0
    %1983 = vmatpush1.msra.mxu0 %v1930
    %1984 = vmatprep.subr.mxu0 0.0
    %1985 = vmatpush1.msra.mxu0 %v1931
    %1986 = vmatprep.subr.mxu0 0.0
    %1987 = vmatpush1.msra.mxu0 %v1932
    %1988 = vmatprep.subr.mxu0 0.0
    %1989 = vmatpush1.msra.mxu0 %v1933
    %1990 = vmatprep.subr.mxu0 0.0
    %1991 = vmatpush1.msra.mxu0 %v1934
    %1992 = vmatprep.subr.mxu0 0.0
    %1993 = vmatpush1.msra.mxu0 %v1935
    %1994 = vmatprep.subr.mxu0 0.0
    %1995 = vmatpush1.msra.mxu0 %v1936
    %1996 = vmatprep.subr.mxu0 0.0
    %1997 = vmatpush1.msra.mxu0 %v1937
    %1998 = vmatprep.subr.mxu0 0.0
    %1999 = vmatpush1.msra.mxu0 %v1938
    %2000 = vmatprep.subr.mxu0 0.0
    %2001 = vmatpush1.msra.mxu0 %v1939
    %2002 = vmatprep.subr.mxu0 0.0
    %2003 = vmatpush1.msra.mxu0 %v1940
    %2004 = vmatprep.subr.mxu0 0.0
    %2005 = vmatpush1.msra.mxu0 %v1941
    %2006 = vmatprep.subr.mxu0 0.0
    %2007 = vmatpush1.msra.mxu0 %v1942
    %2008 = vmatprep.subr.mxu0 0.0
    %2009 = vmatpush1.msra.mxu0 %v1943
    %2010 = vmatprep.subr.mxu0 0.0
    %2011 = vmatpush1.msra.mxu0 %v1944
    %2012 = vmatprep.subr.mxu0 0.0
    %2013 = vmatpush1.msra.mxu0 %v1945
    %2014 = vmatprep.subr.mxu0 0.0
    %2015 = vmatpush1.msra.mxu0 %v1946
    %2016 = vmatprep.subr.mxu0 0.0
    %2017 = vmatpush1.msra.mxu0 %v1947
    %2018 = vmatprep.subr.mxu0 0.0
    %2019 = vmatpush1.msra.mxu0 %v1948
    %2020 = vmatprep.subr.mxu0 0.0
    %2021 = vmatpush1.msra.mxu0 %v1949
    %2022 = vmatprep.subr.mxu0 0.0
    %2023 = vmatpush1.msra.mxu0 0.0
    %2024 = vmatprep.subr.mxu0 0.0
    %2025 = vmatpush1.msra.mxu0 0.0
    %2026 = vmatprep.subr.mxu0 0.0
    %2027 = vmatpush1.msra.mxu0 0.0
    %2028 = vmatprep.subr.mxu0 0.0
    %2029 = vmatpush1.msra.mxu0 0.0
    %2030 = vmatprep.subr.mxu0 0.0
    %2031 = vmatpush1.msra.mxu0 0.0
    %2032 = vmatprep.subr.mxu0 0.0
    %2033 = vmatpush1.msra.mxu0 0.0
    %2034 = vmatprep.subr.mxu0 0.0
    %2035 = vmatpush1.msra.mxu0 0.0
    %2036 = vmatprep.subr.mxu0 0.0
    %2037 = vmatpush1.msra.mxu0 0.0
    %2038 = vmatprep.mubr.f32.mxu0 %v1951
    %2039 = vmatmul.mubr.f32.gmra.mrb[0].mxu0 %v1910
    %v2040 = vpop.f32.mrb[0].mxu0
    %v2041 = vadd.f32 0.0, %v2040
    %v2042 = vpop.f32.mrb[0].mxu0
    %2043 = vmatprep.mubr.f32.mxu0 %v1954
    %2044 = vmatmul.mubr.f32.gmra.mrb[0].mxu0 %v1911
    %v2045 = vpop.f32.mrb[0].mxu0
    %v2046 = vadd.f32 0.0, %v2045
    %v2047 = vpop.f32.mrb[0].mxu0
    %2048 = vmatprep.mubr.f32.mxu0 %v1957
    %2049 = vmatmul.mubr.f32.gmra.mrb[0].mxu0 %v1912
    %v2050 = vpop.f32.mrb[0].mxu0
    %v2051 = vadd.f32 0.0, %v2050
    %v2052 = vpop.f32.mrb[0].mxu0
    %2053 = vmatprep.mubr.f32.mxu0 %v1960
    %2054 = vmatmul.mubr.f32.gmra.mrb[0].mxu0 %v1913
    %v2055 = vpop.f32.mrb[0].mxu0
    %v2056 = vadd.f32 0.0, %v2055
    %v2057 = vpop.f32.mrb[0].mxu0
    %2058 = vmatprep.mubr.f32.mxu0 %v1963
    %2059 = vmatmul.mubr.f32.gmra.mrb[0].mxu0 %v1914
    %v2060 = vpop.f32.mrb[0].mxu0
    %v2061 = vadd.f32 0.0, %v2060
    %v2062 = vpop.f32.mrb[0].mxu0
    %2063 = vmatprep.mubr.f32.mxu0 %v1966
    %2064 = vmatmul.mubr.f32.gmra.mrb[0].mxu0 %v1915
    %v2065 = vpop.f32.mrb[0].mxu0
    %v2066 = vadd.f32 0.0, %v2065
    %v2067 = vpop.f32.mrb[0].mxu0
    %2068 = vmatprep.mubr.f32.mxu0 %v1969
    %2069 = vmatmul.mubr.f32.gmra.mrb[0].mxu0 %v1916
    %v2070 = vpop.f32.mrb[0].mxu0
    %v2071 = vadd.f32 0.0, %v2070
    %v2072 = vpop.f32.mrb[0].mxu0
    %2073 = vmatprep.mubr.f32.mxu0 %v1972
    %2074 = vmatmul.mubr.f32.gmra.mrb[0].mxu0 %v1917
    %v2075 = vpop.f32.mrb[0].mxu0
    %v2076 = vadd.f32 0.0, %v2075
    %v2077 = vpop.f32.mrb[0].mxu0
    %2078 = vdwg.mxu0
    %2087 = vrot.lane.b32.xlu0 %v2041, 64
    %v2088 = vpop.permute.xlu0 %2087
    %2089 = vrot.lane.b32.xlu0 %v2046, 64
    %v2090 = vpop.permute.xlu0 %2089
    %2091 = vrot.lane.b32.xlu0 %v2051, 64
    %v2092 = vpop.permute.xlu0 %2091
    %2093 = vrot.lane.b32.xlu0 %v2056, 64
    %v2094 = vpop.permute.xlu0 %2093
    %2095 = vrot.lane.b32.xlu0 %v2061, 64
    %v2096 = vpop.permute.xlu0 %2095
    %2097 = vrot.lane.b32.xlu0 %v2066, 64
    %v2098 = vpop.permute.xlu0 %2097
    %2099 = vrot.lane.b32.xlu0 %v2071, 64
    %v2100 = vpop.permute.xlu0 %2099
    %2101 = vrot.lane.b32.xlu0 %v2076, 64
    %v2102 = vpop.permute.xlu0 %2101
    %v2111 = vmax.f32 %v2041, %v2088
    %v2112 = vmax.f32 %v2046, %v2090
    %v2113 = vmax.f32 %v2051, %v2092
    %v2114 = vmax.f32 %v2056, %v2094
    %v2115 = vmax.f32 %v2061, %v2096
    %v2116 = vmax.f32 %v2066, %v2098
    %v2117 = vmax.f32 %v2071, %v2100
    %v2118 = vmax.f32 %v2076, %v2102
    %v2119 = vld [vmem:[%s6] sm:$0x1]
    %v2121 = vlaneseq
    %v2122 = vshrl.u32 %v2121, 7
    %v2123 = vsub.s32 0, %v2122
    %v2124 = vrot.slane %v2119, %v2123
    %v2126 = vadd.f32 %v2111, %v2124
    %v2127 = vadd.f32 %v2112, %v2124
    %v2128 = vadd.f32 %v2113, %v2124
    %v2129 = vadd.f32 %v2114, %v2124
    %v2130 = vadd.f32 %v2115, %v2124
    %v2131 = vadd.f32 %v2116, %v2124
    %v2132 = vadd.f32 %v2117, %v2124
    %v2133 = vadd.f32 %v2118, %v2124
    %v2134 = vmax.f32 %v2126, 0.0
    %v2135 = vmax.f32 %v2127, 0.0
    %v2136 = vmax.f32 %v2128, 0.0
    %v2137 = vmax.f32 %v2129, 0.0
    %v2138 = vmax.f32 %v2130, 0.0
    %v2139 = vmax.f32 %v2131, 0.0
    %v2140 = vmax.f32 %v2132, 0.0
    %v2141 = vmax.f32 %v2133, 0.0
    %2142 = vst.msk [vmem:[#allocation4] sm:$0xff] %vm1279, %v2134
    %2143 = vst.msk [vmem:[#allocation4 + $0x8] sm:$0xff] %vm1279, %v2135
    %2144 = vst.msk [vmem:[#allocation4 + $0x10] sm:$0xff] %vm1279, %v2136
    %2145 = vst.msk [vmem:[#allocation4 + $0x18] sm:$0xff] %vm1279, %v2137
    %2146 = vst.msk [vmem:[#allocation4 + $0x20] sm:$0xff] %vm1279, %v2138
    %2147 = vst.msk [vmem:[#allocation4 + $0x28] sm:$0xff] %vm1279, %v2139
    %2148 = vst.msk [vmem:[#allocation4 + $0x30] sm:$0xff] %vm1279, %v2140
    %2149 = vst.msk [vmem:[#allocation4 + $0x38] sm:$0xff] %vm1279, %v2141
    %v2150 = vld [vmem:[#allocation9] sm:$0x1]
    %v2152 = vlaneseq
    %v2153 = vshrl.u32 %v2152, 7
    %v2154 = vsub.s32 0, %v2153
    %v2155 = vrot.slane %v2150, %v2154
    %v2157 = vld [vmem:[#allocation4] ss:$8 sm:$0xf]
    %v2158 = vld [vmem:[#allocation4] ss:$8 sm:$0xf0]
    %v2159 = vor.u32 %v2157, %v2158
    %v2160 = vld [vmem:[%s7] sm:$0xff]
    %v2161 = vld [vmem:[%s7 + $0x8] sm:$0xff]
    %v2162 = vld [vmem:[%s7 + $0x10] sm:$0xff]
    %v2163 = vld [vmem:[%s7 + $0x18] sm:$0xff]
    %v2164 = vld [vmem:[%s7 + $0x20] sm:$0xff]
    %v2165 = vld [vmem:[%s7 + $0x28] sm:$0xff]
    %v2166 = vld [vmem:[%s7 + $0x30] sm:$0xff]
    %v2167 = vld [vmem:[%s7 + $0x38] sm:$0xff]
    %v2169 = vsel %vm1279, %v2159, 0
    %2171 = vmatprep.subr.mxu0 0.0
    %2172 = vmatpush1.msra.mxu0 %v2160
    %2173 = vmatprep.subr.mxu0 0.0
    %2174 = vmatpush1.msra.mxu0 %v2161
    %2175 = vmatprep.subr.mxu0 0.0
    %2176 = vmatpush1.msra.mxu0 %v2162
    %2177 = vmatprep.subr.mxu0 0.0
    %2178 = vmatpush1.msra.mxu0 %v2163
    %2179 = vmatprep.subr.mxu0 0.0
    %2180 = vmatpush1.msra.mxu0 %v2164
    %2181 = vmatprep.subr.mxu0 0.0
    %2182 = vmatpush1.msra.mxu0 %v2165
    %2183 = vmatprep.subr.mxu0 0.0
    %2184 = vmatpush1.msra.mxu0 %v2166
    %2185 = vmatprep.subr.mxu0 0.0
    %2186 = vmatpush1.msra.mxu0 %v2167
    %2187 = vmatprep.subr.mxu0 0.0
    %2188 = vmatpush1.msra.mxu0 0.0
    %2189 = vmatprep.subr.mxu0 0.0
    %2190 = vmatpush1.msra.mxu0 0.0
    %2191 = vmatprep.subr.mxu0 0.0
    %2192 = vmatpush1.msra.mxu0 0.0
    %2193 = vmatprep.subr.mxu0 0.0
    %2194 = vmatpush1.msra.mxu0 0.0
    %2195 = vmatprep.subr.mxu0 0.0
    %2196 = vmatpush1.msra.mxu0 0.0
    %2197 = vmatprep.subr.mxu0 0.0
    %2198 = vmatpush1.msra.mxu0 0.0
    %2199 = vmatprep.subr.mxu0 0.0
    %2200 = vmatpush1.msra.mxu0 0.0
    %2201 = vmatprep.subr.mxu0 0.0
    %2202 = vmatpush1.msra.mxu0 0.0
    %2203 = vmatprep.subr.mxu0 0.0
    %2204 = vmatpush1.msra.mxu0 0.0
    %2205 = vmatprep.subr.mxu0 0.0
    %2206 = vmatpush1.msra.mxu0 0.0
    %2207 = vmatprep.subr.mxu0 0.0
    %2208 = vmatpush1.msra.mxu0 0.0
    %2209 = vmatprep.subr.mxu0 0.0
    %2210 = vmatpush1.msra.mxu0 0.0
    %2211 = vmatprep.subr.mxu0 0.0
    %2212 = vmatpush1.msra.mxu0 0.0
    %2213 = vmatprep.subr.mxu0 0.0
    %2214 = vmatpush1.msra.mxu0 0.0
    %2215 = vmatprep.subr.mxu0 0.0
    %2216 = vmatpush1.msra.mxu0 0.0
    %2217 = vmatprep.subr.mxu0 0.0
    %2218 = vmatpush1.msra.mxu0 0.0
    %2219 = vmatprep.subr.mxu0 0.0
    %2220 = vmatpush1.msra.mxu0 0.0
    %2221 = vmatprep.subr.mxu0 0.0
    %2222 = vmatpush1.msra.mxu0 0.0
    %2223 = vmatprep.subr.mxu0 0.0
    %2224 = vmatpush1.msra.mxu0 0.0
    %2225 = vmatprep.subr.mxu0 0.0
    %2226 = vmatpush1.msra.mxu0 0.0
    %2227 = vmatprep.subr.mxu0 0.0
    %2228 = vmatpush1.msra.mxu0 0.0
    %2229 = vmatprep.subr.mxu0 0.0
    %2230 = vmatpush1.msra.mxu0 0.0
    %2231 = vmatprep.subr.mxu0 0.0
    %2232 = vmatpush1.msra.mxu0 0.0
    %2233 = vmatprep.subr.mxu0 0.0
    %2234 = vmatpush1.msra.mxu0 0.0
    %2235 = vmatprep.mubr.f32.mxu0 0.0
    %2236 = vmatmul.mubr.f32.gmra.mrb[0].mxu0 %v2169
    %v2237 = vpop.f32.mrb[0].mxu0
    %v2238 = vadd.f32 0.0, %v2237
    %v2239 = vpop.f32.mrb[0].mxu0
    %2240 = vdwg.mxu0
    %v2241 = vadd.f32 %v2155, %v2238
    %s2242 = scalar_lea.vmem [#allocation4], 1
    %v2243 = vld [vmem:[%s2242] ss:$8 sm:$0xf]
    %v2244 = vld [vmem:[%s2242] ss:$8 sm:$0xf0]
    %v2245 = vor.u32 %v2243, %v2244
    %s2246 = scalar_lea.vmem %s7, 64
    %v2247 = vld [vmem:[%s2246] sm:$0xff]
    %v2248 = vld [vmem:[%s2246 + $0x8] sm:$0xff]
    %v2249 = vld [vmem:[%s2246 + $0x10] sm:$0xff]
    %v2250 = vld [vmem:[%s2246 + $0x18] sm:$0xff]
    %v2251 = vld [vmem:[%s2246 + $0x20] sm:$0xff]
    %v2252 = vld [vmem:[%s2246 + $0x28] sm:$0xff]
    %v2253 = vld [vmem:[%s2246 + $0x30] sm:$0xff]
    %v2254 = vld [vmem:[%s2246 + $0x38] sm:$0xff]
    %v2256 = vsel %vm1279, %v2245, 0
    %2258 = vmatprep.subr.mxu0 0.0
    %2259 = vmatpush1.msra.mxu0 %v2247
    %2260 = vmatprep.subr.mxu0 0.0
    %2261 = vmatpush1.msra.mxu0 %v2248
    %2262 = vmatprep.subr.mxu0 0.0
    %2263 = vmatpush1.msra.mxu0 %v2249
    %2264 = vmatprep.subr.mxu0 0.0
    %2265 = vmatpush1.msra.mxu0 %v2250
    %2266 = vmatprep.subr.mxu0 0.0
    %2267 = vmatpush1.msra.mxu0 %v2251
    %2268 = vmatprep.subr.mxu0 0.0
    %2269 = vmatpush1.msra.mxu0 %v2252
    %2270 = vmatprep.subr.mxu0 0.0
    %2271 = vmatpush1.msra.mxu0 %v2253
    %2272 = vmatprep.subr.mxu0 0.0
    %2273 = vmatpush1.msra.mxu0 %v2254
    %2274 = vmatprep.subr.mxu0 0.0
    %2275 = vmatpush1.msra.mxu0 0.0
    %2276 = vmatprep.subr.mxu0 0.0
    %2277 = vmatpush1.msra.mxu0 0.0
    %2278 = vmatprep.subr.mxu0 0.0
    %2279 = vmatpush1.msra.mxu0 0.0
    %2280 = vmatprep.subr.mxu0 0.0
    %2281 = vmatpush1.msra.mxu0 0.0
    %2282 = vmatprep.subr.mxu0 0.0
    %2283 = vmatpush1.msra.mxu0 0.0
    %2284 = vmatprep.subr.mxu0 0.0
    %2285 = vmatpush1.msra.mxu0 0.0
    %2286 = vmatprep.subr.mxu0 0.0
    %2287 = vmatpush1.msra.mxu0 0.0
    %2288 = vmatprep.subr.mxu0 0.0
    %2289 = vmatpush1.msra.mxu0 0.0
    %2290 = vmatprep.subr.mxu0 0.0
    %2291 = vmatpush1.msra.mxu0 0.0
    %2292 = vmatprep.subr.mxu0 0.0
    %2293 = vmatpush1.msra.mxu0 0.0
    %2294 = vmatprep.subr.mxu0 0.0
    %2295 = vmatpush1.msra.mxu0 0.0
    %2296 = vmatprep.subr.mxu0 0.0
    %2297 = vmatpush1.msra.mxu0 0.0
    %2298 = vmatprep.subr.mxu0 0.0
    %2299 = vmatpush1.msra.mxu0 0.0
    %2300 = vmatprep.subr.mxu0 0.0
    %2301 = vmatpush1.msra.mxu0 0.0
    %2302 = vmatprep.subr.mxu0 0.0
    %2303 = vmatpush1.msra.mxu0 0.0
    %2304 = vmatprep.subr.mxu0 0.0
    %2305 = vmatpush1.msra.mxu0 0.0
    %2306 = vmatprep.subr.mxu0 0.0
    %2307 = vmatpush1.msra.mxu0 0.0
    %2308 = vmatprep.subr.mxu0 0.0
    %2309 = vmatpush1.msra.mxu0 0.0
    %2310 = vmatprep.subr.mxu0 0.0
    %2311 = vmatpush1.msra.mxu0 0.0
    %2312 = vmatprep.subr.mxu0 0.0
    %2313 = vmatpush1.msra.mxu0 0.0
    %2314 = vmatprep.subr.mxu0 0.0
    %2315 = vmatpush1.msra.mxu0 0.0
    %2316 = vmatprep.subr.mxu0 0.0
    %2317 = vmatpush1.msra.mxu0 0.0
    %2318 = vmatprep.subr.mxu0 0.0
    %2319 = vmatpush1.msra.mxu0 0.0
    %2320 = vmatprep.subr.mxu0 0.0
    %2321 = vmatpush1.msra.mxu0 0.0
    %2322 = vmatprep.mubr.f32.mxu0 0.0
    %2323 = vmatmul.mubr.f32.gmra.mrb[0].mxu0 %v2256
    %v2324 = vpop.f32.mrb[0].mxu0
    %v2325 = vadd.f32 0.0, %v2324
    %v2326 = vpop.f32.mrb[0].mxu0
    %2327 = vdwg.mxu0
    %v2328 = vadd.f32 %v2241, %v2325
    %s2329 = scalar_lea.vmem [#allocation4], 2
    %v2330 = vld [vmem:[%s2329] ss:$8 sm:$0xf]
    %v2331 = vld [vmem:[%s2329] ss:$8 sm:$0xf0]
    %v2332 = vor.u32 %v2330, %v2331
    %s2333 = scalar_lea.vmem %s7, 128
    %v2334 = vld [vmem:[%s2333] sm:$0xff]
    %v2335 = vld [vmem:[%s2333 + $0x8] sm:$0xff]
    %v2336 = vld [vmem:[%s2333 + $0x10] sm:$0xff]
    %v2337 = vld [vmem:[%s2333 + $0x18] sm:$0xff]
    %v2338 = vld [vmem:[%s2333 + $0x20] sm:$0xff]
    %v2339 = vld [vmem:[%s2333 + $0x28] sm:$0xff]
    %v2340 = vld [vmem:[%s2333 + $0x30] sm:$0xff]
    %v2341 = vld [vmem:[%s2333 + $0x38] sm:$0xff]
    %v2343 = vsel %vm1279, %v2332, 0
    %2345 = vmatprep.subr.mxu0 0.0
    %2346 = vmatpush1.msra.mxu0 %v2334
    %2347 = vmatprep.subr.mxu0 0.0
    %2348 = vmatpush1.msra.mxu0 %v2335
    %2349 = vmatprep.subr.mxu0 0.0
    %2350 = vmatpush1.msra.mxu0 %v2336
    %2351 = vmatprep.subr.mxu0 0.0
    %2352 = vmatpush1.msra.mxu0 %v2337
    %2353 = vmatprep.subr.mxu0 0.0
    %2354 = vmatpush1.msra.mxu0 %v2338
    %2355 = vmatprep.subr.mxu0 0.0
    %2356 = vmatpush1.msra.mxu0 %v2339
    %2357 = vmatprep.subr.mxu0 0.0
    %2358 = vmatpush1.msra.mxu0 %v2340
    %2359 = vmatprep.subr.mxu0 0.0
    %2360 = vmatpush1.msra.mxu0 %v2341
    %2361 = vmatprep.subr.mxu0 0.0
    %2362 = vmatpush1.msra.mxu0 0.0
    %2363 = vmatprep.subr.mxu0 0.0
    %2364 = vmatpush1.msra.mxu0 0.0
    %2365 = vmatprep.subr.mxu0 0.0
    %2366 = vmatpush1.msra.mxu0 0.0
    %2367 = vmatprep.subr.mxu0 0.0
    %2368 = vmatpush1.msra.mxu0 0.0
    %2369 = vmatprep.subr.mxu0 0.0
    %2370 = vmatpush1.msra.mxu0 0.0
    %2371 = vmatprep.subr.mxu0 0.0
    %2372 = vmatpush1.msra.mxu0 0.0
    %2373 = vmatprep.subr.mxu0 0.0
    %2374 = vmatpush1.msra.mxu0 0.0
    %2375 = vmatprep.subr.mxu0 0.0
    %2376 = vmatpush1.msra.mxu0 0.0
    %2377 = vmatprep.subr.mxu0 0.0
    %2378 = vmatpush1.msra.mxu0 0.0
    %2379 = vmatprep.subr.mxu0 0.0
    %2380 = vmatpush1.msra.mxu0 0.0
    %2381 = vmatprep.subr.mxu0 0.0
    %2382 = vmatpush1.msra.mxu0 0.0
    %2383 = vmatprep.subr.mxu0 0.0
    %2384 = vmatpush1.msra.mxu0 0.0
    %2385 = vmatprep.subr.mxu0 0.0
    %2386 = vmatpush1.msra.mxu0 0.0
    %2387 = vmatprep.subr.mxu0 0.0
    %2388 = vmatpush1.msra.mxu0 0.0
    %2389 = vmatprep.subr.mxu0 0.0
    %2390 = vmatpush1.msra.mxu0 0.0
    %2391 = vmatprep.subr.mxu0 0.0
    %2392 = vmatpush1.msra.mxu0 0.0
    %2393 = vmatprep.subr.mxu0 0.0
    %2394 = vmatpush1.msra.mxu0 0.0
    %2395 = vmatprep.subr.mxu0 0.0
    %2396 = vmatpush1.msra.mxu0 0.0
    %2397 = vmatprep.subr.mxu0 0.0
    %2398 = vmatpush1.msra.mxu0 0.0
    %2399 = vmatprep.subr.mxu0 0.0
    %2400 = vmatpush1.msra.mxu0 0.0
    %2401 = vmatprep.subr.mxu0 0.0
    %2402 = vmatpush1.msra.mxu0 0.0
    %2403 = vmatprep.subr.mxu0 0.0
    %2404 = vmatpush1.msra.mxu0 0.0
    %2405 = vmatprep.subr.mxu0 0.0
    %2406 = vmatpush1.msra.mxu0 0.0
    %2407 = vmatprep.subr.mxu0 0.0
    %2408 = vmatpush1.msra.mxu0 0.0
    %2409 = vmatprep.mubr.f32.mxu0 0.0
    %2410 = vmatmul.mubr.f32.gmra.mrb[0].mxu0 %v2343
    %v2411 = vpop.f32.mrb[0].mxu0
    %v2412 = vadd.f32 0.0, %v2411
    %v2413 = vpop.f32.mrb[0].mxu0
    %2414 = vdwg.mxu0
    %v2415 = vadd.f32 %v2328, %v2412
    %s2416 = scalar_lea.vmem [#allocation4], 3
    %v2417 = vld [vmem:[%s2416] ss:$8 sm:$0xf]
    %v2418 = vld [vmem:[%s2416] ss:$8 sm:$0xf0]
    %v2419 = vor.u32 %v2417, %v2418
    %s2420 = scalar_lea.vmem %s7, 192
    %v2421 = vld [vmem:[%s2420] sm:$0xff]
    %v2422 = vld [vmem:[%s2420 + $0x8] sm:$0xff]
    %v2423 = vld [vmem:[%s2420 + $0x10] sm:$0xff]
    %v2424 = vld [vmem:[%s2420 + $0x18] sm:$0xff]
    %v2425 = vld [vmem:[%s2420 + $0x20] sm:$0xff]
    %v2426 = vld [vmem:[%s2420 + $0x28] sm:$0xff]
    %v2427 = vld [vmem:[%s2420 + $0x30] sm:$0xff]
    %v2428 = vld [vmem:[%s2420 + $0x38] sm:$0xff]
    %v2430 = vsel %vm1279, %v2419, 0
    %2432 = vmatprep.subr.mxu0 0.0
    %2433 = vmatpush1.msra.mxu0 %v2421
    %2434 = vmatprep.subr.mxu0 0.0
    %2435 = vmatpush1.msra.mxu0 %v2422
    %2436 = vmatprep.subr.mxu0 0.0
    %2437 = vmatpush1.msra.mxu0 %v2423
    %2438 = vmatprep.subr.mxu0 0.0
    %2439 = vmatpush1.msra.mxu0 %v2424
    %2440 = vmatprep.subr.mxu0 0.0
    %2441 = vmatpush1.msra.mxu0 %v2425
    %2442 = vmatprep.subr.mxu0 0.0
    %2443 = vmatpush1.msra.mxu0 %v2426
    %2444 = vmatprep.subr.mxu0 0.0
    %2445 = vmatpush1.msra.mxu0 %v2427
    %2446 = vmatprep.subr.mxu0 0.0
    %2447 = vmatpush1.msra.mxu0 %v2428
    %2448 = vmatprep.subr.mxu0 0.0
    %2449 = vmatpush1.msra.mxu0 0.0
    %2450 = vmatprep.subr.mxu0 0.0
    %2451 = vmatpush1.msra.mxu0 0.0
    %2452 = vmatprep.subr.mxu0 0.0
    %2453 = vmatpush1.msra.mxu0 0.0
    %2454 = vmatprep.subr.mxu0 0.0
    %2455 = vmatpush1.msra.mxu0 0.0
    %2456 = vmatprep.subr.mxu0 0.0
    %2457 = vmatpush1.msra.mxu0 0.0
    %2458 = vmatprep.subr.mxu0 0.0
    %2459 = vmatpush1.msra.mxu0 0.0
    %2460 = vmatprep.subr.mxu0 0.0
    %2461 = vmatpush1.msra.mxu0 0.0
    %2462 = vmatprep.subr.mxu0 0.0
    %2463 = vmatpush1.msra.mxu0 0.0
    %2464 = vmatprep.subr.mxu0 0.0
    %2465 = vmatpush1.msra.mxu0 0.0
    %2466 = vmatprep.subr.mxu0 0.0
    %2467 = vmatpush1.msra.mxu0 0.0
    %2468 = vmatprep.subr.mxu0 0.0
    %2469 = vmatpush1.msra.mxu0 0.0
    %2470 = vmatprep.subr.mxu0 0.0
    %2471 = vmatpush1.msra.mxu0 0.0
    %2472 = vmatprep.subr.mxu0 0.0
    %2473 = vmatpush1.msra.mxu0 0.0
    %2474 = vmatprep.subr.mxu0 0.0
    %2475 = vmatpush1.msra.mxu0 0.0
    %2476 = vmatprep.subr.mxu0 0.0
    %2477 = vmatpush1.msra.mxu0 0.0
    %2478 = vmatprep.subr.mxu0 0.0
    %2479 = vmatpush1.msra.mxu0 0.0
    %2480 = vmatprep.subr.mxu0 0.0
    %2481 = vmatpush1.msra.mxu0 0.0
    %2482 = vmatprep.subr.mxu0 0.0
    %2483 = vmatpush1.msra.mxu0 0.0
    %2484 = vmatprep.subr.mxu0 0.0
    %2485 = vmatpush1.msra.mxu0 0.0
    %2486 = vmatprep.subr.mxu0 0.0
    %2487 = vmatpush1.msra.mxu0 0.0
    %2488 = vmatprep.subr.mxu0 0.0
    %2489 = vmatpush1.msra.mxu0 0.0
    %2490 = vmatprep.subr.mxu0 0.0
    %2491 = vmatpush1.msra.mxu0 0.0
    %2492 = vmatprep.subr.mxu0 0.0
    %2493 = vmatpush1.msra.mxu0 0.0
    %2494 = vmatprep.subr.mxu0 0.0
    %2495 = vmatpush1.msra.mxu0 0.0
    %2496 = vmatprep.mubr.f32.mxu0 0.0
    %2497 = vmatmul.mubr.f32.gmra.mrb[0].mxu0 %v2430
    %v2498 = vpop.f32.mrb[0].mxu0
    %v2499 = vadd.f32 0.0, %v2498
    %v2500 = vpop.f32.mrb[0].mxu0
    %2501 = vdwg.mxu0
    %v2502 = vadd.f32 %v2415, %v2499
    %s2503 = scalar_lea.vmem [#allocation4], 4
    %v2504 = vld [vmem:[%s2503] ss:$8 sm:$0xf]
    %v2505 = vld [vmem:[%s2503] ss:$8 sm:$0xf0]
    %v2506 = vor.u32 %v2504, %v2505
    %s2507 = scalar_lea.vmem %s7, 256
    %v2508 = vld [vmem:[%s2507] sm:$0xff]
    %v2509 = vld [vmem:[%s2507 + $0x8] sm:$0xff]
    %v2510 = vld [vmem:[%s2507 + $0x10] sm:$0xff]
    %v2511 = vld [vmem:[%s2507 + $0x18] sm:$0xff]
    %v2512 = vld [vmem:[%s2507 + $0x20] sm:$0xff]
    %v2513 = vld [vmem:[%s2507 + $0x28] sm:$0xff]
    %v2514 = vld [vmem:[%s2507 + $0x30] sm:$0xff]
    %v2515 = vld [vmem:[%s2507 + $0x38] sm:$0xff]
    %v2517 = vsel %vm1279, %v2506, 0
    %2519 = vmatprep.subr.mxu0 0.0
    %2520 = vmatpush1.msra.mxu0 %v2508
    %2521 = vmatprep.subr.mxu0 0.0
    %2522 = vmatpush1.msra.mxu0 %v2509
    %2523 = vmatprep.subr.mxu0 0.0
    %2524 = vmatpush1.msra.mxu0 %v2510
    %2525 = vmatprep.subr.mxu0 0.0
    %2526 = vmatpush1.msra.mxu0 %v2511
    %2527 = vmatprep.subr.mxu0 0.0
    %2528 = vmatpush1.msra.mxu0 %v2512
    %2529 = vmatprep.subr.mxu0 0.0
    %2530 = vmatpush1.msra.mxu0 %v2513
    %2531 = vmatprep.subr.mxu0 0.0
    %2532 = vmatpush1.msra.mxu0 %v2514
    %2533 = vmatprep.subr.mxu0 0.0
    %2534 = vmatpush1.msra.mxu0 %v2515
    %2535 = vmatprep.subr.mxu0 0.0
    %2536 = vmatpush1.msra.mxu0 0.0
    %2537 = vmatprep.subr.mxu0 0.0
    %2538 = vmatpush1.msra.mxu0 0.0
    %2539 = vmatprep.subr.mxu0 0.0
    %2540 = vmatpush1.msra.mxu0 0.0
    %2541 = vmatprep.subr.mxu0 0.0
    %2542 = vmatpush1.msra.mxu0 0.0
    %2543 = vmatprep.subr.mxu0 0.0
    %2544 = vmatpush1.msra.mxu0 0.0
    %2545 = vmatprep.subr.mxu0 0.0
    %2546 = vmatpush1.msra.mxu0 0.0
    %2547 = vmatprep.subr.mxu0 0.0
    %2548 = vmatpush1.msra.mxu0 0.0
    %2549 = vmatprep.subr.mxu0 0.0
    %2550 = vmatpush1.msra.mxu0 0.0
    %2551 = vmatprep.subr.mxu0 0.0
    %2552 = vmatpush1.msra.mxu0 0.0
    %2553 = vmatprep.subr.mxu0 0.0
    %2554 = vmatpush1.msra.mxu0 0.0
    %2555 = vmatprep.subr.mxu0 0.0
    %2556 = vmatpush1.msra.mxu0 0.0
    %2557 = vmatprep.subr.mxu0 0.0
    %2558 = vmatpush1.msra.mxu0 0.0
    %2559 = vmatprep.subr.mxu0 0.0
    %2560 = vmatpush1.msra.mxu0 0.0
    %2561 = vmatprep.subr.mxu0 0.0
    %2562 = vmatpush1.msra.mxu0 0.0
    %2563 = vmatprep.subr.mxu0 0.0
    %2564 = vmatpush1.msra.mxu0 0.0
    %2565 = vmatprep.subr.mxu0 0.0
    %2566 = vmatpush1.msra.mxu0 0.0
    %2567 = vmatprep.subr.mxu0 0.0
    %2568 = vmatpush1.msra.mxu0 0.0
    %2569 = vmatprep.subr.mxu0 0.0
    %2570 = vmatpush1.msra.mxu0 0.0
    %2571 = vmatprep.subr.mxu0 0.0
    %2572 = vmatpush1.msra.mxu0 0.0
    %2573 = vmatprep.subr.mxu0 0.0
    %2574 = vmatpush1.msra.mxu0 0.0
    %2575 = vmatprep.subr.mxu0 0.0
    %2576 = vmatpush1.msra.mxu0 0.0
    %2577 = vmatprep.subr.mxu0 0.0
    %2578 = vmatpush1.msra.mxu0 0.0
    %2579 = vmatprep.subr.mxu0 0.0
    %2580 = vmatpush1.msra.mxu0 0.0
    %2581 = vmatprep.subr.mxu0 0.0
    %2582 = vmatpush1.msra.mxu0 0.0
    %2583 = vmatprep.mubr.f32.mxu0 0.0
    %2584 = vmatmul.mubr.f32.gmra.mrb[0].mxu0 %v2517
    %v2585 = vpop.f32.mrb[0].mxu0
    %v2586 = vadd.f32 0.0, %v2585
    %v2587 = vpop.f32.mrb[0].mxu0
    %2588 = vdwg.mxu0
    %v2589 = vadd.f32 %v2502, %v2586
    %s2590 = scalar_lea.vmem [#allocation4], 5
    %v2591 = vld [vmem:[%s2590] ss:$8 sm:$0xf]
    %v2592 = vld [vmem:[%s2590] ss:$8 sm:$0xf0]
    %v2593 = vor.u32 %v2591, %v2592
    %s2594 = scalar_lea.vmem %s7, 320
    %v2595 = vld [vmem:[%s2594] sm:$0xff]
    %v2596 = vld [vmem:[%s2594 + $0x8] sm:$0xff]
    %v2597 = vld [vmem:[%s2594 + $0x10] sm:$0xff]
    %v2598 = vld [vmem:[%s2594 + $0x18] sm:$0xff]
    %v2599 = vld [vmem:[%s2594 + $0x20] sm:$0xff]
    %v2600 = vld [vmem:[%s2594 + $0x28] sm:$0xff]
    %v2601 = vld [vmem:[%s2594 + $0x30] sm:$0xff]
    %v2602 = vld [vmem:[%s2594 + $0x38] sm:$0xff]
    %v2604 = vsel %vm1279, %v2593, 0
    %2606 = vmatprep.subr.mxu0 0.0
    %2607 = vmatpush1.msra.mxu0 %v2595
    %2608 = vmatprep.subr.mxu0 0.0
    %2609 = vmatpush1.msra.mxu0 %v2596
    %2610 = vmatprep.subr.mxu0 0.0
    %2611 = vmatpush1.msra.mxu0 %v2597
    %2612 = vmatprep.subr.mxu0 0.0
    %2613 = vmatpush1.msra.mxu0 %v2598
    %2614 = vmatprep.subr.mxu0 0.0
    %2615 = vmatpush1.msra.mxu0 %v2599
    %2616 = vmatprep.subr.mxu0 0.0
    %2617 = vmatpush1.msra.mxu0 %v2600
    %2618 = vmatprep.subr.mxu0 0.0
    %2619 = vmatpush1.msra.mxu0 %v2601
    %2620 = vmatprep.subr.mxu0 0.0
    %2621 = vmatpush1.msra.mxu0 %v2602
    %2622 = vmatprep.subr.mxu0 0.0
    %2623 = vmatpush1.msra.mxu0 0.0
    %2624 = vmatprep.subr.mxu0 0.0
    %2625 = vmatpush1.msra.mxu0 0.0
    %2626 = vmatprep.subr.mxu0 0.0
    %2627 = vmatpush1.msra.mxu0 0.0
    %2628 = vmatprep.subr.mxu0 0.0
    %2629 = vmatpush1.msra.mxu0 0.0
    %2630 = vmatprep.subr.mxu0 0.0
    %2631 = vmatpush1.msra.mxu0 0.0
    %2632 = vmatprep.subr.mxu0 0.0
    %2633 = vmatpush1.msra.mxu0 0.0
    %2634 = vmatprep.subr.mxu0 0.0
    %2635 = vmatpush1.msra.mxu0 0.0
    %2636 = vmatprep.subr.mxu0 0.0
    %2637 = vmatpush1.msra.mxu0 0.0
    %2638 = vmatprep.subr.mxu0 0.0
    %2639 = vmatpush1.msra.mxu0 0.0
    %2640 = vmatprep.subr.mxu0 0.0
    %2641 = vmatpush1.msra.mxu0 0.0
    %2642 = vmatprep.subr.mxu0 0.0
    %2643 = vmatpush1.msra.mxu0 0.0
    %2644 = vmatprep.subr.mxu0 0.0
    %2645 = vmatpush1.msra.mxu0 0.0
    %2646 = vmatprep.subr.mxu0 0.0
    %2647 = vmatpush1.msra.mxu0 0.0
    %2648 = vmatprep.subr.mxu0 0.0
    %2649 = vmatpush1.msra.mxu0 0.0
    %2650 = vmatprep.subr.mxu0 0.0
    %2651 = vmatpush1.msra.mxu0 0.0
    %2652 = vmatprep.subr.mxu0 0.0
    %2653 = vmatpush1.msra.mxu0 0.0
    %2654 = vmatprep.subr.mxu0 0.0
    %2655 = vmatpush1.msra.mxu0 0.0
    %2656 = vmatprep.subr.mxu0 0.0
    %2657 = vmatpush1.msra.mxu0 0.0
    %2658 = vmatprep.subr.mxu0 0.0
    %2659 = vmatpush1.msra.mxu0 0.0
    %2660 = vmatprep.subr.mxu0 0.0
    %2661 = vmatpush1.msra.mxu0 0.0
    %2662 = vmatprep.subr.mxu0 0.0
    %2663 = vmatpush1.msra.mxu0 0.0
    %2664 = vmatprep.subr.mxu0 0.0
    %2665 = vmatpush1.msra.mxu0 0.0
    %2666 = vmatprep.subr.mxu0 0.0
    %2667 = vmatpush1.msra.mxu0 0.0
    %2668 = vmatprep.subr.mxu0 0.0
    %2669 = vmatpush1.msra.mxu0 0.0
    %2670 = vmatprep.mubr.f32.mxu0 0.0
    %2671 = vmatmul.mubr.f32.gmra.mrb[0].mxu0 %v2604
    %v2672 = vpop.f32.mrb[0].mxu0
    %v2673 = vadd.f32 0.0, %v2672
    %v2674 = vpop.f32.mrb[0].mxu0
    %2675 = vdwg.mxu0
    %v2676 = vadd.f32 %v2589, %v2673
    %s2677 = scalar_lea.vmem [#allocation4], 6
    %v2678 = vld [vmem:[%s2677] ss:$8 sm:$0xf]
    %v2679 = vld [vmem:[%s2677] ss:$8 sm:$0xf0]
    %v2680 = vor.u32 %v2678, %v2679
    %s2681 = scalar_lea.vmem %s7, 384
    %v2682 = vld [vmem:[%s2681] sm:$0xff]
    %v2683 = vld [vmem:[%s2681 + $0x8] sm:$0xff]
    %v2684 = vld [vmem:[%s2681 + $0x10] sm:$0xff]
    %v2685 = vld [vmem:[%s2681 + $0x18] sm:$0xff]
    %v2686 = vld [vmem:[%s2681 + $0x20] sm:$0xff]
    %v2687 = vld [vmem:[%s2681 + $0x28] sm:$0xff]
    %v2688 = vld [vmem:[%s2681 + $0x30] sm:$0xff]
    %v2689 = vld [vmem:[%s2681 + $0x38] sm:$0xff]
    %v2691 = vsel %vm1279, %v2680, 0
    %2693 = vmatprep.subr.mxu0 0.0
    %2694 = vmatpush1.msra.mxu0 %v2682
    %2695 = vmatprep.subr.mxu0 0.0
    %2696 = vmatpush1.msra.mxu0 %v2683
    %2697 = vmatprep.subr.mxu0 0.0
    %2698 = vmatpush1.msra.mxu0 %v2684
    %2699 = vmatprep.subr.mxu0 0.0
    %2700 = vmatpush1.msra.mxu0 %v2685
    %2701 = vmatprep.subr.mxu0 0.0
    %2702 = vmatpush1.msra.mxu0 %v2686
    %2703 = vmatprep.subr.mxu0 0.0
    %2704 = vmatpush1.msra.mxu0 %v2687
    %2705 = vmatprep.subr.mxu0 0.0
    %2706 = vmatpush1.msra.mxu0 %v2688
    %2707 = vmatprep.subr.mxu0 0.0
    %2708 = vmatpush1.msra.mxu0 %v2689
    %2709 = vmatprep.subr.mxu0 0.0
    %2710 = vmatpush1.msra.mxu0 0.0
    %2711 = vmatprep.subr.mxu0 0.0
    %2712 = vmatpush1.msra.mxu0 0.0
    %2713 = vmatprep.subr.mxu0 0.0
    %2714 = vmatpush1.msra.mxu0 0.0
    %2715 = vmatprep.subr.mxu0 0.0
    %2716 = vmatpush1.msra.mxu0 0.0
    %2717 = vmatprep.subr.mxu0 0.0
    %2718 = vmatpush1.msra.mxu0 0.0
    %2719 = vmatprep.subr.mxu0 0.0
    %2720 = vmatpush1.msra.mxu0 0.0
    %2721 = vmatprep.subr.mxu0 0.0
    %2722 = vmatpush1.msra.mxu0 0.0
    %2723 = vmatprep.subr.mxu0 0.0
    %2724 = vmatpush1.msra.mxu0 0.0
    %2725 = vmatprep.subr.mxu0 0.0
    %2726 = vmatpush1.msra.mxu0 0.0
    %2727 = vmatprep.subr.mxu0 0.0
    %2728 = vmatpush1.msra.mxu0 0.0
    %2729 = vmatprep.subr.mxu0 0.0
    %2730 = vmatpush1.msra.mxu0 0.0
    %2731 = vmatprep.subr.mxu0 0.0
    %2732 = vmatpush1.msra.mxu0 0.0
    %2733 = vmatprep.subr.mxu0 0.0
    %2734 = vmatpush1.msra.mxu0 0.0
    %2735 = vmatprep.subr.mxu0 0.0
    %2736 = vmatpush1.msra.mxu0 0.0
    %2737 = vmatprep.subr.mxu0 0.0
    %2738 = vmatpush1.msra.mxu0 0.0
    %2739 = vmatprep.subr.mxu0 0.0
    %2740 = vmatpush1.msra.mxu0 0.0
    %2741 = vmatprep.subr.mxu0 0.0
    %2742 = vmatpush1.msra.mxu0 0.0
    %2743 = vmatprep.subr.mxu0 0.0
    %2744 = vmatpush1.msra.mxu0 0.0
    %2745 = vmatprep.subr.mxu0 0.0
    %2746 = vmatpush1.msra.mxu0 0.0
    %2747 = vmatprep.subr.mxu0 0.0
    %2748 = vmatpush1.msra.mxu0 0.0
    %2749 = vmatprep.subr.mxu0 0.0
    %2750 = vmatpush1.msra.mxu0 0.0
    %2751 = vmatprep.subr.mxu0 0.0
    %2752 = vmatpush1.msra.mxu0 0.0
    %2753 = vmatprep.subr.mxu0 0.0
    %2754 = vmatpush1.msra.mxu0 0.0
    %2755 = vmatprep.subr.mxu0 0.0
    %2756 = vmatpush1.msra.mxu0 0.0
    %2757 = vmatprep.mubr.f32.mxu0 0.0
    %2758 = vmatmul.mubr.f32.gmra.mrb[0].mxu0 %v2691
    %v2759 = vpop.f32.mrb[0].mxu0
    %v2760 = vadd.f32 0.0, %v2759
    %v2761 = vpop.f32.mrb[0].mxu0
    %2762 = vdwg.mxu0
    %v2763 = vadd.f32 %v2676, %v2760
    %s2764 = scalar_lea.vmem [#allocation4], 7
    %v2765 = vld [vmem:[%s2764] ss:$8 sm:$0xf]
    %v2766 = vld [vmem:[%s2764] ss:$8 sm:$0xf0]
    %v2767 = vor.u32 %v2765, %v2766
    %s2768 = scalar_lea.vmem %s7, 448
    %v2769 = vld [vmem:[%s2768] sm:$0xff]
    %v2770 = vld [vmem:[%s2768 + $0x8] sm:$0xff]
    %v2771 = vld [vmem:[%s2768 + $0x10] sm:$0xff]
    %v2772 = vld [vmem:[%s2768 + $0x18] sm:$0xff]
    %v2773 = vld [vmem:[%s2768 + $0x20] sm:$0xff]
    %v2774 = vld [vmem:[%s2768 + $0x28] sm:$0xff]
    %v2775 = vld [vmem:[%s2768 + $0x30] sm:$0xff]
    %v2776 = vld [vmem:[%s2768 + $0x38] sm:$0xff]
    %v2778 = vsel %vm1279, %v2767, 0
    %2780 = vmatprep.subr.mxu0 0.0
    %2781 = vmatpush1.msra.mxu0 %v2769
    %2782 = vmatprep.subr.mxu0 0.0
    %2783 = vmatpush1.msra.mxu0 %v2770
    %2784 = vmatprep.subr.mxu0 0.0
    %2785 = vmatpush1.msra.mxu0 %v2771
    %2786 = vmatprep.subr.mxu0 0.0
    %2787 = vmatpush1.msra.mxu0 %v2772
    %2788 = vmatprep.subr.mxu0 0.0
    %2789 = vmatpush1.msra.mxu0 %v2773
    %2790 = vmatprep.subr.mxu0 0.0
    %2791 = vmatpush1.msra.mxu0 %v2774
    %2792 = vmatprep.subr.mxu0 0.0
    %2793 = vmatpush1.msra.mxu0 %v2775
    %2794 = vmatprep.subr.mxu0 0.0
    %2795 = vmatpush1.msra.mxu0 %v2776
    %2796 = vmatprep.subr.mxu0 0.0
    %2797 = vmatpush1.msra.mxu0 0.0
    %2798 = vmatprep.subr.mxu0 0.0
    %2799 = vmatpush1.msra.mxu0 0.0
    %2800 = vmatprep.subr.mxu0 0.0
    %2801 = vmatpush1.msra.mxu0 0.0
    %2802 = vmatprep.subr.mxu0 0.0
    %2803 = vmatpush1.msra.mxu0 0.0
    %2804 = vmatprep.subr.mxu0 0.0
    %2805 = vmatpush1.msra.mxu0 0.0
    %2806 = vmatprep.subr.mxu0 0.0
    %2807 = vmatpush1.msra.mxu0 0.0
    %2808 = vmatprep.subr.mxu0 0.0
    %2809 = vmatpush1.msra.mxu0 0.0
    %2810 = vmatprep.subr.mxu0 0.0
    %2811 = vmatpush1.msra.mxu0 0.0
    %2812 = vmatprep.subr.mxu0 0.0
    %2813 = vmatpush1.msra.mxu0 0.0
    %2814 = vmatprep.subr.mxu0 0.0
    %2815 = vmatpush1.msra.mxu0 0.0
    %2816 = vmatprep.subr.mxu0 0.0
    %2817 = vmatpush1.msra.mxu0 0.0
    %2818 = vmatprep.subr.mxu0 0.0
    %2819 = vmatpush1.msra.mxu0 0.0
    %2820 = vmatprep.subr.mxu0 0.0
    %2821 = vmatpush1.msra.mxu0 0.0
    %2822 = vmatprep.subr.mxu0 0.0
    %2823 = vmatpush1.msra.mxu0 0.0
    %2824 = vmatprep.subr.mxu0 0.0
    %2825 = vmatpush1.msra.mxu0 0.0
    %2826 = vmatprep.subr.mxu0 0.0
    %2827 = vmatpush1.msra.mxu0 0.0
    %2828 = vmatprep.subr.mxu0 0.0
    %2829 = vmatpush1.msra.mxu0 0.0
    %2830 = vmatprep.subr.mxu0 0.0
    %2831 = vmatpush1.msra.mxu0 0.0
    %2832 = vmatprep.subr.mxu0 0.0
    %2833 = vmatpush1.msra.mxu0 0.0
    %2834 = vmatprep.subr.mxu0 0.0
    %2835 = vmatpush1.msra.mxu0 0.0
    %2836 = vmatprep.subr.mxu0 0.0
    %2837 = vmatpush1.msra.mxu0 0.0
    %2838 = vmatprep.subr.mxu0 0.0
    %2839 = vmatpush1.msra.mxu0 0.0
    %2840 = vmatprep.subr.mxu0 0.0
    %2841 = vmatpush1.msra.mxu0 0.0
    %2842 = vmatprep.subr.mxu0 0.0
    %2843 = vmatpush1.msra.mxu0 0.0
    %2844 = vmatprep.mubr.f32.mxu0 0.0
    %2845 = vmatmul.mubr.f32.gmra.mrb[0].mxu0 %v2778
    %v2846 = vpop.f32.mrb[0].mxu0
    %v2847 = vadd.f32 0.0, %v2846
    %v2848 = vpop.f32.mrb[0].mxu0
    %2849 = vdwg.mxu0
    %v2850 = vadd.f32 %v2763, %v2847
    %v2851 = vmax.f32 %v2850, 0.0
    %v2852 = vld [vmem:[%s9] sm:$0xff]
    %v2853 = vld [vmem:[%s9 + $0x8] sm:$0xff]
    %v2854 = vld [vmem:[%s9 + $0x10] sm:$0xff]
    %v2855 = vld [vmem:[%s9 + $0x18] sm:$0xff]
    %v2856 = vld [vmem:[%s9 + $0x20] sm:$0xff]
    %v2857 = vld [vmem:[%s9 + $0x28] sm:$0xff]
    %v2858 = vld [vmem:[%s9 + $0x30] sm:$0xff]
    %v2859 = vld [vmem:[%s9 + $0x38] sm:$0xff]
    %v2860 = vld [vmem:[%s9 + $0x40] sm:$0xff]
    %v2861 = vld [vmem:[%s9 + $0x48] sm:$0xff]
    %v2862 = vld [vmem:[%s9 + $0x50] sm:$0xff]
    %v2863 = vld [vmem:[%s9 + $0x58] sm:$0xff]
    %v2864 = vld [vmem:[%s9 + $0x60] sm:$0xff]
    %v2865 = vld [vmem:[%s9 + $0x68] sm:$0xff]
    %v2866 = vld [vmem:[%s9 + $0x70] sm:$0xff]
    %v2867 = vld [vmem:[%s9 + $0x78] sm:$0xff]
    %v2868 = vld [vmem:[#allocation11] sm:$0x1]
    %v2870 = vlaneseq
    %v2871 = vshrl.u32 %v2870, 7
    %v2872 = vsub.s32 0, %v2871
    %v2873 = vrot.slane %v2868, %v2872
    %2875 = vmatprep.subr.mxu0 0.0
    %2876 = vmatpush1.msra.mxu0 %v2852
    %2877 = vmatprep.subr.mxu0 0.0
    %2878 = vmatpush1.msra.mxu0 %v2853
    %2879 = vmatprep.subr.mxu0 0.0
    %2880 = vmatpush1.msra.mxu0 %v2854
    %2881 = vmatprep.subr.mxu0 0.0
    %2882 = vmatpush1.msra.mxu0 %v2855
    %2883 = vmatprep.subr.mxu0 0.0
    %2884 = vmatpush1.msra.mxu0 %v2856
    %2885 = vmatprep.subr.mxu0 0.0
    %2886 = vmatpush1.msra.mxu0 %v2857
    %2887 = vmatprep.subr.mxu0 0.0
    %2888 = vmatpush1.msra.mxu0 %v2858
    %2889 = vmatprep.subr.mxu0 0.0
    %2890 = vmatpush1.msra.mxu0 %v2859
    %2891 = vmatprep.subr.mxu0 0.0
    %2892 = vmatpush1.msra.mxu0 %v2860
    %2893 = vmatprep.subr.mxu0 0.0
    %2894 = vmatpush1.msra.mxu0 %v2861
    %2895 = vmatprep.subr.mxu0 0.0
    %2896 = vmatpush1.msra.mxu0 %v2862
    %2897 = vmatprep.subr.mxu0 0.0
    %2898 = vmatpush1.msra.mxu0 %v2863
    %2899 = vmatprep.subr.mxu0 0.0
    %2900 = vmatpush1.msra.mxu0 %v2864
    %2901 = vmatprep.subr.mxu0 0.0
    %2902 = vmatpush1.msra.mxu0 %v2865
    %2903 = vmatprep.subr.mxu0 0.0
    %2904 = vmatpush1.msra.mxu0 %v2866
    %2905 = vmatprep.subr.mxu0 0.0
    %2906 = vmatpush1.msra.mxu0 %v2867
    %2907 = vmatprep.subr.mxu0 0.0
    %2908 = vmatpush1.msra.mxu0 0.0
    %2909 = vmatprep.subr.mxu0 0.0
    %2910 = vmatpush1.msra.mxu0 0.0
    %2911 = vmatprep.subr.mxu0 0.0
    %2912 = vmatpush1.msra.mxu0 0.0
    %2913 = vmatprep.subr.mxu0 0.0
    %2914 = vmatpush1.msra.mxu0 0.0
    %2915 = vmatprep.subr.mxu0 0.0
    %2916 = vmatpush1.msra.mxu0 0.0
    %2917 = vmatprep.subr.mxu0 0.0
    %2918 = vmatpush1.msra.mxu0 0.0
    %2919 = vmatprep.subr.mxu0 0.0
    %2920 = vmatpush1.msra.mxu0 0.0
    %2921 = vmatprep.subr.mxu0 0.0
    %2922 = vmatpush1.msra.mxu0 0.0
    %2923 = vmatprep.subr.mxu0 0.0
    %2924 = vmatpush1.msra.mxu0 0.0
    %2925 = vmatprep.subr.mxu0 0.0
    %2926 = vmatpush1.msra.mxu0 0.0
    %2927 = vmatprep.subr.mxu0 0.0
    %2928 = vmatpush1.msra.mxu0 0.0
    %2929 = vmatprep.subr.mxu0 0.0
    %2930 = vmatpush1.msra.mxu0 0.0
    %2931 = vmatprep.subr.mxu0 0.0
    %2932 = vmatpush1.msra.mxu0 0.0
    %2933 = vmatprep.subr.mxu0 0.0
    %2934 = vmatpush1.msra.mxu0 0.0
    %2935 = vmatprep.subr.mxu0 0.0
    %2936 = vmatpush1.msra.mxu0 0.0
    %2937 = vmatprep.subr.mxu0 0.0
    %2938 = vmatpush1.msra.mxu0 0.0
    %2939 = vmatprep.mubr.f32.mxu0 0.0
    %2940 = vmatmul.mubr.f32.gmra.mrb[0].mxu0 %v2851
    %v2941 = vpop.f32.mrb[0].mxu0
    %v2942 = vadd.f32 %v2873, %v2941
    %v2943 = vpop.f32.mrb[0].mxu0
    %2944 = vdwg.mxu0
    %v2945 = vmax.f32 %v2942, 0.0
    %v2946 = vld [vmem:[%s11] sm:$0xff]
    %v2947 = vld [vmem:[%s11 + $0x8] sm:$0xff]
    %v2948 = vld [vmem:[%s11 + $0x10] sm:$0xff]
    %v2949 = vld [vmem:[%s11 + $0x18] sm:$0xff]
    %v2950 = vld [vmem:[%s11 + $0x20] sm:$0xff]
    %v2951 = vld [vmem:[%s11 + $0x28] sm:$0xff]
    %v2952 = vld [vmem:[%s11 + $0x30] sm:$0xff]
    %v2953 = vld [vmem:[%s11 + $0x38] sm:$0xff]
    %v2954 = vld [vmem:[#allocation5] sm:$0x1]
    %v2956 = vlaneseq
    %v2957 = vshrl.u32 %v2956, 7
    %v2958 = vsub.s32 0, %v2957
    %v2959 = vrot.slane %v2954, %v2958
    %v2962 = vsel %vm1279, %v2945, 0
    %2964 = vmatprep.subr.mxu0 0.0
    %2965 = vmatpush1.msra.mxu0 %v2946
    %2966 = vmatprep.subr.mxu0 0.0
    %2967 = vmatpush1.msra.mxu0 %v2947
    %2968 = vmatprep.subr.mxu0 0.0
    %2969 = vmatpush1.msra.mxu0 %v2948
    %2970 = vmatprep.subr.mxu0 0.0
    %2971 = vmatpush1.msra.mxu0 %v2949
    %2972 = vmatprep.subr.mxu0 0.0
    %2973 = vmatpush1.msra.mxu0 %v2950
    %2974 = vmatprep.subr.mxu0 0.0
    %2975 = vmatpush1.msra.mxu0 %v2951
    %2976 = vmatprep.subr.mxu0 0.0
    %2977 = vmatpush1.msra.mxu0 %v2952
    %2978 = vmatprep.subr.mxu0 0.0
    %2979 = vmatpush1.msra.mxu0 %v2953
    %2980 = vmatprep.subr.mxu0 0.0
    %2981 = vmatpush1.msra.mxu0 0.0
    %2982 = vmatprep.subr.mxu0 0.0
    %2983 = vmatpush1.msra.mxu0 0.0
    %2984 = vmatprep.subr.mxu0 0.0
    %2985 = vmatpush1.msra.mxu0 0.0
    %2986 = vmatprep.subr.mxu0 0.0
    %2987 = vmatpush1.msra.mxu0 0.0
    %2988 = vmatprep.subr.mxu0 0.0
    %2989 = vmatpush1.msra.mxu0 0.0
    %2990 = vmatprep.subr.mxu0 0.0
    %2991 = vmatpush1.msra.mxu0 0.0
    %2992 = vmatprep.subr.mxu0 0.0
    %2993 = vmatpush1.msra.mxu0 0.0
    %2994 = vmatprep.subr.mxu0 0.0
    %2995 = vmatpush1.msra.mxu0 0.0
    %2996 = vmatprep.subr.mxu0 0.0
    %2997 = vmatpush1.msra.mxu0 0.0
    %2998 = vmatprep.subr.mxu0 0.0
    %2999 = vmatpush1.msra.mxu0 0.0
    %3000 = vmatprep.subr.mxu0 0.0
    %3001 = vmatpush1.msra.mxu0 0.0
    %3002 = vmatprep.subr.mxu0 0.0
    %3003 = vmatpush1.msra.mxu0 0.0
    %3004 = vmatprep.subr.mxu0 0.0
    %3005 = vmatpush1.msra.mxu0 0.0
    %3006 = vmatprep.subr.mxu0 0.0
    %3007 = vmatpush1.msra.mxu0 0.0
    %3008 = vmatprep.subr.mxu0 0.0
    %3009 = vmatpush1.msra.mxu0 0.0
    %3010 = vmatprep.subr.mxu0 0.0
    %3011 = vmatpush1.msra.mxu0 0.0
    %3012 = vmatprep.subr.mxu0 0.0
    %3013 = vmatpush1.msra.mxu0 0.0
    %3014 = vmatprep.subr.mxu0 0.0
    %3015 = vmatpush1.msra.mxu0 0.0
    %3016 = vmatprep.subr.mxu0 0.0
    %3017 = vmatpush1.msra.mxu0 0.0
    %3018 = vmatprep.subr.mxu0 0.0
    %3019 = vmatpush1.msra.mxu0 0.0
    %3020 = vmatprep.subr.mxu0 0.0
    %3021 = vmatpush1.msra.mxu0 0.0
    %3022 = vmatprep.subr.mxu0 0.0
    %3023 = vmatpush1.msra.mxu0 0.0
    %3024 = vmatprep.subr.mxu0 0.0
    %3025 = vmatpush1.msra.mxu0 0.0
    %3026 = vmatprep.subr.mxu0 0.0
    %3027 = vmatpush1.msra.mxu0 0.0
    %3028 = vmatprep.mubr.f32.mxu0 0.0
    %3029 = vmatmul.mubr.f32.gmra.mrb[0].mxu0 %v2962
    %v3030 = vpop.f32.mrb[0].mxu0
    %v3031 = vadd.f32 %v2959, %v3030
    %v3032 = vpop.f32.mrb[0].mxu0
    %3033 = vdwg.mxu0
    %3034 = vxpose.xlu0.b32.start [1/16] %v3031, 128
    %3035 = vxpose.xlu0.b32.cont [2/16] 0.0, 128
    %3036 = vxpose.xlu0.b32.cont [3/16] 0.0, 128
    %3037 = vxpose.xlu0.b32.cont [4/16] 0.0, 128
    %3038 = vxpose.xlu0.b32.cont [5/16] 0.0, 128
    %3039 = vxpose.xlu0.b32.cont [6/16] 0.0, 128
    %3040 = vxpose.xlu0.b32.cont [7/16] 0.0, 128
    %3041 = vxpose.xlu0.b32.cont [8/16] 0.0, 128
    %3042 = vxpose.xlu0.b32.cont [9/16] 0.0, 128
    %3043 = vxpose.xlu0.b32.cont [10/16] 0.0, 128
    %3044 = vxpose.xlu0.b32.cont [11/16] 0.0, 128
    %3045 = vxpose.xlu0.b32.cont [12/16] 0.0, 128
    %3046 = vxpose.xlu0.b32.cont [13/16] 0.0, 128
    %3047 = vxpose.xlu0.b32.cont [14/16] 0.0, 128
    %3048 = vxpose.xlu0.b32.cont [15/16] 0.0, 128
    %3049 = vxpose.xlu0.b32.end [16/16] 0.0, 128
    %v3050 = vpop.trf.xlu0
    %v3051 = vpop.trf.xlu0
    %v3052 = vpop.trf.xlu0
    %v3053 = vpop.trf.xlu0
    %v3054 = vpop.trf.xlu0
    %v3055 = vpop.trf.xlu0
    %v3056 = vpop.trf.xlu0
    %v3057 = vpop.trf.xlu0
    %v3058 = vpop.trf.xlu0
    %v3059 = vpop.trf.xlu0
    %v3060 = vpop.trf.xlu0
    %v3061 = vpop.trf.xlu0
    %v3062 = vpop.trf.xlu0
    %v3063 = vpop.trf.xlu0
    %v3064 = vpop.trf.xlu0
    %v3065 = vpop.trf.xlu0
    %vm3066 = vcmask 57344
    %3067 = vst.msk [vmem:[#allocation12] sm:$0x1] %vm3066, %v3050
    // Predicated region
    $region66: #{tpu_custom_call.1} parent=1 // pred_check
      _
    $region67: #{tpu_custom_call.1} parent=1 // pred_check_branch
      %3069 = sbr.rel (0) target = $region69
    $region68: #{tpu_custom_call.1} parent=1 // pred_region
      %s3071 = ssub.s32 16, 16
      %3072 = vsyncadd [#allocation8], %s3071
      %s3074 = sshll.u32 [#allocation12], 4
      %s3075 = int_to_ptr.vmem [resolvable:$true] %s3074
      %3077 = dma.vmem_to_hbm [thread:$0]  %s3075, 16, %s13, [#allocation8]
    $region69: #{tpu_custom_call.1} parent=1 // pred_fallthru
      _
    // Predicated region
    $region70: #{tpu_custom_call.1} parent=1 // pred_check
      _
    $region71: #{tpu_custom_call.1} parent=1 // pred_check_branch
      %3079 = sbr.rel (0) target = $region73
    $region72: #{tpu_custom_call.1} parent=1 // pred_region
      %3080 = dma.done [#allocation8], 16
    $region73: #{tpu_custom_call.1} parent=1 // pred_fallthru
      _
    %3081 = vsyncpa [#allocation7], 1
    %3082 = vsyncpa [#allocation10], 1
    %3083 = vsyncpa [#allocation8], 1

</llo_original>
